<compile_context>
chip_gen: v5e
topology: v5e:2x2
jax: 0.10.0
libtpu: 0.0.40
codegen_flags: <defaults>
</compile_context>

<pallas_src>
import functools

import jax
import jax.numpy as jnp
from jax.experimental import pallas as pl
from jax.experimental.pallas import tpu as pltpu


def _round_up(x, m):
    return ((x + m - 1) // m) * m


def _pick_tm(m):
    """Row-tile size: full M for small layers (exact block, no masking);
    two ~equal tiles (multiple of 16 for bf16 sublane packing) for big ones."""
    if m <= 256:
        return m
    return min(1024, _round_up(-(-m // 2), 16))


# ----------------------------------------------------------------------------
# Pallas kernel: fused matmul + bias (+ optional ReLU).  Hot path for every
# conv (via im2col) in the Encoder.  bf16 operands, f32 MXU accumulation.
# ----------------------------------------------------------------------------
def _mm_kernel(x_ref, w_ref, b_ref, o_ref, *, relu):
    y = jnp.dot(x_ref[...].astype(jnp.bfloat16),
                w_ref[...].astype(jnp.bfloat16),
                preferred_element_type=jnp.float32)
    y = y + b_ref[...]                     # (tm, N) + (1, N) broadcast, f32
    if relu:
        y = jnp.maximum(y, 0.0)
    o_ref[...] = y.astype(o_ref.dtype)


def matmul_bias_act(x, w, b, *, relu, out_dtype=jnp.float32, tm=None):
    """y = act(x @ w + b), tiled over rows of x.  No padding: Pallas masks the
    ragged last block for both the read and the write."""
    M, K = x.shape
    K2, N = w.shape
    assert K == K2, (K, K2)
    assert b.shape == (1, N), b.shape
    if tm is None:
        tm = _pick_tm(M)
    return pl.pallas_call(
        functools.partial(_mm_kernel, relu=relu),
        out_shape=jax.ShapeDtypeStruct((M, N), out_dtype),
        grid=(pl.cdiv(M, tm),),
        in_specs=[
            pl.BlockSpec((tm, K), lambda i: (i, 0)),   # row tile of activations
            pl.BlockSpec((K, N), lambda i: (0, 0)),    # full weight, resident
            pl.BlockSpec((1, N), lambda i: (0, 0)),    # bias
        ],
        out_specs=pl.BlockSpec((tm, N), lambda i: (i, 0)),
        compiler_params=pltpu.CompilerParams(
            dimension_semantics=("parallel",)),
    )(x, w, b)


# ----------------------------------------------------------------------------
# Pallas kernel: fused tail = Linear(576,256) -> [head_mu | head_logvar].
# Single launch; both heads share one (256, 2*z) weight for lane density.
# ----------------------------------------------------------------------------
def _tail_kernel(x_ref, wf_ref, bf_ref, wh_ref, bh_ref, o_ref):
    h = jnp.dot(x_ref[...].astype(jnp.bfloat16),
                wf_ref[...].astype(jnp.bfloat16),
                preferred_element_type=jnp.float32) + bf_ref[...]
    y = jnp.dot(h.astype(jnp.bfloat16),
                wh_ref[...].astype(jnp.bfloat16),
                preferred_element_type=jnp.float32) + bh_ref[...]
    o_ref[...] = y


def fc_and_heads(h_flat, wf, bf, wh, bh):
    M, K = h_flat.shape
    Kf, Nf = wf.shape
    Kh, Nh = wh.shape
    assert K == Kf and Nf == Kh, (K, Kf, Nf, Kh)
    return pl.pallas_call(
        _tail_kernel,
        out_shape=jax.ShapeDtypeStruct((M, Nh), jnp.float32),
        grid=(1,),
        in_specs=[
            pl.BlockSpec((M, K), lambda i: (0, 0)),
            pl.BlockSpec((Kf, Nf), lambda i: (0, 0)),
            pl.BlockSpec((1, Nf), lambda i: (0, 0)),
            pl.BlockSpec((Kh, Nh), lambda i: (0, 0)),
            pl.BlockSpec((1, Nh), lambda i: (0, 0)),
        ],
        out_specs=pl.BlockSpec((M, Nh), lambda i: (0, 0)),
    )(h_flat, wf, bf, wh, bh)


# ----------------------------------------------------------------------------
# Conv2d (valid padding) = im2col (XLA glue, bf16 patches) + Pallas matmul.
# Weight is pre-folded at init to (kh*kw*cin, cout) in (kh, kw, cin) order.
# ----------------------------------------------------------------------------
def conv2d(x_nhwc, w2d, b, *, kh, kw, stride):
    N, H, W, Cin = x_nhwc.shape
    KC, Cout = w2d.shape
    assert KC == kh * kw * Cin, (KC, kh, kw, Cin)
    oh = (H - kh) // stride + 1
    ow = (W - kw) // stride + 1
    cols = []
    for i in range(kh):
        for j in range(kw):
            cols.append(
                x_nhwc[:, i:i + stride * oh:stride, j:j + stride * ow:stride, :])
    patches = jnp.stack(cols, axis=3).reshape(N * oh * ow, kh * kw * Cin)
    patches = patches.astype(jnp.bfloat16)
    y = matmul_bias_act(patches, w2d, b, relu=True, out_dtype=jnp.bfloat16)
    return y.reshape(N, oh, ow, Cout)


# ----------------------------------------------------------------------------
# Parameter init (PyTorch-style uniform(-1/sqrt(fan_in), ...)) followed by a
# one-time fold into the kernel-friendly layouts (done here, not per forward).
# ----------------------------------------------------------------------------
def init_params(key, z_dim):
    def u(key, shape, fan_in):
        bound = 1.0 / jnp.sqrt(float(fan_in))
        return jax.random.uniform(key, shape, jnp.float32, -bound, bound)

    keys = jax.random.split(key, 16)
    # raw PyTorch-convention params: Conv2d OIHW, Linear (out, in)
    c1_w = u(keys[0], (32, 3, 4, 4), 3 * 4 * 4);    c1_b = u(keys[1], (32,), 3 * 4 * 4)
    c2_w = u(keys[2], (32, 32, 4, 4), 32 * 4 * 4);  c2_b = u(keys[3], (32,), 32 * 4 * 4)
    c3_w = u(keys[4], (64, 32, 2, 2), 32 * 2 * 2);  c3_b = u(keys[5], (64,), 32 * 2 * 2)
    c4_w = u(keys[6], (64, 64, 2, 2), 64 * 2 * 2);  c4_b = u(keys[7], (64,), 64 * 2 * 2)
    fc_w = u(keys[8], (256, 576), 576);             fc_b = u(keys[9], (256,), 576)
    mu_w = u(keys[10], (z_dim, 256), 256);          mu_b = u(keys[11], (z_dim,), 256)
    lv_w = u(keys[12], (z_dim, 256), 256);          lv_b = u(keys[13], (z_dim,), 256)

    def fold_conv(w):   # OIHW -> (kh*kw*cin, cout), matches im2col (kh,kw,cin)
        cout = w.shape[0]
        return jnp.transpose(w, (2, 3, 1, 0)).reshape(-1, cout).astype(jnp.bfloat16)

    p = {
        "c1_w": fold_conv(c1_w), "c1_b": c1_b.reshape(1, -1),
        "c2_w": fold_conv(c2_w), "c2_b": c2_b.reshape(1, -1),
        "c3_w": fold_conv(c3_w), "c3_b": c3_b.reshape(1, -1),
        "c4_w": fold_conv(c4_w), "c4_b": c4_b.reshape(1, -1),
        "fc_w": fc_w.T.astype(jnp.bfloat16), "fc_b": fc_b.reshape(1, -1),
        # both heads concatenated -> one matmul, 2*z_dim output lanes
        "head_w": jnp.concatenate([mu_w.T, lv_w.T], axis=1).astype(jnp.bfloat16),
        "head_b": jnp.concatenate([mu_b, lv_b]).reshape(1, -1),
    }
    # TODO(synk): `self.tail` Linear(4096*3, 400) is defined in __init__ but never
    # used in forward(); the args.pruning==True branch (L0Pair) is also not
    # defined in the reference — both are omitted.
    return p


# ----------------------------------------------------------------------------
# Full Encoder forward (non-pruning branch): returns (mu, logvar).
# ----------------------------------------------------------------------------
def encoder_forward(params, x_nchw):
    x = jnp.transpose(x_nchw, (0, 2, 3, 1)).astype(jnp.bfloat16)          # NCHW -> NHWC
    x = conv2d(x, params["c1_w"], params["c1_b"], kh=4, kw=4, stride=2)   # (N,31,31,32)
    x = conv2d(x, params["c2_w"], params["c2_b"], kh=4, kw=4, stride=2)   # (N,14,14,32)
    x = conv2d(x, params["c3_w"], params["c3_b"], kh=2, kw=2, stride=2)   # (N, 7, 7,64)
    x = conv2d(x, params["c4_w"], params["c4_b"], kh=2, kw=2, stride=2)   # (N, 3, 3,64)
    N = x.shape[0]
    # PyTorch Flatten on NCHW: (N, 64, 3, 3) -> (N, 576) in (c, h, w) order.
    h = jnp.transpose(x, (0, 3, 1, 2)).reshape(N, -1)                     # (N, 576)
    out = fc_and_heads(h, params["fc_w"], params["fc_b"],
                       params["head_w"], params["head_b"])                # (N, 2*z)
    z = params["head_w"].shape[1] // 2
    return out[:, :z], out[:, z:]


if __name__ == "__main__":
    z_dim = 32
    batch = 2
    key = jax.random.PRNGKey(0)
    k_param, k_x = jax.random.split(key)
    params = init_params(k_param, z_dim)
    # Input must be 64x64x3 (Flatten -> Linear(576, 256) forces 3x3x64 conv out).
    x = jax.random.normal(k_x, (batch, 3, 64, 64), dtype=jnp.float32)

    fwd = jax.jit(encoder_forward)
    mu, logvar = fwd(params, x)
    jax.block_until_ready((mu, logvar))

    assert mu.shape == (batch, z_dim), mu.shape
    assert logvar.shape == (batch, z_dim), logvar.shape
    assert mu.dtype == jnp.float32 and logvar.dtype == jnp.float32
    print("KERNEL_OK")
</pallas_src>

<mosaic_0001>
module attributes {stable_mosaic.version = 11 : i64} {
  func.func @_mm_kernel(%arg0: i32, %arg1: memref<976x48xbf16, #tpu.memory_space<vmem>>, %arg2: memref<48x32xbf16, #tpu.memory_space<vmem>>, %arg3: memref<1x32xf32, #tpu.memory_space<vmem>>, %arg4: memref<976x32xbf16, #tpu.memory_space<vmem>>) attributes {dimension_semantics = [#tpu.dimension_semantics<parallel>], iteration_bounds = array<i64: 2>, scalar_prefetch = 0 : i64, scratch_operands = 0 : i64, tpu.core_type = #tpu.core_type<tc>, window_params = [{transform_indices = @transform_0, window_bounds = array<i64: 976, 48>}, {pipeline_mode = #tpu.pipeline_mode<synchronous>, transform_indices = @transform_1, window_bounds = array<i64: 48, 32>}, {pipeline_mode = #tpu.pipeline_mode<synchronous>, transform_indices = @transform_2, window_bounds = array<i64: 1, 32>}, {transform_indices = @transform_3, window_bounds = array<i64: 976, 32>}]} {
    %c0 = arith.constant 0 : index
    %c0_0 = arith.constant 0 : index
    %0 = vector.load %arg1[%c0, %c0_0] : memref<976x48xbf16, #tpu.memory_space<vmem>>, vector<976x48xbf16>
    %c0_1 = arith.constant 0 : index
    %c0_2 = arith.constant 0 : index
    %1 = vector.load %arg2[%c0_1, %c0_2] : memref<48x32xbf16, #tpu.memory_space<vmem>>, vector<48x32xbf16>
    %cst = arith.constant dense<0.000000e+00> : vector<976x32xf32>
    %2 = tpu.matmul %0, %1, %cst {dimension_numbers = #tpu.dot_dimension_numbers<[1], [0], [0], [1], [0, 0, 1, 1], [], []>} : vector<976x48xbf16>, vector<48x32xbf16>, vector<976x32xf32> -> vector<976x32xf32>
    %c0_3 = arith.constant 0 : index
    %c0_4 = arith.constant 0 : index
    %3 = vector.load %arg3[%c0_3, %c0_4] : memref<1x32xf32, #tpu.memory_space<vmem>>, vector<1x32xf32>
    %4 = vector.broadcast %3 : vector<1x32xf32> to vector<976x32xf32>
    %5 = arith.addf %2, %4 : vector<976x32xf32>
    %cst_5 = arith.constant 0.000000e+00 : f32
    %6 = vector.broadcast %cst_5 : f32 to vector<976x32xf32>
    %7 = arith.maximumf %5, %6 : vector<976x32xf32>
    %8 = arith.truncf %7 : vector<976x32xf32> to vector<976x32xbf16>
    %c0_6 = arith.constant 0 : index
    %c0_7 = arith.constant 0 : index
    %9 = vector.load %arg4[%c0_6, %c0_7] : memref<976x32xbf16, #tpu.memory_space<vmem>>, vector<976x32xbf16>
    tpu.vector_store %arg4[%c0_6, %c0_7], %8 {strides = array<i32>} : memref<976x32xbf16, #tpu.memory_space<vmem>>, vector<976x32xbf16>,
    return
  }
  func.func @transform_0(%arg0: i32) -> (i32, i32) {
    %c0_i32 = arith.constant 0 : i32
    %c0_i32_0 = arith.constant 0 : i32
    return %arg0, %c0_i32 : i32, i32
  }
  func.func @transform_1(%arg0: i32) -> (i32, i32) {
    %c0_i32 = arith.constant 0 : i32
    %c0_i32_0 = arith.constant 0 : i32
    %c0_i32_1 = arith.constant 0 : i32
    return %c0_i32, %c0_i32_0 : i32, i32
  }
  func.func @transform_2(%arg0: i32) -> (i32, i32) {
    %c0_i32 = arith.constant 0 : i32
    %c0_i32_0 = arith.constant 0 : i32
    %c0_i32_1 = arith.constant 0 : i32
    return %c0_i32, %c0_i32_0 : i32, i32
  }
  func.func @transform_3(%arg0: i32) -> (i32, i32) {
    %c0_i32 = arith.constant 0 : i32
    %c0_i32_0 = arith.constant 0 : i32
    return %arg0, %c0_i32 : i32, i32
  }
}

module attributes {stable_mosaic.version = 11 : i64} {
  func.func @_mm_kernel(%arg0: i32, %arg1: memref<208x512xbf16, #tpu.memory_space<vmem>>, %arg2: memref<512x32xbf16, #tpu.memory_space<vmem>>, %arg3: memref<1x32xf32, #tpu.memory_space<vmem>>, %arg4: memref<208x32xbf16, #tpu.memory_space<vmem>>) attributes {dimension_semantics = [#tpu.dimension_semantics<parallel>], iteration_bounds = array<i64: 2>, scalar_prefetch = 0 : i64, scratch_operands = 0 : i64, tpu.core_type = #tpu.core_type<tc>, window_params = [{transform_indices = @transform_0, window_bounds = array<i64: 208, 512>}, {pipeline_mode = #tpu.pipeline_mode<synchronous>, transform_indices = @transform_1, window_bounds = array<i64: 512, 32>}, {pipeline_mode = #tpu.pipeline_mode<synchronous>, transform_indices = @transform_2, window_bounds = array<i64: 1, 32>}, {transform_indices = @transform_3, window_bounds = array<i64: 208, 32>}]} {
    %c0 = arith.constant 0 : index
    %c0_0 = arith.constant 0 : index
    %0 = vector.load %arg1[%c0, %c0_0] : memref<208x512xbf16, #tpu.memory_space<vmem>>, vector<208x512xbf16>
    %c0_1 = arith.constant 0 : index
    %c0_2 = arith.constant 0 : index
    %1 = vector.load %arg2[%c0_1, %c0_2] : memref<512x32xbf16, #tpu.memory_space<vmem>>, vector<512x32xbf16>
    %cst = arith.constant dense<0.000000e+00> : vector<208x32xf32>
    %2 = tpu.matmul %0, %1, %cst {dimension_numbers = #tpu.dot_dimension_numbers<[1], [0], [0], [1], [0, 0, 1, 1], [], []>} : vector<208x512xbf16>, vector<512x32xbf16>, vector<208x32xf32> -> vector<208x32xf32>
    %c0_3 = arith.constant 0 : index
    %c0_4 = arith.constant 0 : index
    %3 = vector.load %arg3[%c0_3, %c0_4] : memref<1x32xf32, #tpu.memory_space<vmem>>, vector<1x32xf32>
    %4 = vector.broadcast %3 : vector<1x32xf32> to vector<208x32xf32>
    %5 = arith.addf %2, %4 : vector<208x32xf32>
    %cst_5 = arith.constant 0.000000e+00 : f32
    %6 = vector.broadcast %cst_5 : f32 to vector<208x32xf32>
    %7 = arith.maximumf %5, %6 : vector<208x32xf32>
    %8 = arith.truncf %7 : vector<208x32xf32> to vector<208x32xbf16>
    %c0_6 = arith.constant 0 : index
    %c0_7 = arith.constant 0 : index
    %9 = vector.load %arg4[%c0_6, %c0_7] : memref<208x32xbf16, #tpu.memory_space<vmem>>, vector<208x32xbf16>
    tpu.vector_store %arg4[%c0_6, %c0_7], %8 {strides = array<i32>} : memref<208x32xbf16, #tpu.memory_space<vmem>>, vector<208x32xbf16>,
    return
  }
  func.func @transform_0(%arg0: i32) -> (i32, i32) {
    %c0_i32 = arith.constant 0 : i32
    %c0_i32_0 = arith.constant 0 : i32
    return %arg0, %c0_i32 : i32, i32
  }
  func.func @transform_1(%arg0: i32) -> (i32, i32) {
    %c0_i32 = arith.constant 0 : i32
    %c0_i32_0 = arith.constant 0 : i32
    %c0_i32_1 = arith.constant 0 : i32
    return %c0_i32, %c0_i32_0 : i32, i32
  }
  func.func @transform_2(%arg0: i32) -> (i32, i32) {
    %c0_i32 = arith.constant 0 : i32
    %c0_i32_0 = arith.constant 0 : i32
    %c0_i32_1 = arith.constant 0 : i32
    return %c0_i32, %c0_i32_0 : i32, i32
  }
  func.func @transform_3(%arg0: i32) -> (i32, i32) {
    %c0_i32 = arith.constant 0 : i32
    %c0_i32_0 = arith.constant 0 : i32
    return %arg0, %c0_i32 : i32, i32
  }
}

module attributes {stable_mosaic.version = 11 : i64} {
  func.func @_mm_kernel(%arg0: i32, %arg1: memref<98x128xbf16, #tpu.memory_space<vmem>>, %arg2: memref<128x64xbf16, #tpu.memory_space<vmem>>, %arg3: memref<1x64xf32, #tpu.memory_space<vmem>>, %arg4: memref<98x64xbf16, #tpu.memory_space<vmem>>) attributes {dimension_semantics = [#tpu.dimension_semantics<parallel>], iteration_bounds = array<i64: 1>, scalar_prefetch = 0 : i64, scratch_operands = 0 : i64, tpu.core_type = #tpu.core_type<tc>, window_params = [{transform_indices = @transform_0, window_bounds = array<i64: 98, 128>}, {pipeline_mode = #tpu.pipeline_mode<synchronous>, transform_indices = @transform_1, window_bounds = array<i64: 128, 64>}, {pipeline_mode = #tpu.pipeline_mode<synchronous>, transform_indices = @transform_2, window_bounds = array<i64: 1, 64>}, {transform_indices = @transform_3, window_bounds = array<i64: 98, 64>}]} {
    %c0 = arith.constant 0 : index
    %c0_0 = arith.constant 0 : index
    %0 = vector.load %arg1[%c0, %c0_0] : memref<98x128xbf16, #tpu.memory_space<vmem>>, vector<98x128xbf16>
    %c0_1 = arith.constant 0 : index
    %c0_2 = arith.constant 0 : index
    %1 = vector.load %arg2[%c0_1, %c0_2] : memref<128x64xbf16, #tpu.memory_space<vmem>>, vector<128x64xbf16>
    %cst = arith.constant dense<0.000000e+00> : vector<98x64xf32>
    %2 = tpu.matmul %0, %1, %cst {dimension_numbers = #tpu.dot_dimension_numbers<[1], [0], [0], [1], [0, 0, 1, 1], [], []>} : vector<98x128xbf16>, vector<128x64xbf16>, vector<98x64xf32> -> vector<98x64xf32>
    %c0_3 = arith.constant 0 : index
    %c0_4 = arith.constant 0 : index
    %3 = vector.load %arg3[%c0_3, %c0_4] : memref<1x64xf32, #tpu.memory_space<vmem>>, vector<1x64xf32>
    %4 = vector.broadcast %3 : vector<1x64xf32> to vector<98x64xf32>
    %5 = arith.addf %2, %4 : vector<98x64xf32>
    %cst_5 = arith.constant 0.000000e+00 : f32
    %6 = vector.broadcast %cst_5 : f32 to vector<98x64xf32>
    %7 = arith.maximumf %5, %6 : vector<98x64xf32>
    %8 = arith.truncf %7 : vector<98x64xf32> to vector<98x64xbf16>
    %c0_6 = arith.constant 0 : index
    %c0_7 = arith.constant 0 : index
    %9 = vector.load %arg4[%c0_6, %c0_7] : memref<98x64xbf16, #tpu.memory_space<vmem>>, vector<98x64xbf16>
    tpu.vector_store %arg4[%c0_6, %c0_7], %8 {strides = array<i32>} : memref<98x64xbf16, #tpu.memory_space<vmem>>, vector<98x64xbf16>,
    return
  }
  func.func @transform_0(%arg0: i32) -> (i32, i32) {
    %c0_i32 = arith.constant 0 : i32
    %c0_i32_0 = arith.constant 0 : i32
    return %arg0, %c0_i32 : i32, i32
  }
  func.func @transform_1(%arg0: i32) -> (i32, i32) {
    %c0_i32 = arith.constant 0 : i32
    %c0_i32_0 = arith.constant 0 : i32
    %c0_i32_1 = arith.constant 0 : i32
    return %c0_i32, %c0_i32_0 : i32, i32
  }
  func.func @transform_2(%arg0: i32) -> (i32, i32) {
    %c0_i32 = arith.constant 0 : i32
    %c0_i32_0 = arith.constant 0 : i32
    %c0_i32_1 = arith.constant 0 : i32
    return %c0_i32, %c0_i32_0 : i32, i32
  }
  func.func @transform_3(%arg0: i32) -> (i32, i32) {
    %c0_i32 = arith.constant 0 : i32
    %c0_i32_0 = arith.constant 0 : i32
    return %arg0, %c0_i32 : i32, i32
  }
}

module attributes {stable_mosaic.version = 11 : i64} {
  func.func @_mm_kernel(%arg0: i32, %arg1: memref<18x256xbf16, #tpu.memory_space<vmem>>, %arg2: memref<256x64xbf16, #tpu.memory_space<vmem>>, %arg3: memref<1x64xf32, #tpu.memory_space<vmem>>, %arg4: memref<18x64xbf16, #tpu.memory_space<vmem>>) attributes {dimension_semantics = [#tpu.dimension_semantics<parallel>], iteration_bounds = array<i64: 1>, scalar_prefetch = 0 : i64, scratch_operands = 0 : i64, tpu.core_type = #tpu.core_type<tc>, window_params = [{transform_indices = @transform_0, window_bounds = array<i64: 18, 256>}, {pipeline_mode = #tpu.pipeline_mode<synchronous>, transform_indices = @transform_1, window_bounds = array<i64: 256, 64>}, {pipeline_mode = #tpu.pipeline_mode<synchronous>, transform_indices = @transform_2, window_bounds = array<i64: 1, 64>}, {transform_indices = @transform_3, window_bounds = array<i64: 18, 64>}]} {
    %c0 = arith.constant 0 : index
    %c0_0 = arith.constant 0 : index
    %0 = vector.load %arg1[%c0, %c0_0] : memref<18x256xbf16, #tpu.memory_space<vmem>>, vector<18x256xbf16>
    %c0_1 = arith.constant 0 : index
    %c0_2 = arith.constant 0 : index
    %1 = vector.load %arg2[%c0_1, %c0_2] : memref<256x64xbf16, #tpu.memory_space<vmem>>, vector<256x64xbf16>
    %cst = arith.constant dense<0.000000e+00> : vector<18x64xf32>
    %2 = tpu.matmul %0, %1, %cst {dimension_numbers = #tpu.dot_dimension_numbers<[1], [0], [0], [1], [0, 0, 1, 1], [], []>} : vector<18x256xbf16>, vector<256x64xbf16>, vector<18x64xf32> -> vector<18x64xf32>
    %c0_3 = arith.constant 0 : index
    %c0_4 = arith.constant 0 : index
    %3 = vector.load %arg3[%c0_3, %c0_4] : memref<1x64xf32, #tpu.memory_space<vmem>>, vector<1x64xf32>
    %4 = vector.broadcast %3 : vector<1x64xf32> to vector<18x64xf32>
    %5 = arith.addf %2, %4 : vector<18x64xf32>
    %cst_5 = arith.constant 0.000000e+00 : f32
    %6 = vector.broadcast %cst_5 : f32 to vector<18x64xf32>
    %7 = arith.maximumf %5, %6 : vector<18x64xf32>
    %8 = arith.truncf %7 : vector<18x64xf32> to vector<18x64xbf16>
    %c0_6 = arith.constant 0 : index
    %c0_7 = arith.constant 0 : index
    %9 = vector.load %arg4[%c0_6, %c0_7] : memref<18x64xbf16, #tpu.memory_space<vmem>>, vector<18x64xbf16>
    tpu.vector_store %arg4[%c0_6, %c0_7], %8 {strides = array<i32>} : memref<18x64xbf16, #tpu.memory_space<vmem>>, vector<18x64xbf16>,
    return
  }
  func.func @transform_0(%arg0: i32) -> (i32, i32) {
    %c0_i32 = arith.constant 0 : i32
    %c0_i32_0 = arith.constant 0 : i32
    return %arg0, %c0_i32 : i32, i32
  }
  func.func @transform_1(%arg0: i32) -> (i32, i32) {
    %c0_i32 = arith.constant 0 : i32
    %c0_i32_0 = arith.constant 0 : i32
    %c0_i32_1 = arith.constant 0 : i32
    return %c0_i32, %c0_i32_0 : i32, i32
  }
  func.func @transform_2(%arg0: i32) -> (i32, i32) {
    %c0_i32 = arith.constant 0 : i32
    %c0_i32_0 = arith.constant 0 : i32
    %c0_i32_1 = arith.constant 0 : i32
    return %c0_i32, %c0_i32_0 : i32, i32
  }
  func.func @transform_3(%arg0: i32) -> (i32, i32) {
    %c0_i32 = arith.constant 0 : i32
    %c0_i32_0 = arith.constant 0 : i32
    return %arg0, %c0_i32 : i32, i32
  }
}

module attributes {stable_mosaic.version = 11 : i64} {
  func.func @_tail_kernel(%arg0: i32, %arg1: memref<2x576xbf16, #tpu.memory_space<vmem>>, %arg2: memref<576x256xbf16, #tpu.memory_space<vmem>>, %arg3: memref<1x256xf32, #tpu.memory_space<vmem>>, %arg4: memref<256x64xbf16, #tpu.memory_space<vmem>>, %arg5: memref<1x64xf32, #tpu.memory_space<vmem>>, %arg6: memref<2x64xf32, #tpu.memory_space<vmem>>) attributes {dimension_semantics = [#tpu.dimension_semantics<arbitrary>], iteration_bounds = array<i64: 1>, scalar_prefetch = 0 : i64, scratch_operands = 0 : i64, tpu.core_type = #tpu.core_type<tc>, window_params = [{pipeline_mode = #tpu.pipeline_mode<synchronous>, transform_indices = @transform_0, window_bounds = array<i64: 2, 576>}, {pipeline_mode = #tpu.pipeline_mode<synchronous>, transform_indices = @transform_1, window_bounds = array<i64: 576, 256>}, {pipeline_mode = #tpu.pipeline_mode<synchronous>, transform_indices = @transform_2, window_bounds = array<i64: 1, 256>}, {pipeline_mode = #tpu.pipeline_mode<synchronous>, transform_indices = @transform_3, window_bounds = array<i64: 256, 64>}, {pipeline_mode = #tpu.pipeline_mode<synchronous>, transform_indices = @transform_4, window_bounds = array<i64: 1, 64>}, {pipeline_mode = #tpu.pipeline_mode<synchronous>, transform_indices = @transform_5, window_bounds = array<i64: 2, 64>}]} {
    %c0 = arith.constant 0 : index
    %c0_0 = arith.constant 0 : index
    %0 = vector.load %arg1[%c0, %c0_0] : memref<2x576xbf16, #tpu.memory_space<vmem>>, vector<2x576xbf16>
    %c0_1 = arith.constant 0 : index
    %c0_2 = arith.constant 0 : index
    %1 = vector.load %arg2[%c0_1, %c0_2] : memref<576x256xbf16, #tpu.memory_space<vmem>>, vector<576x256xbf16>
    %cst = arith.constant dense<0.000000e+00> : vector<2x256xf32>
    %2 = tpu.matmul %0, %1, %cst {dimension_numbers = #tpu.dot_dimension_numbers<[1], [0], [0], [1], [0, 0, 1, 1], [], []>} : vector<2x576xbf16>, vector<576x256xbf16>, vector<2x256xf32> -> vector<2x256xf32>
    %c0_3 = arith.constant 0 : index
    %c0_4 = arith.constant 0 : index
    %3 = vector.load %arg3[%c0_3, %c0_4] : memref<1x256xf32, #tpu.memory_space<vmem>>, vector<1x256xf32>
    %4 = vector.broadcast %3 : vector<1x256xf32> to vector<2x256xf32>
    %5 = arith.addf %2, %4 : vector<2x256xf32>
    %6 = arith.truncf %5 : vector<2x256xf32> to vector<2x256xbf16>
    %c0_5 = arith.constant 0 : index
    %c0_6 = arith.constant 0 : index
    %7 = vector.load %arg4[%c0_5, %c0_6] : memref<256x64xbf16, #tpu.memory_space<vmem>>, vector<256x64xbf16>
    %cst_7 = arith.constant dense<0.000000e+00> : vector<2x64xf32>
    %8 = tpu.matmul %6, %7, %cst_7 {dimension_numbers = #tpu.dot_dimension_numbers<[1], [0], [0], [1], [0, 0, 1, 1], [], []>} : vector<2x256xbf16>, vector<256x64xbf16>, vector<2x64xf32> -> vector<2x64xf32>
    %c0_8 = arith.constant 0 : index
    %c0_9 = arith.constant 0 : index
    %9 = vector.load %arg5[%c0_8, %c0_9] : memref<1x64xf32, #tpu.memory_space<vmem>>, vector<1x64xf32>
    %10 = vector.broadcast %9 : vector<1x64xf32> to vector<2x64xf32>
    %11 = arith.addf %8, %10 : vector<2x64xf32>
    %c0_10 = arith.constant 0 : index
    %c0_11 = arith.constant 0 : index
    %12 = vector.load %arg6[%c0_10, %c0_11] : memref<2x64xf32, #tpu.memory_space<vmem>>, vector<2x64xf32>
    tpu.vector_store %arg6[%c0_10, %c0_11], %11 {strides = array<i32>} : memref<2x64xf32, #tpu.memory_space<vmem>>, vector<2x64xf32>,
    return
  }
  func.func @transform_0(%arg0: i32) -> (i32, i32) {
    %c0_i32 = arith.constant 0 : i32
    %c0_i32_0 = arith.constant 0 : i32
    %c0_i32_1 = arith.constant 0 : i32
    return %c0_i32, %c0_i32_0 : i32, i32
  }
  func.func @transform_1(%arg0: i32) -> (i32, i32) {
    %c0_i32 = arith.constant 0 : i32
    %c0_i32_0 = arith.constant 0 : i32
    %c0_i32_1 = arith.constant 0 : i32
    return %c0_i32, %c0_i32_0 : i32, i32
  }
  func.func @transform_2(%arg0: i32) -> (i32, i32) {
    %c0_i32 = arith.constant 0 : i32
    %c0_i32_0 = arith.constant 0 : i32
    %c0_i32_1 = arith.constant 0 : i32
    return %c0_i32, %c0_i32_0 : i32, i32
  }
  func.func @transform_3(%arg0: i32) -> (i32, i32) {
    %c0_i32 = arith.constant 0 : i32
    %c0_i32_0 = arith.constant 0 : i32
    %c0_i32_1 = arith.constant 0 : i32
    return %c0_i32, %c0_i32_0 : i32, i32
  }
  func.func @transform_4(%arg0: i32) -> (i32, i32) {
    %c0_i32 = arith.constant 0 : i32
    %c0_i32_0 = arith.constant 0 : i32
    %c0_i32_1 = arith.constant 0 : i32
    return %c0_i32, %c0_i32_0 : i32, i32
  }
  func.func @transform_5(%arg0: i32) -> (i32, i32) {
    %c0_i32 = arith.constant 0 : i32
    %c0_i32_0 = arith.constant 0 : i32
    %c0_i32_1 = arith.constant 0 : i32
    return %c0_i32, %c0_i32_0 : i32, i32
  }
}

</mosaic_0001>

<llo_original>
// kernel: encoder_forward.5
$region0: #{encoder_forward.5}
  #allocation0 [shape = 'u32[]', space=smem, size = 0x4, offset = 0x4, fixed_abs, tag = 'smem constant byte address 0x4 - core index']
  #allocation1 [shape = 'u32[72,128]{1,0:T(1,128)}', space=vmem, size = 0x9000, scoped, tag = 'internal scratch']
  %s0 = inlined_call_operand.vmem [shape: bf16[1922,48], index: 0, kind: input, shape index: {}]
  %s1 = inlined_call_operand.vmem [shape: bf16[48,32], index: 1, kind: input, shape index: {}]
  %s2 = inlined_call_operand.vmem [shape: f32[1,32], index: 2, kind: input, shape index: {}]
  %s3 = inlined_call_operand.vmem [shape: bf16[1922,32], index: 3, kind: output, shape index: {}]
  %s4 = sld [smem:[#allocation0]]
  $region89: #{encoder_forward.5} parent=0
    _
  %s6 = ssub.s32 1, %s4
  %s7 = scalar_select 0, %s6, %s4
  $region1: #{encoder_forward.5} parent=0
    #allocation2 [shape = 'u8[499712]{0}', space=vmem, size = 0x7a000, scoped, tag = 'output window, operand 0']
    loop: start=0, step=1, limit=4
    $region2: #{encoder_forward.5} parent=1 // loop_pre_header
      _
    $region3: #{encoder_forward.5} parent=1 // loop_header
      %s9 = sphi 0, %s13
      %p10 = scmp.ge.s32.totalorder %s9, 4
      %s19 = sphi 0, %s21
      %s22 = sphi 0, %s19
      %s23 = sphi 0, %s22
      %s39 = sphi 0, %s23
      %s43 = sphi 0, %s43
      %s45 = sphi 0, %s43
      %s46 = sphi 0, %s45
      %s60 = sphi 0, %s46
      %s64 = sphi 0, %s64
      %s66 = sphi 0, %s64
      %s67 = sphi 0, %s66
      %s81 = sphi 0, %s67
      %s87 = sphi 0, %s89
      %s90 = sphi 0, %s87
      %s91 = sphi 0, %s90
      %s107 = sphi 0, %s91
    $region4: #{encoder_forward.5} parent=1 // loop_header_branch
      %12 = sbr.rel (%p10) target = $region8
    $region5: #{encoder_forward.5} parent=1 // loop_body
      %s14 = ssub.s32 %s9, 1
      %s15 = ssub.s32 %s9, 2
      %s16 = sadd.s32 %s9, 1
      %s17 = ssub.s32 %s9, %s16
      %p18 = scmp.eq.s32.totalorder %s17, 0
      %s20 = sadd.s32 %s19, 1
      %s21 = scalar_select %p18, %s19, %s20
      %p24 = pneg %p18
      %p25 = scmp.eq.s32.totalorder %s9, 1
      %p26 = por %p24, %p25
      %p27 = scmp.ne.s32.totalorder %s19, %s22
      %p28 = scmp.eq.s32.totalorder %s9, 0
      %p29 = por %p27, %p28
      %p30 = scmp.ne.s32.totalorder %s19, %s22
      %p31 = scmp.eq.s32.totalorder %s14, 1
      %p32 = por %p30, %p31
      %p33 = scmp.ne.s32.totalorder %s22, %s23
      %p34 = scmp.eq.s32.totalorder %s14, 0
      %p35 = por %p33, %p34
      %p36 = scmp.ne.s32.totalorder %s22, %s23
      %p37 = scmp.eq.s32.totalorder %s15, 1
      %p38 = por %p36, %p37
      %p40 = scmp.ne.s32.totalorder %s23, %s39
      %p41 = scmp.eq.s32.totalorder %s15, 0
      %p42 = por %p40, %p41
      %s44 = sadd.s32 %s43, 1
      %p47 = scmp.eq.s32.totalorder %s9, 1
      %p48 = scmp.ne.s32.totalorder %s43, %s45
      %p49 = scmp.eq.s32.totalorder %s9, 0
      %p50 = por %p48, %p49
      %p51 = scmp.ne.s32.totalorder %s43, %s45
      %p52 = scmp.eq.s32.totalorder %s14, 1
      %p53 = por %p51, %p52
      %p54 = scmp.ne.s32.totalorder %s45, %s46
      %p55 = scmp.eq.s32.totalorder %s14, 0
      %p56 = por %p54, %p55
      %p57 = scmp.ne.s32.totalorder %s45, %s46
      %p58 = scmp.eq.s32.totalorder %s15, 1
      %p59 = por %p57, %p58
      %p61 = scmp.ne.s32.totalorder %s46, %s60
      %p62 = scmp.eq.s32.totalorder %s15, 0
      %p63 = por %p61, %p62
      %s65 = sadd.s32 %s64, 1
      %p68 = scmp.eq.s32.totalorder %s9, 1
      %p69 = scmp.ne.s32.totalorder %s64, %s66
      %p70 = scmp.eq.s32.totalorder %s9, 0
      %p71 = por %p69, %p70
      %p72 = scmp.ne.s32.totalorder %s64, %s66
      %p73 = scmp.eq.s32.totalorder %s14, 1
      %p74 = por %p72, %p73
      %p75 = scmp.ne.s32.totalorder %s66, %s67
      %p76 = scmp.eq.s32.totalorder %s14, 0
      %p77 = por %p75, %p76
      %p78 = scmp.ne.s32.totalorder %s66, %s67
      %p79 = scmp.eq.s32.totalorder %s15, 1
      %p80 = por %p78, %p79
      %p82 = scmp.ne.s32.totalorder %s67, %s81
      %p83 = scmp.eq.s32.totalorder %s15, 0
      %p84 = por %p82, %p83
      %s85 = ssub.s32 %s9, %s16
      %p86 = scmp.eq.s32.totalorder %s85, 0
      %s88 = sadd.s32 %s87, 1
      %s89 = scalar_select %p86, %s87, %s88
      %p92 = pneg %p86
      %p93 = scmp.eq.s32.totalorder %s9, 1
      %p94 = por %p92, %p93
      %p95 = scmp.ne.s32.totalorder %s87, %s90
      %p96 = scmp.eq.s32.totalorder %s9, 0
      %p97 = por %p95, %p96
      %p98 = scmp.ne.s32.totalorder %s87, %s90
      %p99 = scmp.eq.s32.totalorder %s14, 1
      %p100 = por %p98, %p99
      %p101 = scmp.ne.s32.totalorder %s90, %s91
      %p102 = scmp.eq.s32.totalorder %s14, 0
      %p103 = por %p101, %p102
      %p104 = scmp.ne.s32.totalorder %s90, %s91
      %p105 = scmp.eq.s32.totalorder %s15, 1
      %p106 = por %p104, %p105
      %p108 = scmp.ne.s32.totalorder %s91, %s107
      %p109 = scmp.eq.s32.totalorder %s15, 0
      %p110 = por %p108, %p109
      %p111 = scmp.le.s32.totalorder 1, %s9
      %p112 = scmp.lt.s32.totalorder %s9, 3
      %p113 = pnand %p111, %p112
      %p114 = pneg %p113
      // Predicated region
      $region9: #{encoder_forward.5} parent=5 // pred_check
        _
      $region10: #{encoder_forward.5} parent=5 // pred_check_branch
        %116 = sbr.rel (%p113) target = $region12
      $region11: #{encoder_forward.5} parent=5 // pred_region
        %s117 = ssub.s32 %s9, 1
        // Predicated region
        $region13: #{encoder_forward.5} parent=11 // pred_check
          %p118 = pneg %p56
        $region14: #{encoder_forward.5} parent=11 // pred_check_branch
          %120 = sbr.rel (%p118) target = $region16
        $region15: #{encoder_forward.5} parent=11 // pred_region
          _
        $region16: #{encoder_forward.5} parent=11 // pred_fallthru
          _
        // Predicated region
        $region17: #{encoder_forward.5} parent=11 // pred_check
          %p121 = pneg %p77
        $region18: #{encoder_forward.5} parent=11 // pred_check_branch
          %123 = sbr.rel (%p121) target = $region20
        $region19: #{encoder_forward.5} parent=11 // pred_region
          _
        $region20: #{encoder_forward.5} parent=11 // pred_fallthru
          _
      $region12: #{encoder_forward.5} parent=5 // pred_fallthru
        _
      %p124 = scmp.lt.s32.totalorder %s9, 2
      // Predicated region
      $region21: #{encoder_forward.5} parent=5 // pred_check
        %p125 = pneg %p124
      $region22: #{encoder_forward.5} parent=5 // pred_check_branch
        %127 = sbr.rel (%p125) target = $region24
      $region23: #{encoder_forward.5} parent=5 // pred_region
        // Predicated region
        $region25: #{encoder_forward.5} parent=23 // pred_check
          %p128 = pneg %p29
        $region26: #{encoder_forward.5} parent=23 // pred_check_branch
          %130 = sbr.rel (%p128) target = $region28
        $region27: #{encoder_forward.5} parent=23 // pred_region
          %s131 = smul.u32 122, %s9
          %s132 = ssub.s32 241, %s131
          %p133 = scmp.lt.s32.totalorder %s132, 122
          %s134 = scalar_select %p133, %s132, 122
          %s135 = smul.u32 4, %s134
          %p136 = scmp.lt.s32.totalorder %s131, 240
          %s137 = scalar_select %p136, %s131, 240
          %s138 = smul.addr %s137, 4
          %s139 = scalar_lea.vmem %s0, %s138
          %s140 = smul.u32 122, %s9
          %s141 = ssub.s32 241, %s140
          %p142 = scmp.lt.s32.totalorder %s141, 122
          %s143 = scalar_select %p142, %s141, 122
          %s144 = smul.u32 4, %s143
        $region28: #{encoder_forward.5} parent=23 // pred_fallthru
          _
      $region24: #{encoder_forward.5} parent=5 // pred_fallthru
        _
      %p145 = scmp.le.s32.totalorder 1, %s9
      %p146 = scmp.lt.s32.totalorder %s9, 3
      %p147 = pnand %p145, %p146
      %p148 = pneg %p147
      // Predicated region
      $region29: #{encoder_forward.5} parent=5 // pred_check
        _
      $region30: #{encoder_forward.5} parent=5 // pred_check_branch
        %150 = sbr.rel (%p147) target = $region32
      $region31: #{encoder_forward.5} parent=5 // pred_region
        %s151 = ssub.s32 %s9, 1
        %s152 = smul.u32 122, %s14
        %s153 = ssub.s32 241, %s152
        %p154 = scmp.lt.s32.totalorder %s153, 122
        %s155 = scalar_select %p154, %s153, 122
        %s156 = smul.u32 4, %s155
        %p157 = scmp.lt.s32.totalorder %s152, 240
        %s158 = scalar_select %p157, %s152, 240
        %s159 = smul.addr %s158, 4
        %s160 = scalar_lea.vmem %s0, %s159
        %p161 = pneg %p35
        %p162 = pneg %p32
        %p163 = pneg %p56
        %p164 = pneg %p53
        %p165 = pneg %p77
        %p166 = pneg %p74
        %p167 = pneg %p103
        %p168 = pneg %p100
        %s169 = sand.u32 %s90, 1
        %s170 = sand.u32 %s90, 1
        %s171 = smul.addr %s170, 488
        %s172 = scalar_lea.vmem [#allocation2], %s171
        %s173 = smul.u32 122, %s14
        %s174 = ssub.s32 241, %s173
        %p175 = scmp.lt.s32.totalorder %s174, 122
        %s176 = scalar_select %p175, %s174, 122
        %s177 = smul.u32 4, %s176
        %p178 = scmp.lt.s32.totalorder %s173, 240
        %s179 = scalar_select %p178, %s173, 240
        %s180 = smul.addr %s179, 4
        %s181 = scalar_lea.vmem %s0, %s180
        %s182 = smul.u32 122, %s14
        %s183 = ssub.s32 241, %s182
        %p184 = scmp.lt.s32.totalorder %s183, 122
        %s185 = scalar_select %p184, %s183, 122
        %s186 = smul.u32 4, %s185
        %s187 = smul.u32 122, %s14
        %s188 = ssub.s32 241, %s187
        %p189 = scmp.lt.s32.totalorder %s188, 122
        %s190 = scalar_select %p189, %s188, 122
        %s191 = smul.u32 4, %s190
        %v193 = vld [vmem:[%s181] sm:$0xf]
        %v194 = vld [vmem:[%s181 + $0x4] sm:$0xf]
        %v195 = vld [vmem:[%s181 + $0x8] sm:$0xf]
        %v196 = vld [vmem:[%s181 + $0xc] sm:$0xf]
        %v197 = vld [vmem:[%s181 + $0x10] sm:$0xf]
        %v198 = vld [vmem:[%s181 + $0x14] sm:$0xf]
        %v199 = vld [vmem:[%s181 + $0x18] sm:$0xf]
        %v200 = vld [vmem:[%s181 + $0x1c] sm:$0xf]
        %v201 = vld [vmem:[%s181 + $0x20] sm:$0xf]
        %v202 = vld [vmem:[%s181 + $0x24] sm:$0xf]
        %v203 = vld [vmem:[%s181 + $0x28] sm:$0xf]
        %v204 = vld [vmem:[%s181 + $0x2c] sm:$0xf]
        %v205 = vld [vmem:[%s181 + $0x30] sm:$0xf]
        %v206 = vld [vmem:[%s181 + $0x34] sm:$0xf]
        %v207 = vld [vmem:[%s181 + $0x38] sm:$0xf]
        %v208 = vld [vmem:[%s181 + $0x3c] sm:$0xf]
        %v209 = vld [vmem:[%s181 + $0x40] sm:$0xf]
        %v210 = vld [vmem:[%s181 + $0x44] sm:$0xf]
        %v211 = vld [vmem:[%s181 + $0x48] sm:$0xf]
        %v212 = vld [vmem:[%s181 + $0x4c] sm:$0xf]
        %v213 = vld [vmem:[%s181 + $0x50] sm:$0xf]
        %v214 = vld [vmem:[%s181 + $0x54] sm:$0xf]
        %v215 = vld [vmem:[%s181 + $0x58] sm:$0xf]
        %v216 = vld [vmem:[%s181 + $0x5c] sm:$0xf]
        %v217 = vld [vmem:[%s181 + $0x60] sm:$0xf]
        %v218 = vld [vmem:[%s181 + $0x64] sm:$0xf]
        %v219 = vld [vmem:[%s181 + $0x68] sm:$0xf]
        %v220 = vld [vmem:[%s181 + $0x6c] sm:$0xf]
        %v221 = vld [vmem:[%s181 + $0x70] sm:$0xf]
        %v222 = vld [vmem:[%s181 + $0x74] sm:$0xf]
        %v223 = vld [vmem:[%s181 + $0x78] sm:$0xf]
        %v224 = vld [vmem:[%s181 + $0x7c] sm:$0xf]
        %v225 = vld [vmem:[%s181 + $0x80] sm:$0xf]
        %v226 = vld [vmem:[%s181 + $0x84] sm:$0xf]
        %v227 = vld [vmem:[%s181 + $0x88] sm:$0xf]
        %v228 = vld [vmem:[%s181 + $0x8c] sm:$0xf]
        %v229 = vld [vmem:[%s181 + $0x90] sm:$0xf]
        %v230 = vld [vmem:[%s181 + $0x94] sm:$0xf]
        %v231 = vld [vmem:[%s181 + $0x98] sm:$0xf]
        %v232 = vld [vmem:[%s181 + $0x9c] sm:$0xf]
        %v233 = vld [vmem:[%s181 + $0xa0] sm:$0xf]
        %v234 = vld [vmem:[%s181 + $0xa4] sm:$0xf]
        %v235 = vld [vmem:[%s181 + $0xa8] sm:$0xf]
        %v236 = vld [vmem:[%s181 + $0xac] sm:$0xf]
        %v237 = vld [vmem:[%s181 + $0xb0] sm:$0xf]
        %v238 = vld [vmem:[%s181 + $0xb4] sm:$0xf]
        %v239 = vld [vmem:[%s181 + $0xb8] sm:$0xf]
        %v240 = vld [vmem:[%s181 + $0xbc] sm:$0xf]
        %v241 = vld [vmem:[%s181 + $0xc0] sm:$0xf]
        %v242 = vld [vmem:[%s181 + $0xc4] sm:$0xf]
        %v243 = vld [vmem:[%s181 + $0xc8] sm:$0xf]
        %v244 = vld [vmem:[%s181 + $0xcc] sm:$0xf]
        %v245 = vld [vmem:[%s181 + $0xd0] sm:$0xf]
        %v246 = vld [vmem:[%s181 + $0xd4] sm:$0xf]
        %v247 = vld [vmem:[%s181 + $0xd8] sm:$0xf]
        %v248 = vld [vmem:[%s181 + $0xdc] sm:$0xf]
        %v249 = vld [vmem:[%s181 + $0xe0] sm:$0xf]
        %v250 = vld [vmem:[%s181 + $0xe4] sm:$0xf]
        %v251 = vld [vmem:[%s181 + $0xe8] sm:$0xf]
        %v252 = vld [vmem:[%s181 + $0xec] sm:$0xf]
        %v253 = vld [vmem:[%s181 + $0xf0] sm:$0xf]
        %v254 = vld [vmem:[%s181 + $0xf4] sm:$0xf]
        %v255 = vld [vmem:[%s181 + $0xf8] sm:$0xf]
        %v256 = vld [vmem:[%s181 + $0xfc] sm:$0xf]
        %v257 = vld [vmem:[%s181 + $0x100] sm:$0xf]
        %v258 = vld [vmem:[%s181 + $0x104] sm:$0xf]
        %v259 = vld [vmem:[%s181 + $0x108] sm:$0xf]
        %v260 = vld [vmem:[%s181 + $0x10c] sm:$0xf]
        %v261 = vld [vmem:[%s181 + $0x110] sm:$0xf]
        %v262 = vld [vmem:[%s181 + $0x114] sm:$0xf]
        %v263 = vld [vmem:[%s181 + $0x118] sm:$0xf]
        %v264 = vld [vmem:[%s181 + $0x11c] sm:$0xf]
        %v265 = vld [vmem:[%s181 + $0x120] sm:$0xf]
        %v266 = vld [vmem:[%s181 + $0x124] sm:$0xf]
        %v267 = vld [vmem:[%s181 + $0x128] sm:$0xf]
        %v268 = vld [vmem:[%s181 + $0x12c] sm:$0xf]
        %v269 = vld [vmem:[%s181 + $0x130] sm:$0xf]
        %v270 = vld [vmem:[%s181 + $0x134] sm:$0xf]
        %v271 = vld [vmem:[%s181 + $0x138] sm:$0xf]
        %v272 = vld [vmem:[%s181 + $0x13c] sm:$0xf]
        %v273 = vld [vmem:[%s181 + $0x140] sm:$0xf]
        %v274 = vld [vmem:[%s181 + $0x144] sm:$0xf]
        %v275 = vld [vmem:[%s181 + $0x148] sm:$0xf]
        %v276 = vld [vmem:[%s181 + $0x14c] sm:$0xf]
        %v277 = vld [vmem:[%s181 + $0x150] sm:$0xf]
        %v278 = vld [vmem:[%s181 + $0x154] sm:$0xf]
        %v279 = vld [vmem:[%s181 + $0x158] sm:$0xf]
        %v280 = vld [vmem:[%s181 + $0x15c] sm:$0xf]
        %v281 = vld [vmem:[%s181 + $0x160] sm:$0xf]
        %v282 = vld [vmem:[%s181 + $0x164] sm:$0xf]
        %v283 = vld [vmem:[%s181 + $0x168] sm:$0xf]
        %v284 = vld [vmem:[%s181 + $0x16c] sm:$0xf]
        %v285 = vld [vmem:[%s181 + $0x170] sm:$0xf]
        %v286 = vld [vmem:[%s181 + $0x174] sm:$0xf]
        %v287 = vld [vmem:[%s181 + $0x178] sm:$0xf]
        %v288 = vld [vmem:[%s181 + $0x17c] sm:$0xf]
        %v289 = vld [vmem:[%s181 + $0x180] sm:$0xf]
        %v290 = vld [vmem:[%s181 + $0x184] sm:$0xf]
        %v291 = vld [vmem:[%s181 + $0x188] sm:$0xf]
        %v292 = vld [vmem:[%s181 + $0x18c] sm:$0xf]
        %v293 = vld [vmem:[%s181 + $0x190] sm:$0xf]
        %v294 = vld [vmem:[%s181 + $0x194] sm:$0xf]
        %v295 = vld [vmem:[%s181 + $0x198] sm:$0xf]
        %v296 = vld [vmem:[%s181 + $0x19c] sm:$0xf]
        %v297 = vld [vmem:[%s181 + $0x1a0] sm:$0xf]
        %v298 = vld [vmem:[%s181 + $0x1a4] sm:$0xf]
        %v299 = vld [vmem:[%s181 + $0x1a8] sm:$0xf]
        %v300 = vld [vmem:[%s181 + $0x1ac] sm:$0xf]
        %v301 = vld [vmem:[%s181 + $0x1b0] sm:$0xf]
        %v302 = vld [vmem:[%s181 + $0x1b4] sm:$0xf]
        %v303 = vld [vmem:[%s181 + $0x1b8] sm:$0xf]
        %v304 = vld [vmem:[%s181 + $0x1bc] sm:$0xf]
        %v305 = vld [vmem:[%s181 + $0x1c0] sm:$0xf]
        %v306 = vld [vmem:[%s181 + $0x1c4] sm:$0xf]
        %v307 = vld [vmem:[%s181 + $0x1c8] sm:$0xf]
        %v308 = vld [vmem:[%s181 + $0x1cc] sm:$0xf]
        %v309 = vld [vmem:[%s181 + $0x1d0] sm:$0xf]
        %v310 = vld [vmem:[%s181 + $0x1d4] sm:$0xf]
        %v311 = vld [vmem:[%s181 + $0x1d8] sm:$0xf]
        %v312 = vld [vmem:[%s181 + $0x1dc] sm:$0xf]
        %v313 = vld [vmem:[%s181 + $0x1e0] sm:$0xf]
        %v314 = vld [vmem:[%s181 + $0x1e4] sm:$0xf]
        %v315 = vld [vmem:[%s1] sm:$0xf]
        %v316 = vld [vmem:[%s1 + $0x4] sm:$0xf]
        %v317 = vld [vmem:[%s1 + $0x8] sm:$0xf]
        %v318 = vld [vmem:[%s1 + $0xc] sm:$0xf]
        %v319 = vld [vmem:[%s1 + $0x10] sm:$0xf]
        %v320 = vld [vmem:[%s1 + $0x14] sm:$0xf]
        %v321 = vld [vmem:[%s2] sm:$0x1]
        %v323 = vperm.slane %v321, 0
        %v447 = vunpack.c.l.b16 %v193
        %v448 = vunpack.c.l.b16 %v194
        %v449 = vunpack.c.l.b16 %v195
        %v450 = vunpack.c.l.b16 %v196
        %v451 = vunpack.c.l.b16 %v197
        %v452 = vunpack.c.l.b16 %v198
        %v453 = vunpack.c.l.b16 %v199
        %v454 = vunpack.c.l.b16 %v200
        %v455 = vunpack.c.l.b16 %v201
        %v456 = vunpack.c.l.b16 %v202
        %v457 = vunpack.c.l.b16 %v203
        %v458 = vunpack.c.l.b16 %v204
        %v459 = vunpack.c.l.b16 %v205
        %v460 = vunpack.c.l.b16 %v206
        %v461 = vunpack.c.l.b16 %v207
        %v462 = vunpack.c.l.b16 %v208
        %v463 = vunpack.c.l.b16 %v209
        %v464 = vunpack.c.l.b16 %v210
        %v465 = vunpack.c.l.b16 %v211
        %v466 = vunpack.c.l.b16 %v212
        %v467 = vunpack.c.l.b16 %v213
        %v468 = vunpack.c.l.b16 %v214
        %v469 = vunpack.c.l.b16 %v215
        %v470 = vunpack.c.l.b16 %v216
        %v471 = vunpack.c.l.b16 %v217
        %v472 = vunpack.c.l.b16 %v218
        %v473 = vunpack.c.l.b16 %v219
        %v474 = vunpack.c.l.b16 %v220
        %v475 = vunpack.c.l.b16 %v221
        %v476 = vunpack.c.l.b16 %v222
        %v477 = vunpack.c.l.b16 %v223
        %v478 = vunpack.c.l.b16 %v224
        %v479 = vunpack.c.l.b16 %v225
        %v480 = vunpack.c.l.b16 %v226
        %v481 = vunpack.c.l.b16 %v227
        %v482 = vunpack.c.l.b16 %v228
        %v483 = vunpack.c.l.b16 %v229
        %v484 = vunpack.c.l.b16 %v230
        %v485 = vunpack.c.l.b16 %v231
        %v486 = vunpack.c.l.b16 %v232
        %v487 = vunpack.c.l.b16 %v233
        %v488 = vunpack.c.l.b16 %v234
        %v489 = vunpack.c.l.b16 %v235
        %v490 = vunpack.c.l.b16 %v236
        %v491 = vunpack.c.l.b16 %v237
        %v492 = vunpack.c.l.b16 %v238
        %v493 = vunpack.c.l.b16 %v239
        %v494 = vunpack.c.l.b16 %v240
        %v495 = vunpack.c.l.b16 %v241
        %v496 = vunpack.c.l.b16 %v242
        %v497 = vunpack.c.l.b16 %v243
        %v498 = vunpack.c.l.b16 %v244
        %v499 = vunpack.c.l.b16 %v245
        %v500 = vunpack.c.l.b16 %v246
        %v501 = vunpack.c.l.b16 %v247
        %v502 = vunpack.c.l.b16 %v248
        %v503 = vunpack.c.l.b16 %v249
        %v504 = vunpack.c.l.b16 %v250
        %v505 = vunpack.c.l.b16 %v251
        %v506 = vunpack.c.l.b16 %v252
        %v507 = vunpack.c.l.b16 %v253
        %v508 = vunpack.c.l.b16 %v254
        %v509 = vunpack.c.l.b16 %v255
        %v510 = vunpack.c.l.b16 %v256
        %v511 = vunpack.c.l.b16 %v257
        %v512 = vunpack.c.l.b16 %v258
        %v513 = vunpack.c.l.b16 %v259
        %v514 = vunpack.c.l.b16 %v260
        %v515 = vunpack.c.l.b16 %v261
        %v516 = vunpack.c.l.b16 %v262
        %v517 = vunpack.c.l.b16 %v263
        %v518 = vunpack.c.l.b16 %v264
        %v519 = vunpack.c.l.b16 %v265
        %v520 = vunpack.c.l.b16 %v266
        %v521 = vunpack.c.l.b16 %v267
        %v522 = vunpack.c.l.b16 %v268
        %v523 = vunpack.c.l.b16 %v269
        %v524 = vunpack.c.l.b16 %v270
        %v525 = vunpack.c.l.b16 %v271
        %v526 = vunpack.c.l.b16 %v272
        %v527 = vunpack.c.l.b16 %v273
        %v528 = vunpack.c.l.b16 %v274
        %v529 = vunpack.c.l.b16 %v275
        %v530 = vunpack.c.l.b16 %v276
        %v531 = vunpack.c.l.b16 %v277
        %v532 = vunpack.c.l.b16 %v278
        %v533 = vunpack.c.l.b16 %v279
        %v534 = vunpack.c.l.b16 %v280
        %v535 = vunpack.c.l.b16 %v281
        %v536 = vunpack.c.l.b16 %v282
        %v537 = vunpack.c.l.b16 %v283
        %v538 = vunpack.c.l.b16 %v284
        %v539 = vunpack.c.l.b16 %v285
        %v540 = vunpack.c.l.b16 %v286
        %v541 = vunpack.c.l.b16 %v287
        %v542 = vunpack.c.l.b16 %v288
        %v543 = vunpack.c.l.b16 %v289
        %v544 = vunpack.c.l.b16 %v290
        %v545 = vunpack.c.l.b16 %v291
        %v546 = vunpack.c.l.b16 %v292
        %v547 = vunpack.c.l.b16 %v293
        %v548 = vunpack.c.l.b16 %v294
        %v549 = vunpack.c.l.b16 %v295
        %v550 = vunpack.c.l.b16 %v296
        %v551 = vunpack.c.l.b16 %v297
        %v552 = vunpack.c.l.b16 %v298
        %v553 = vunpack.c.l.b16 %v299
        %v554 = vunpack.c.l.b16 %v300
        %v555 = vunpack.c.l.b16 %v301
        %v556 = vunpack.c.l.b16 %v302
        %v557 = vunpack.c.l.b16 %v303
        %v558 = vunpack.c.l.b16 %v304
        %v559 = vunpack.c.l.b16 %v305
        %v560 = vunpack.c.l.b16 %v306
        %v561 = vunpack.c.l.b16 %v307
        %v562 = vunpack.c.l.b16 %v308
        %v563 = vunpack.c.l.b16 %v309
        %v564 = vunpack.c.l.b16 %v310
        %v565 = vunpack.c.l.b16 %v311
        %v566 = vunpack.c.l.b16 %v312
        %v567 = vunpack.c.l.b16 %v313
        %v568 = vunpack.c.l.b16 %v314
        %v569 = vpack.c.b16 %v448, %v447
        %v570 = vpack.c.b16 %v450, %v449
        %v571 = vpack.c.b16 %v452, %v451
        %v572 = vpack.c.b16 %v454, %v453
        %v573 = vpack.c.b16 %v456, %v455
        %v574 = vpack.c.b16 %v458, %v457
        %v575 = vpack.c.b16 %v460, %v459
        %v576 = vpack.c.b16 %v462, %v461
        %v577 = vpack.c.b16 %v464, %v463
        %v578 = vpack.c.b16 %v466, %v465
        %v579 = vpack.c.b16 %v468, %v467
        %v580 = vpack.c.b16 %v470, %v469
        %v581 = vpack.c.b16 %v472, %v471
        %v582 = vpack.c.b16 %v474, %v473
        %v583 = vpack.c.b16 %v476, %v475
        %v584 = vpack.c.b16 %v478, %v477
        %v585 = vpack.c.b16 %v480, %v479
        %v586 = vpack.c.b16 %v482, %v481
        %v587 = vpack.c.b16 %v484, %v483
        %v588 = vpack.c.b16 %v486, %v485
        %v589 = vpack.c.b16 %v488, %v487
        %v590 = vpack.c.b16 %v490, %v489
        %v591 = vpack.c.b16 %v492, %v491
        %v592 = vpack.c.b16 %v494, %v493
        %v593 = vpack.c.b16 %v496, %v495
        %v594 = vpack.c.b16 %v498, %v497
        %v595 = vpack.c.b16 %v500, %v499
        %v596 = vpack.c.b16 %v502, %v501
        %v597 = vpack.c.b16 %v504, %v503
        %v598 = vpack.c.b16 %v506, %v505
        %v599 = vpack.c.b16 %v508, %v507
        %v600 = vpack.c.b16 %v510, %v509
        %v601 = vpack.c.b16 %v512, %v511
        %v602 = vpack.c.b16 %v514, %v513
        %v603 = vpack.c.b16 %v516, %v515
        %v604 = vpack.c.b16 %v518, %v517
        %v605 = vpack.c.b16 %v520, %v519
        %v606 = vpack.c.b16 %v522, %v521
        %v607 = vpack.c.b16 %v524, %v523
        %v608 = vpack.c.b16 %v526, %v525
        %v609 = vpack.c.b16 %v528, %v527
        %v610 = vpack.c.b16 %v530, %v529
        %v611 = vpack.c.b16 %v532, %v531
        %v612 = vpack.c.b16 %v534, %v533
        %v613 = vpack.c.b16 %v536, %v535
        %v614 = vpack.c.b16 %v538, %v537
        %v615 = vpack.c.b16 %v540, %v539
        %v616 = vpack.c.b16 %v542, %v541
        %v617 = vpack.c.b16 %v544, %v543
        %v618 = vpack.c.b16 %v546, %v545
        %v619 = vpack.c.b16 %v548, %v547
        %v620 = vpack.c.b16 %v550, %v549
        %v621 = vpack.c.b16 %v552, %v551
        %v622 = vpack.c.b16 %v554, %v553
        %v623 = vpack.c.b16 %v556, %v555
        %v624 = vpack.c.b16 %v558, %v557
        %v625 = vpack.c.b16 %v560, %v559
        %v626 = vpack.c.b16 %v562, %v561
        %v627 = vpack.c.b16 %v564, %v563
        %v628 = vpack.c.b16 %v566, %v565
        %v629 = vpack.c.b16 %v568, %v567
        %v636 = vunpack.c.l.b16 %v315
        %v637 = vunpack.c.l.b16 %v316
        %v638 = vunpack.c.l.b16 %v317
        %v639 = vunpack.c.l.b16 %v318
        %v640 = vunpack.c.l.b16 %v319
        %v641 = vunpack.c.l.b16 %v320
        %v642 = vpack.c.b16 %v637, %v636
        %v643 = vpack.c.b16 %v639, %v638
        %v644 = vpack.c.b16 %v641, %v640
        %vm648 = vcmask 392192
        %v650 = vsel %vm648, %v569, 0
        %v653 = vsel %vm648, %v570, 0
        %v656 = vsel %vm648, %v571, 0
        %v659 = vsel %vm648, %v572, 0
        %v662 = vsel %vm648, %v573, 0
        %v665 = vsel %vm648, %v574, 0
        %v668 = vsel %vm648, %v575, 0
        %v671 = vsel %vm648, %v576, 0
        %v674 = vsel %vm648, %v577, 0
        %v677 = vsel %vm648, %v578, 0
        %v680 = vsel %vm648, %v579, 0
        %v683 = vsel %vm648, %v580, 0
        %v686 = vsel %vm648, %v581, 0
        %v689 = vsel %vm648, %v582, 0
        %v692 = vsel %vm648, %v583, 0
        %v695 = vsel %vm648, %v584, 0
        %v698 = vsel %vm648, %v585, 0
        %v701 = vsel %vm648, %v586, 0
        %v704 = vsel %vm648, %v587, 0
        %v707 = vsel %vm648, %v588, 0
        %v710 = vsel %vm648, %v589, 0
        %v713 = vsel %vm648, %v590, 0
        %v716 = vsel %vm648, %v591, 0
        %v719 = vsel %vm648, %v592, 0
        %v722 = vsel %vm648, %v593, 0
        %v725 = vsel %vm648, %v594, 0
        %v728 = vsel %vm648, %v595, 0
        %v731 = vsel %vm648, %v596, 0
        %v734 = vsel %vm648, %v597, 0
        %v737 = vsel %vm648, %v598, 0
        %v740 = vsel %vm648, %v599, 0
        %v743 = vsel %vm648, %v600, 0
        %v746 = vsel %vm648, %v601, 0
        %v749 = vsel %vm648, %v602, 0
        %v752 = vsel %vm648, %v603, 0
        %v755 = vsel %vm648, %v604, 0
        %v758 = vsel %vm648, %v605, 0
        %v761 = vsel %vm648, %v606, 0
        %v764 = vsel %vm648, %v607, 0
        %v767 = vsel %vm648, %v608, 0
        %v770 = vsel %vm648, %v609, 0
        %v773 = vsel %vm648, %v610, 0
        %v776 = vsel %vm648, %v611, 0
        %v779 = vsel %vm648, %v612, 0
        %v782 = vsel %vm648, %v613, 0
        %v785 = vsel %vm648, %v614, 0
        %v788 = vsel %vm648, %v615, 0
        %v791 = vsel %vm648, %v616, 0
        %v794 = vsel %vm648, %v617, 0
        %v797 = vsel %vm648, %v618, 0
        %v800 = vsel %vm648, %v619, 0
        %v803 = vsel %vm648, %v620, 0
        %v806 = vsel %vm648, %v621, 0
        %v809 = vsel %vm648, %v622, 0
        %v812 = vsel %vm648, %v623, 0
        %v815 = vsel %vm648, %v624, 0
        %v818 = vsel %vm648, %v625, 0
        %v821 = vsel %vm648, %v626, 0
        %v824 = vsel %vm648, %v627, 0
        %v827 = vsel %vm648, %v628, 0
        %v830 = vsel %vm648, %v629, 0
        %832 = vmatpush.bf16.msra.mxu0 0
        %833 = vmatpush.bf16.msra.mxu0 0
        %834 = vmatpush.bf16.msra.mxu0 0
        %835 = vmatpush.bf16.msra.mxu0 0
        %836 = vmatpush.bf16.msra.mxu0 0
        %837 = vmatpush.bf16.msra.mxu0 %v644
        %838 = vmatpush.bf16.msra.mxu0 %v643
        %839 = vmatpush.bf16.msra.mxu0 %v642
        %840 = vmatmul.bf16.gmra.mxu0 %v650
        %v841 = vpop.f32.mrf.mxu0
        %v842 = vadd.f32 %v323, %v841
        %v843 = vpop.f32.mrf.mxu0
        %v844 = vadd.f32 %v323, %v843
        %845 = vmatmul.bf16.gmra.mxu0 %v653
        %v846 = vpop.f32.mrf.mxu0
        %v847 = vadd.f32 %v323, %v846
        %v848 = vpop.f32.mrf.mxu0
        %v849 = vadd.f32 %v323, %v848
        %850 = vmatmul.bf16.gmra.mxu0 %v656
        %v851 = vpop.f32.mrf.mxu0
        %v852 = vadd.f32 %v323, %v851
        %v853 = vpop.f32.mrf.mxu0
        %v854 = vadd.f32 %v323, %v853
        %855 = vmatmul.bf16.gmra.mxu0 %v659
        %v856 = vpop.f32.mrf.mxu0
        %v857 = vadd.f32 %v323, %v856
        %v858 = vpop.f32.mrf.mxu0
        %v859 = vadd.f32 %v323, %v858
        %860 = vmatmul.bf16.gmra.mxu0 %v662
        %v861 = vpop.f32.mrf.mxu0
        %v862 = vadd.f32 %v323, %v861
        %v863 = vpop.f32.mrf.mxu0
        %v864 = vadd.f32 %v323, %v863
        %865 = vmatmul.bf16.gmra.mxu0 %v665
        %v866 = vpop.f32.mrf.mxu0
        %v867 = vadd.f32 %v323, %v866
        %v868 = vpop.f32.mrf.mxu0
        %v869 = vadd.f32 %v323, %v868
        %870 = vmatmul.bf16.gmra.mxu0 %v668
        %v871 = vpop.f32.mrf.mxu0
        %v872 = vadd.f32 %v323, %v871
        %v873 = vpop.f32.mrf.mxu0
        %v874 = vadd.f32 %v323, %v873
        %875 = vmatmul.bf16.gmra.mxu0 %v671
        %v876 = vpop.f32.mrf.mxu0
        %v877 = vadd.f32 %v323, %v876
        %v878 = vpop.f32.mrf.mxu0
        %v879 = vadd.f32 %v323, %v878
        %880 = vmatmul.bf16.gmra.mxu0 %v674
        %v881 = vpop.f32.mrf.mxu0
        %v882 = vadd.f32 %v323, %v881
        %v883 = vpop.f32.mrf.mxu0
        %v884 = vadd.f32 %v323, %v883
        %885 = vmatmul.bf16.gmra.mxu0 %v677
        %v886 = vpop.f32.mrf.mxu0
        %v887 = vadd.f32 %v323, %v886
        %v888 = vpop.f32.mrf.mxu0
        %v889 = vadd.f32 %v323, %v888
        %890 = vmatmul.bf16.gmra.mxu0 %v680
        %v891 = vpop.f32.mrf.mxu0
        %v892 = vadd.f32 %v323, %v891
        %v893 = vpop.f32.mrf.mxu0
        %v894 = vadd.f32 %v323, %v893
        %895 = vmatmul.bf16.gmra.mxu0 %v683
        %v896 = vpop.f32.mrf.mxu0
        %v897 = vadd.f32 %v323, %v896
        %v898 = vpop.f32.mrf.mxu0
        %v899 = vadd.f32 %v323, %v898
        %900 = vmatmul.bf16.gmra.mxu0 %v686
        %v901 = vpop.f32.mrf.mxu0
        %v902 = vadd.f32 %v323, %v901
        %v903 = vpop.f32.mrf.mxu0
        %v904 = vadd.f32 %v323, %v903
        %905 = vmatmul.bf16.gmra.mxu0 %v689
        %v906 = vpop.f32.mrf.mxu0
        %v907 = vadd.f32 %v323, %v906
        %v908 = vpop.f32.mrf.mxu0
        %v909 = vadd.f32 %v323, %v908
        %910 = vmatmul.bf16.gmra.mxu0 %v692
        %v911 = vpop.f32.mrf.mxu0
        %v912 = vadd.f32 %v323, %v911
        %v913 = vpop.f32.mrf.mxu0
        %v914 = vadd.f32 %v323, %v913
        %915 = vmatmul.bf16.gmra.mxu0 %v695
        %v916 = vpop.f32.mrf.mxu0
        %v917 = vadd.f32 %v323, %v916
        %v918 = vpop.f32.mrf.mxu0
        %v919 = vadd.f32 %v323, %v918
        %920 = vmatmul.bf16.gmra.mxu0 %v698
        %v921 = vpop.f32.mrf.mxu0
        %v922 = vadd.f32 %v323, %v921
        %v923 = vpop.f32.mrf.mxu0
        %v924 = vadd.f32 %v323, %v923
        %925 = vmatmul.bf16.gmra.mxu0 %v701
        %v926 = vpop.f32.mrf.mxu0
        %v927 = vadd.f32 %v323, %v926
        %v928 = vpop.f32.mrf.mxu0
        %v929 = vadd.f32 %v323, %v928
        %930 = vmatmul.bf16.gmra.mxu0 %v704
        %v931 = vpop.f32.mrf.mxu0
        %v932 = vadd.f32 %v323, %v931
        %v933 = vpop.f32.mrf.mxu0
        %v934 = vadd.f32 %v323, %v933
        %935 = vmatmul.bf16.gmra.mxu0 %v707
        %v936 = vpop.f32.mrf.mxu0
        %v937 = vadd.f32 %v323, %v936
        %v938 = vpop.f32.mrf.mxu0
        %v939 = vadd.f32 %v323, %v938
        %940 = vmatmul.bf16.gmra.mxu0 %v710
        %v941 = vpop.f32.mrf.mxu0
        %v942 = vadd.f32 %v323, %v941
        %v943 = vpop.f32.mrf.mxu0
        %v944 = vadd.f32 %v323, %v943
        %945 = vmatmul.bf16.gmra.mxu0 %v713
        %v946 = vpop.f32.mrf.mxu0
        %v947 = vadd.f32 %v323, %v946
        %v948 = vpop.f32.mrf.mxu0
        %v949 = vadd.f32 %v323, %v948
        %950 = vmatmul.bf16.gmra.mxu0 %v716
        %v951 = vpop.f32.mrf.mxu0
        %v952 = vadd.f32 %v323, %v951
        %v953 = vpop.f32.mrf.mxu0
        %v954 = vadd.f32 %v323, %v953
        %955 = vmatmul.bf16.gmra.mxu0 %v719
        %v956 = vpop.f32.mrf.mxu0
        %v957 = vadd.f32 %v323, %v956
        %v958 = vpop.f32.mrf.mxu0
        %v959 = vadd.f32 %v323, %v958
        %960 = vmatmul.bf16.gmra.mxu0 %v722
        %v961 = vpop.f32.mrf.mxu0
        %v962 = vadd.f32 %v323, %v961
        %v963 = vpop.f32.mrf.mxu0
        %v964 = vadd.f32 %v323, %v963
        %965 = vmatmul.bf16.gmra.mxu0 %v725
        %v966 = vpop.f32.mrf.mxu0
        %v967 = vadd.f32 %v323, %v966
        %v968 = vpop.f32.mrf.mxu0
        %v969 = vadd.f32 %v323, %v968
        %970 = vmatmul.bf16.gmra.mxu0 %v728
        %v971 = vpop.f32.mrf.mxu0
        %v972 = vadd.f32 %v323, %v971
        %v973 = vpop.f32.mrf.mxu0
        %v974 = vadd.f32 %v323, %v973
        %975 = vmatmul.bf16.gmra.mxu0 %v731
        %v976 = vpop.f32.mrf.mxu0
        %v977 = vadd.f32 %v323, %v976
        %v978 = vpop.f32.mrf.mxu0
        %v979 = vadd.f32 %v323, %v978
        %980 = vmatmul.bf16.gmra.mxu0 %v734
        %v981 = vpop.f32.mrf.mxu0
        %v982 = vadd.f32 %v323, %v981
        %v983 = vpop.f32.mrf.mxu0
        %v984 = vadd.f32 %v323, %v983
        %985 = vmatmul.bf16.gmra.mxu0 %v737
        %v986 = vpop.f32.mrf.mxu0
        %v987 = vadd.f32 %v323, %v986
        %v988 = vpop.f32.mrf.mxu0
        %v989 = vadd.f32 %v323, %v988
        %990 = vmatmul.bf16.gmra.mxu0 %v740
        %v991 = vpop.f32.mrf.mxu0
        %v992 = vadd.f32 %v323, %v991
        %v993 = vpop.f32.mrf.mxu0
        %v994 = vadd.f32 %v323, %v993
        %995 = vmatmul.bf16.gmra.mxu0 %v743
        %v996 = vpop.f32.mrf.mxu0
        %v997 = vadd.f32 %v323, %v996
        %v998 = vpop.f32.mrf.mxu0
        %v999 = vadd.f32 %v323, %v998
        %1000 = vmatmul.bf16.gmra.mxu0 %v746
        %v1001 = vpop.f32.mrf.mxu0
        %v1002 = vadd.f32 %v323, %v1001
        %v1003 = vpop.f32.mrf.mxu0
        %v1004 = vadd.f32 %v323, %v1003
        %1005 = vmatmul.bf16.gmra.mxu0 %v749
        %v1006 = vpop.f32.mrf.mxu0
        %v1007 = vadd.f32 %v323, %v1006
        %v1008 = vpop.f32.mrf.mxu0
        %v1009 = vadd.f32 %v323, %v1008
        %1010 = vmatmul.bf16.gmra.mxu0 %v752
        %v1011 = vpop.f32.mrf.mxu0
        %v1012 = vadd.f32 %v323, %v1011
        %v1013 = vpop.f32.mrf.mxu0
        %v1014 = vadd.f32 %v323, %v1013
        %1015 = vmatmul.bf16.gmra.mxu0 %v755
        %v1016 = vpop.f32.mrf.mxu0
        %v1017 = vadd.f32 %v323, %v1016
        %v1018 = vpop.f32.mrf.mxu0
        %v1019 = vadd.f32 %v323, %v1018
        %1020 = vmatmul.bf16.gmra.mxu0 %v758
        %v1021 = vpop.f32.mrf.mxu0
        %v1022 = vadd.f32 %v323, %v1021
        %v1023 = vpop.f32.mrf.mxu0
        %v1024 = vadd.f32 %v323, %v1023
        %1025 = vmatmul.bf16.gmra.mxu0 %v761
        %v1026 = vpop.f32.mrf.mxu0
        %v1027 = vadd.f32 %v323, %v1026
        %v1028 = vpop.f32.mrf.mxu0
        %v1029 = vadd.f32 %v323, %v1028
        %1030 = vmatmul.bf16.gmra.mxu0 %v764
        %v1031 = vpop.f32.mrf.mxu0
        %v1032 = vadd.f32 %v323, %v1031
        %v1033 = vpop.f32.mrf.mxu0
        %v1034 = vadd.f32 %v323, %v1033
        %1035 = vmatmul.bf16.gmra.mxu0 %v767
        %v1036 = vpop.f32.mrf.mxu0
        %v1037 = vadd.f32 %v323, %v1036
        %v1038 = vpop.f32.mrf.mxu0
        %v1039 = vadd.f32 %v323, %v1038
        %1040 = vmatmul.bf16.gmra.mxu0 %v770
        %v1041 = vpop.f32.mrf.mxu0
        %v1042 = vadd.f32 %v323, %v1041
        %v1043 = vpop.f32.mrf.mxu0
        %v1044 = vadd.f32 %v323, %v1043
        %1045 = vmatmul.bf16.gmra.mxu0 %v773
        %v1046 = vpop.f32.mrf.mxu0
        %v1047 = vadd.f32 %v323, %v1046
        %v1048 = vpop.f32.mrf.mxu0
        %v1049 = vadd.f32 %v323, %v1048
        %1050 = vmatmul.bf16.gmra.mxu0 %v776
        %v1051 = vpop.f32.mrf.mxu0
        %v1052 = vadd.f32 %v323, %v1051
        %v1053 = vpop.f32.mrf.mxu0
        %v1054 = vadd.f32 %v323, %v1053
        %1055 = vmatmul.bf16.gmra.mxu0 %v779
        %v1056 = vpop.f32.mrf.mxu0
        %v1057 = vadd.f32 %v323, %v1056
        %v1058 = vpop.f32.mrf.mxu0
        %v1059 = vadd.f32 %v323, %v1058
        %1060 = vmatmul.bf16.gmra.mxu0 %v782
        %v1061 = vpop.f32.mrf.mxu0
        %v1062 = vadd.f32 %v323, %v1061
        %v1063 = vpop.f32.mrf.mxu0
        %v1064 = vadd.f32 %v323, %v1063
        %1065 = vmatmul.bf16.gmra.mxu0 %v785
        %v1066 = vpop.f32.mrf.mxu0
        %v1067 = vadd.f32 %v323, %v1066
        %v1068 = vpop.f32.mrf.mxu0
        %v1069 = vadd.f32 %v323, %v1068
        %1070 = vmatmul.bf16.gmra.mxu0 %v788
        %v1071 = vpop.f32.mrf.mxu0
        %v1072 = vadd.f32 %v323, %v1071
        %v1073 = vpop.f32.mrf.mxu0
        %v1074 = vadd.f32 %v323, %v1073
        %1075 = vmatmul.bf16.gmra.mxu0 %v791
        %v1076 = vpop.f32.mrf.mxu0
        %v1077 = vadd.f32 %v323, %v1076
        %v1078 = vpop.f32.mrf.mxu0
        %v1079 = vadd.f32 %v323, %v1078
        %1080 = vmatmul.bf16.gmra.mxu0 %v794
        %v1081 = vpop.f32.mrf.mxu0
        %v1082 = vadd.f32 %v323, %v1081
        %v1083 = vpop.f32.mrf.mxu0
        %v1084 = vadd.f32 %v323, %v1083
        %1085 = vmatmul.bf16.gmra.mxu0 %v797
        %v1086 = vpop.f32.mrf.mxu0
        %v1087 = vadd.f32 %v323, %v1086
        %v1088 = vpop.f32.mrf.mxu0
        %v1089 = vadd.f32 %v323, %v1088
        %1090 = vmatmul.bf16.gmra.mxu0 %v800
        %v1091 = vpop.f32.mrf.mxu0
        %v1092 = vadd.f32 %v323, %v1091
        %v1093 = vpop.f32.mrf.mxu0
        %v1094 = vadd.f32 %v323, %v1093
        %1095 = vmatmul.bf16.gmra.mxu0 %v803
        %v1096 = vpop.f32.mrf.mxu0
        %v1097 = vadd.f32 %v323, %v1096
        %v1098 = vpop.f32.mrf.mxu0
        %v1099 = vadd.f32 %v323, %v1098
        %1100 = vmatmul.bf16.gmra.mxu0 %v806
        %v1101 = vpop.f32.mrf.mxu0
        %v1102 = vadd.f32 %v323, %v1101
        %v1103 = vpop.f32.mrf.mxu0
        %v1104 = vadd.f32 %v323, %v1103
        %1105 = vmatmul.bf16.gmra.mxu0 %v809
        %v1106 = vpop.f32.mrf.mxu0
        %v1107 = vadd.f32 %v323, %v1106
        %v1108 = vpop.f32.mrf.mxu0
        %v1109 = vadd.f32 %v323, %v1108
        %1110 = vmatmul.bf16.gmra.mxu0 %v812
        %v1111 = vpop.f32.mrf.mxu0
        %v1112 = vadd.f32 %v323, %v1111
        %v1113 = vpop.f32.mrf.mxu0
        %v1114 = vadd.f32 %v323, %v1113
        %1115 = vmatmul.bf16.gmra.mxu0 %v815
        %v1116 = vpop.f32.mrf.mxu0
        %v1117 = vadd.f32 %v323, %v1116
        %v1118 = vpop.f32.mrf.mxu0
        %v1119 = vadd.f32 %v323, %v1118
        %1120 = vmatmul.bf16.gmra.mxu0 %v818
        %v1121 = vpop.f32.mrf.mxu0
        %v1122 = vadd.f32 %v323, %v1121
        %v1123 = vpop.f32.mrf.mxu0
        %v1124 = vadd.f32 %v323, %v1123
        %1125 = vmatmul.bf16.gmra.mxu0 %v821
        %v1126 = vpop.f32.mrf.mxu0
        %v1127 = vadd.f32 %v323, %v1126
        %v1128 = vpop.f32.mrf.mxu0
        %v1129 = vadd.f32 %v323, %v1128
        %1130 = vmatmul.bf16.gmra.mxu0 %v824
        %v1131 = vpop.f32.mrf.mxu0
        %v1132 = vadd.f32 %v323, %v1131
        %v1133 = vpop.f32.mrf.mxu0
        %v1134 = vadd.f32 %v323, %v1133
        %1135 = vmatmul.bf16.gmra.mxu0 %v827
        %v1136 = vpop.f32.mrf.mxu0
        %v1137 = vadd.f32 %v323, %v1136
        %v1138 = vpop.f32.mrf.mxu0
        %v1139 = vadd.f32 %v323, %v1138
        %1140 = vmatmul.bf16.gmra.mxu0 %v830
        %v1141 = vpop.f32.mrf.mxu0
        %v1142 = vadd.f32 %v323, %v1141
        %v1143 = vpop.f32.mrf.mxu0
        %v1144 = vadd.f32 %v323, %v1143
        %1145 = vdwg.mxu0
        %v1146 = vmax.f32 %v842, 0.0
        %v1147 = vmax.f32 %v844, 0.0
        %v1148 = vmax.f32 %v847, 0.0
        %v1149 = vmax.f32 %v849, 0.0
        %v1150 = vmax.f32 %v852, 0.0
        %v1151 = vmax.f32 %v854, 0.0
        %v1152 = vmax.f32 %v857, 0.0
        %v1153 = vmax.f32 %v859, 0.0
        %v1154 = vmax.f32 %v862, 0.0
        %v1155 = vmax.f32 %v864, 0.0
        %v1156 = vmax.f32 %v867, 0.0
        %v1157 = vmax.f32 %v869, 0.0
        %v1158 = vmax.f32 %v872, 0.0
        %v1159 = vmax.f32 %v874, 0.0
        %v1160 = vmax.f32 %v877, 0.0
        %v1161 = vmax.f32 %v879, 0.0
        %v1162 = vmax.f32 %v882, 0.0
        %v1163 = vmax.f32 %v884, 0.0
        %v1164 = vmax.f32 %v887, 0.0
        %v1165 = vmax.f32 %v889, 0.0
        %v1166 = vmax.f32 %v892, 0.0
        %v1167 = vmax.f32 %v894, 0.0
        %v1168 = vmax.f32 %v897, 0.0
        %v1169 = vmax.f32 %v899, 0.0
        %v1170 = vmax.f32 %v902, 0.0
        %v1171 = vmax.f32 %v904, 0.0
        %v1172 = vmax.f32 %v907, 0.0
        %v1173 = vmax.f32 %v909, 0.0
        %v1174 = vmax.f32 %v912, 0.0
        %v1175 = vmax.f32 %v914, 0.0
        %v1176 = vmax.f32 %v917, 0.0
        %v1177 = vmax.f32 %v919, 0.0
        %v1178 = vmax.f32 %v922, 0.0
        %v1179 = vmax.f32 %v924, 0.0
        %v1180 = vmax.f32 %v927, 0.0
        %v1181 = vmax.f32 %v929, 0.0
        %v1182 = vmax.f32 %v932, 0.0
        %v1183 = vmax.f32 %v934, 0.0
        %v1184 = vmax.f32 %v937, 0.0
        %v1185 = vmax.f32 %v939, 0.0
        %v1186 = vmax.f32 %v942, 0.0
        %v1187 = vmax.f32 %v944, 0.0
        %v1188 = vmax.f32 %v947, 0.0
        %v1189 = vmax.f32 %v949, 0.0
        %v1190 = vmax.f32 %v952, 0.0
        %v1191 = vmax.f32 %v954, 0.0
        %v1192 = vmax.f32 %v957, 0.0
        %v1193 = vmax.f32 %v959, 0.0
        %v1194 = vmax.f32 %v962, 0.0
        %v1195 = vmax.f32 %v964, 0.0
        %v1196 = vmax.f32 %v967, 0.0
        %v1197 = vmax.f32 %v969, 0.0
        %v1198 = vmax.f32 %v972, 0.0
        %v1199 = vmax.f32 %v974, 0.0
        %v1200 = vmax.f32 %v977, 0.0
        %v1201 = vmax.f32 %v979, 0.0
        %v1202 = vmax.f32 %v982, 0.0
        %v1203 = vmax.f32 %v984, 0.0
        %v1204 = vmax.f32 %v987, 0.0
        %v1205 = vmax.f32 %v989, 0.0
        %v1206 = vmax.f32 %v992, 0.0
        %v1207 = vmax.f32 %v994, 0.0
        %v1208 = vmax.f32 %v997, 0.0
        %v1209 = vmax.f32 %v999, 0.0
        %v1210 = vmax.f32 %v1002, 0.0
        %v1211 = vmax.f32 %v1004, 0.0
        %v1212 = vmax.f32 %v1007, 0.0
        %v1213 = vmax.f32 %v1009, 0.0
        %v1214 = vmax.f32 %v1012, 0.0
        %v1215 = vmax.f32 %v1014, 0.0
        %v1216 = vmax.f32 %v1017, 0.0
        %v1217 = vmax.f32 %v1019, 0.0
        %v1218 = vmax.f32 %v1022, 0.0
        %v1219 = vmax.f32 %v1024, 0.0
        %v1220 = vmax.f32 %v1027, 0.0
        %v1221 = vmax.f32 %v1029, 0.0
        %v1222 = vmax.f32 %v1032, 0.0
        %v1223 = vmax.f32 %v1034, 0.0
        %v1224 = vmax.f32 %v1037, 0.0
        %v1225 = vmax.f32 %v1039, 0.0
        %v1226 = vmax.f32 %v1042, 0.0
        %v1227 = vmax.f32 %v1044, 0.0
        %v1228 = vmax.f32 %v1047, 0.0
        %v1229 = vmax.f32 %v1049, 0.0
        %v1230 = vmax.f32 %v1052, 0.0
        %v1231 = vmax.f32 %v1054, 0.0
        %v1232 = vmax.f32 %v1057, 0.0
        %v1233 = vmax.f32 %v1059, 0.0
        %v1234 = vmax.f32 %v1062, 0.0
        %v1235 = vmax.f32 %v1064, 0.0
        %v1236 = vmax.f32 %v1067, 0.0
        %v1237 = vmax.f32 %v1069, 0.0
        %v1238 = vmax.f32 %v1072, 0.0
        %v1239 = vmax.f32 %v1074, 0.0
        %v1240 = vmax.f32 %v1077, 0.0
        %v1241 = vmax.f32 %v1079, 0.0
        %v1242 = vmax.f32 %v1082, 0.0
        %v1243 = vmax.f32 %v1084, 0.0
        %v1244 = vmax.f32 %v1087, 0.0
        %v1245 = vmax.f32 %v1089, 0.0
        %v1246 = vmax.f32 %v1092, 0.0
        %v1247 = vmax.f32 %v1094, 0.0
        %v1248 = vmax.f32 %v1097, 0.0
        %v1249 = vmax.f32 %v1099, 0.0
        %v1250 = vmax.f32 %v1102, 0.0
        %v1251 = vmax.f32 %v1104, 0.0
        %v1252 = vmax.f32 %v1107, 0.0
        %v1253 = vmax.f32 %v1109, 0.0
        %v1254 = vmax.f32 %v1112, 0.0
        %v1255 = vmax.f32 %v1114, 0.0
        %v1256 = vmax.f32 %v1117, 0.0
        %v1257 = vmax.f32 %v1119, 0.0
        %v1258 = vmax.f32 %v1122, 0.0
        %v1259 = vmax.f32 %v1124, 0.0
        %v1260 = vmax.f32 %v1127, 0.0
        %v1261 = vmax.f32 %v1129, 0.0
        %v1262 = vmax.f32 %v1132, 0.0
        %v1263 = vmax.f32 %v1134, 0.0
        %v1264 = vmax.f32 %v1137, 0.0
        %v1265 = vmax.f32 %v1139, 0.0
        %v1266 = vmax.f32 %v1142, 0.0
        %v1267 = vmax.f32 %v1144, 0.0
        %v1268 = vpack.c.bf16 %v1146, %v1146
        %v1269 = vpack.c.bf16 %v1147, %v1147
        %v1270 = vpack.c.bf16 %v1148, %v1148
        %v1271 = vpack.c.bf16 %v1149, %v1149
        %v1272 = vpack.c.bf16 %v1150, %v1150
        %v1273 = vpack.c.bf16 %v1151, %v1151
        %v1274 = vpack.c.bf16 %v1152, %v1152
        %v1275 = vpack.c.bf16 %v1153, %v1153
        %v1276 = vpack.c.bf16 %v1154, %v1154
        %v1277 = vpack.c.bf16 %v1155, %v1155
        %v1278 = vpack.c.bf16 %v1156, %v1156
        %v1279 = vpack.c.bf16 %v1157, %v1157
        %v1280 = vpack.c.bf16 %v1158, %v1158
        %v1281 = vpack.c.bf16 %v1159, %v1159
        %v1282 = vpack.c.bf16 %v1160, %v1160
        %v1283 = vpack.c.bf16 %v1161, %v1161
        %v1284 = vpack.c.bf16 %v1162, %v1162
        %v1285 = vpack.c.bf16 %v1163, %v1163
        %v1286 = vpack.c.bf16 %v1164, %v1164
        %v1287 = vpack.c.bf16 %v1165, %v1165
        %v1288 = vpack.c.bf16 %v1166, %v1166
        %v1289 = vpack.c.bf16 %v1167, %v1167
        %v1290 = vpack.c.bf16 %v1168, %v1168
        %v1291 = vpack.c.bf16 %v1169, %v1169
        %v1292 = vpack.c.bf16 %v1170, %v1170
        %v1293 = vpack.c.bf16 %v1171, %v1171
        %v1294 = vpack.c.bf16 %v1172, %v1172
        %v1295 = vpack.c.bf16 %v1173, %v1173
        %v1296 = vpack.c.bf16 %v1174, %v1174
        %v1297 = vpack.c.bf16 %v1175, %v1175
        %v1298 = vpack.c.bf16 %v1176, %v1176
        %v1299 = vpack.c.bf16 %v1177, %v1177
        %v1300 = vpack.c.bf16 %v1178, %v1178
        %v1301 = vpack.c.bf16 %v1179, %v1179
        %v1302 = vpack.c.bf16 %v1180, %v1180
        %v1303 = vpack.c.bf16 %v1181, %v1181
        %v1304 = vpack.c.bf16 %v1182, %v1182
        %v1305 = vpack.c.bf16 %v1183, %v1183
        %v1306 = vpack.c.bf16 %v1184, %v1184
        %v1307 = vpack.c.bf16 %v1185, %v1185
        %v1308 = vpack.c.bf16 %v1186, %v1186
        %v1309 = vpack.c.bf16 %v1187, %v1187
        %v1310 = vpack.c.bf16 %v1188, %v1188
        %v1311 = vpack.c.bf16 %v1189, %v1189
        %v1312 = vpack.c.bf16 %v1190, %v1190
        %v1313 = vpack.c.bf16 %v1191, %v1191
        %v1314 = vpack.c.bf16 %v1192, %v1192
        %v1315 = vpack.c.bf16 %v1193, %v1193
        %v1316 = vpack.c.bf16 %v1194, %v1194
        %v1317 = vpack.c.bf16 %v1195, %v1195
        %v1318 = vpack.c.bf16 %v1196, %v1196
        %v1319 = vpack.c.bf16 %v1197, %v1197
        %v1320 = vpack.c.bf16 %v1198, %v1198
        %v1321 = vpack.c.bf16 %v1199, %v1199
        %v1322 = vpack.c.bf16 %v1200, %v1200
        %v1323 = vpack.c.bf16 %v1201, %v1201
        %v1324 = vpack.c.bf16 %v1202, %v1202
        %v1325 = vpack.c.bf16 %v1203, %v1203
        %v1326 = vpack.c.bf16 %v1204, %v1204
        %v1327 = vpack.c.bf16 %v1205, %v1205
        %v1328 = vpack.c.bf16 %v1206, %v1206
        %v1329 = vpack.c.bf16 %v1207, %v1207
        %v1330 = vpack.c.bf16 %v1208, %v1208
        %v1331 = vpack.c.bf16 %v1209, %v1209
        %v1332 = vpack.c.bf16 %v1210, %v1210
        %v1333 = vpack.c.bf16 %v1211, %v1211
        %v1334 = vpack.c.bf16 %v1212, %v1212
        %v1335 = vpack.c.bf16 %v1213, %v1213
        %v1336 = vpack.c.bf16 %v1214, %v1214
        %v1337 = vpack.c.bf16 %v1215, %v1215
        %v1338 = vpack.c.bf16 %v1216, %v1216
        %v1339 = vpack.c.bf16 %v1217, %v1217
        %v1340 = vpack.c.bf16 %v1218, %v1218
        %v1341 = vpack.c.bf16 %v1219, %v1219
        %v1342 = vpack.c.bf16 %v1220, %v1220
        %v1343 = vpack.c.bf16 %v1221, %v1221
        %v1344 = vpack.c.bf16 %v1222, %v1222
        %v1345 = vpack.c.bf16 %v1223, %v1223
        %v1346 = vpack.c.bf16 %v1224, %v1224
        %v1347 = vpack.c.bf16 %v1225, %v1225
        %v1348 = vpack.c.bf16 %v1226, %v1226
        %v1349 = vpack.c.bf16 %v1227, %v1227
        %v1350 = vpack.c.bf16 %v1228, %v1228
        %v1351 = vpack.c.bf16 %v1229, %v1229
        %v1352 = vpack.c.bf16 %v1230, %v1230
        %v1353 = vpack.c.bf16 %v1231, %v1231
        %v1354 = vpack.c.bf16 %v1232, %v1232
        %v1355 = vpack.c.bf16 %v1233, %v1233
        %v1356 = vpack.c.bf16 %v1234, %v1234
        %v1357 = vpack.c.bf16 %v1235, %v1235
        %v1358 = vpack.c.bf16 %v1236, %v1236
        %v1359 = vpack.c.bf16 %v1237, %v1237
        %v1360 = vpack.c.bf16 %v1238, %v1238
        %v1361 = vpack.c.bf16 %v1239, %v1239
        %v1362 = vpack.c.bf16 %v1240, %v1240
        %v1363 = vpack.c.bf16 %v1241, %v1241
        %v1364 = vpack.c.bf16 %v1242, %v1242
        %v1365 = vpack.c.bf16 %v1243, %v1243
        %v1366 = vpack.c.bf16 %v1244, %v1244
        %v1367 = vpack.c.bf16 %v1245, %v1245
        %v1368 = vpack.c.bf16 %v1246, %v1246
        %v1369 = vpack.c.bf16 %v1247, %v1247
        %v1370 = vpack.c.bf16 %v1248, %v1248
        %v1371 = vpack.c.bf16 %v1249, %v1249
        %v1372 = vpack.c.bf16 %v1250, %v1250
        %v1373 = vpack.c.bf16 %v1251, %v1251
        %v1374 = vpack.c.bf16 %v1252, %v1252
        %v1375 = vpack.c.bf16 %v1253, %v1253
        %v1376 = vpack.c.bf16 %v1254, %v1254
        %v1377 = vpack.c.bf16 %v1255, %v1255
        %v1378 = vpack.c.bf16 %v1256, %v1256
        %v1379 = vpack.c.bf16 %v1257, %v1257
        %v1380 = vpack.c.bf16 %v1258, %v1258
        %v1381 = vpack.c.bf16 %v1259, %v1259
        %v1382 = vpack.c.bf16 %v1260, %v1260
        %v1383 = vpack.c.bf16 %v1261, %v1261
        %v1384 = vpack.c.bf16 %v1262, %v1262
        %v1385 = vpack.c.bf16 %v1263, %v1263
        %v1386 = vpack.c.bf16 %v1264, %v1264
        %v1387 = vpack.c.bf16 %v1265, %v1265
        %v1388 = vpack.c.bf16 %v1266, %v1266
        %v1389 = vpack.c.bf16 %v1267, %v1267
        %vm1390 = vcmask 257024
        %1391 = vst.msk [vmem:[%s172] sm:$0xf] %vm1390, %v1268
        %1392 = vst.msk [vmem:[%s172 + $0x4] sm:$0xf] %vm1390, %v1269
        %1393 = vst.msk [vmem:[%s172 + $0x8] sm:$0xf] %vm1390, %v1270
        %1394 = vst.msk [vmem:[%s172 + $0xc] sm:$0xf] %vm1390, %v1271
        %1395 = vst.msk [vmem:[%s172 + $0x10] sm:$0xf] %vm1390, %v1272
        %1396 = vst.msk [vmem:[%s172 + $0x14] sm:$0xf] %vm1390, %v1273
        %1397 = vst.msk [vmem:[%s172 + $0x18] sm:$0xf] %vm1390, %v1274
        %1398 = vst.msk [vmem:[%s172 + $0x1c] sm:$0xf] %vm1390, %v1275
        %1399 = vst.msk [vmem:[%s172 + $0x20] sm:$0xf] %vm1390, %v1276
        %1400 = vst.msk [vmem:[%s172 + $0x24] sm:$0xf] %vm1390, %v1277
        %1401 = vst.msk [vmem:[%s172 + $0x28] sm:$0xf] %vm1390, %v1278
        %1402 = vst.msk [vmem:[%s172 + $0x2c] sm:$0xf] %vm1390, %v1279
        %1403 = vst.msk [vmem:[%s172 + $0x30] sm:$0xf] %vm1390, %v1280
        %1404 = vst.msk [vmem:[%s172 + $0x34] sm:$0xf] %vm1390, %v1281
        %1405 = vst.msk [vmem:[%s172 + $0x38] sm:$0xf] %vm1390, %v1282
        %1406 = vst.msk [vmem:[%s172 + $0x3c] sm:$0xf] %vm1390, %v1283
        %1407 = vst.msk [vmem:[%s172 + $0x40] sm:$0xf] %vm1390, %v1284
        %1408 = vst.msk [vmem:[%s172 + $0x44] sm:$0xf] %vm1390, %v1285
        %1409 = vst.msk [vmem:[%s172 + $0x48] sm:$0xf] %vm1390, %v1286
        %1410 = vst.msk [vmem:[%s172 + $0x4c] sm:$0xf] %vm1390, %v1287
        %1411 = vst.msk [vmem:[%s172 + $0x50] sm:$0xf] %vm1390, %v1288
        %1412 = vst.msk [vmem:[%s172 + $0x54] sm:$0xf] %vm1390, %v1289
        %1413 = vst.msk [vmem:[%s172 + $0x58] sm:$0xf] %vm1390, %v1290
        %1414 = vst.msk [vmem:[%s172 + $0x5c] sm:$0xf] %vm1390, %v1291
        %1415 = vst.msk [vmem:[%s172 + $0x60] sm:$0xf] %vm1390, %v1292
        %1416 = vst.msk [vmem:[%s172 + $0x64] sm:$0xf] %vm1390, %v1293
        %1417 = vst.msk [vmem:[%s172 + $0x68] sm:$0xf] %vm1390, %v1294
        %1418 = vst.msk [vmem:[%s172 + $0x6c] sm:$0xf] %vm1390, %v1295
        %1419 = vst.msk [vmem:[%s172 + $0x70] sm:$0xf] %vm1390, %v1296
        %1420 = vst.msk [vmem:[%s172 + $0x74] sm:$0xf] %vm1390, %v1297
        %1421 = vst.msk [vmem:[%s172 + $0x78] sm:$0xf] %vm1390, %v1298
        %1422 = vst.msk [vmem:[%s172 + $0x7c] sm:$0xf] %vm1390, %v1299
        %1423 = vst.msk [vmem:[%s172 + $0x80] sm:$0xf] %vm1390, %v1300
        %1424 = vst.msk [vmem:[%s172 + $0x84] sm:$0xf] %vm1390, %v1301
        %1425 = vst.msk [vmem:[%s172 + $0x88] sm:$0xf] %vm1390, %v1302
        %1426 = vst.msk [vmem:[%s172 + $0x8c] sm:$0xf] %vm1390, %v1303
        %1427 = vst.msk [vmem:[%s172 + $0x90] sm:$0xf] %vm1390, %v1304
        %1428 = vst.msk [vmem:[%s172 + $0x94] sm:$0xf] %vm1390, %v1305
        %1429 = vst.msk [vmem:[%s172 + $0x98] sm:$0xf] %vm1390, %v1306
        %1430 = vst.msk [vmem:[%s172 + $0x9c] sm:$0xf] %vm1390, %v1307
        %1431 = vst.msk [vmem:[%s172 + $0xa0] sm:$0xf] %vm1390, %v1308
        %1432 = vst.msk [vmem:[%s172 + $0xa4] sm:$0xf] %vm1390, %v1309
        %1433 = vst.msk [vmem:[%s172 + $0xa8] sm:$0xf] %vm1390, %v1310
        %1434 = vst.msk [vmem:[%s172 + $0xac] sm:$0xf] %vm1390, %v1311
        %1435 = vst.msk [vmem:[%s172 + $0xb0] sm:$0xf] %vm1390, %v1312
        %1436 = vst.msk [vmem:[%s172 + $0xb4] sm:$0xf] %vm1390, %v1313
        %1437 = vst.msk [vmem:[%s172 + $0xb8] sm:$0xf] %vm1390, %v1314
        %1438 = vst.msk [vmem:[%s172 + $0xbc] sm:$0xf] %vm1390, %v1315
        %1439 = vst.msk [vmem:[%s172 + $0xc0] sm:$0xf] %vm1390, %v1316
        %1440 = vst.msk [vmem:[%s172 + $0xc4] sm:$0xf] %vm1390, %v1317
        %1441 = vst.msk [vmem:[%s172 + $0xc8] sm:$0xf] %vm1390, %v1318
        %1442 = vst.msk [vmem:[%s172 + $0xcc] sm:$0xf] %vm1390, %v1319
        %1443 = vst.msk [vmem:[%s172 + $0xd0] sm:$0xf] %vm1390, %v1320
        %1444 = vst.msk [vmem:[%s172 + $0xd4] sm:$0xf] %vm1390, %v1321
        %1445 = vst.msk [vmem:[%s172 + $0xd8] sm:$0xf] %vm1390, %v1322
        %1446 = vst.msk [vmem:[%s172 + $0xdc] sm:$0xf] %vm1390, %v1323
        %1447 = vst.msk [vmem:[%s172 + $0xe0] sm:$0xf] %vm1390, %v1324
        %1448 = vst.msk [vmem:[%s172 + $0xe4] sm:$0xf] %vm1390, %v1325
        %1449 = vst.msk [vmem:[%s172 + $0xe8] sm:$0xf] %vm1390, %v1326
        %1450 = vst.msk [vmem:[%s172 + $0xec] sm:$0xf] %vm1390, %v1327
        %1451 = vst.msk [vmem:[%s172 + $0xf0] sm:$0xf] %vm1390, %v1328
        %1452 = vst.msk [vmem:[%s172 + $0xf4] sm:$0xf] %vm1390, %v1329
        %1453 = vst.msk [vmem:[%s172 + $0xf8] sm:$0xf] %vm1390, %v1330
        %1454 = vst.msk [vmem:[%s172 + $0xfc] sm:$0xf] %vm1390, %v1331
        %1455 = vst.msk [vmem:[%s172 + $0x100] sm:$0xf] %vm1390, %v1332
        %1456 = vst.msk [vmem:[%s172 + $0x104] sm:$0xf] %vm1390, %v1333
        %1457 = vst.msk [vmem:[%s172 + $0x108] sm:$0xf] %vm1390, %v1334
        %1458 = vst.msk [vmem:[%s172 + $0x10c] sm:$0xf] %vm1390, %v1335
        %1459 = vst.msk [vmem:[%s172 + $0x110] sm:$0xf] %vm1390, %v1336
        %1460 = vst.msk [vmem:[%s172 + $0x114] sm:$0xf] %vm1390, %v1337
        %1461 = vst.msk [vmem:[%s172 + $0x118] sm:$0xf] %vm1390, %v1338
        %1462 = vst.msk [vmem:[%s172 + $0x11c] sm:$0xf] %vm1390, %v1339
        %1463 = vst.msk [vmem:[%s172 + $0x120] sm:$0xf] %vm1390, %v1340
        %1464 = vst.msk [vmem:[%s172 + $0x124] sm:$0xf] %vm1390, %v1341
        %1465 = vst.msk [vmem:[%s172 + $0x128] sm:$0xf] %vm1390, %v1342
        %1466 = vst.msk [vmem:[%s172 + $0x12c] sm:$0xf] %vm1390, %v1343
        %1467 = vst.msk [vmem:[%s172 + $0x130] sm:$0xf] %vm1390, %v1344
        %1468 = vst.msk [vmem:[%s172 + $0x134] sm:$0xf] %vm1390, %v1345
        %1469 = vst.msk [vmem:[%s172 + $0x138] sm:$0xf] %vm1390, %v1346
        %1470 = vst.msk [vmem:[%s172 + $0x13c] sm:$0xf] %vm1390, %v1347
        %1471 = vst.msk [vmem:[%s172 + $0x140] sm:$0xf] %vm1390, %v1348
        %1472 = vst.msk [vmem:[%s172 + $0x144] sm:$0xf] %vm1390, %v1349
        %1473 = vst.msk [vmem:[%s172 + $0x148] sm:$0xf] %vm1390, %v1350
        %1474 = vst.msk [vmem:[%s172 + $0x14c] sm:$0xf] %vm1390, %v1351
        %1475 = vst.msk [vmem:[%s172 + $0x150] sm:$0xf] %vm1390, %v1352
        %1476 = vst.msk [vmem:[%s172 + $0x154] sm:$0xf] %vm1390, %v1353
        %1477 = vst.msk [vmem:[%s172 + $0x158] sm:$0xf] %vm1390, %v1354
        %1478 = vst.msk [vmem:[%s172 + $0x15c] sm:$0xf] %vm1390, %v1355
        %1479 = vst.msk [vmem:[%s172 + $0x160] sm:$0xf] %vm1390, %v1356
        %1480 = vst.msk [vmem:[%s172 + $0x164] sm:$0xf] %vm1390, %v1357
        %1481 = vst.msk [vmem:[%s172 + $0x168] sm:$0xf] %vm1390, %v1358
        %1482 = vst.msk [vmem:[%s172 + $0x16c] sm:$0xf] %vm1390, %v1359
        %1483 = vst.msk [vmem:[%s172 + $0x170] sm:$0xf] %vm1390, %v1360
        %1484 = vst.msk [vmem:[%s172 + $0x174] sm:$0xf] %vm1390, %v1361
        %1485 = vst.msk [vmem:[%s172 + $0x178] sm:$0xf] %vm1390, %v1362
        %1486 = vst.msk [vmem:[%s172 + $0x17c] sm:$0xf] %vm1390, %v1363
        %1487 = vst.msk [vmem:[%s172 + $0x180] sm:$0xf] %vm1390, %v1364
        %1488 = vst.msk [vmem:[%s172 + $0x184] sm:$0xf] %vm1390, %v1365
        %1489 = vst.msk [vmem:[%s172 + $0x188] sm:$0xf] %vm1390, %v1366
        %1490 = vst.msk [vmem:[%s172 + $0x18c] sm:$0xf] %vm1390, %v1367
        %1491 = vst.msk [vmem:[%s172 + $0x190] sm:$0xf] %vm1390, %v1368
        %1492 = vst.msk [vmem:[%s172 + $0x194] sm:$0xf] %vm1390, %v1369
        %1493 = vst.msk [vmem:[%s172 + $0x198] sm:$0xf] %vm1390, %v1370
        %1494 = vst.msk [vmem:[%s172 + $0x19c] sm:$0xf] %vm1390, %v1371
        %1495 = vst.msk [vmem:[%s172 + $0x1a0] sm:$0xf] %vm1390, %v1372
        %1496 = vst.msk [vmem:[%s172 + $0x1a4] sm:$0xf] %vm1390, %v1373
        %1497 = vst.msk [vmem:[%s172 + $0x1a8] sm:$0xf] %vm1390, %v1374
        %1498 = vst.msk [vmem:[%s172 + $0x1ac] sm:$0xf] %vm1390, %v1375
        %1499 = vst.msk [vmem:[%s172 + $0x1b0] sm:$0xf] %vm1390, %v1376
        %1500 = vst.msk [vmem:[%s172 + $0x1b4] sm:$0xf] %vm1390, %v1377
        %1501 = vst.msk [vmem:[%s172 + $0x1b8] sm:$0xf] %vm1390, %v1378
        %1502 = vst.msk [vmem:[%s172 + $0x1bc] sm:$0xf] %vm1390, %v1379
        %1503 = vst.msk [vmem:[%s172 + $0x1c0] sm:$0xf] %vm1390, %v1380
        %1504 = vst.msk [vmem:[%s172 + $0x1c4] sm:$0xf] %vm1390, %v1381
        %1505 = vst.msk [vmem:[%s172 + $0x1c8] sm:$0xf] %vm1390, %v1382
        %1506 = vst.msk [vmem:[%s172 + $0x1cc] sm:$0xf] %vm1390, %v1383
        %1507 = vst.msk [vmem:[%s172 + $0x1d0] sm:$0xf] %vm1390, %v1384
        %1508 = vst.msk [vmem:[%s172 + $0x1d4] sm:$0xf] %vm1390, %v1385
        %1509 = vst.msk [vmem:[%s172 + $0x1d8] sm:$0xf] %vm1390, %v1386
        %1510 = vst.msk [vmem:[%s172 + $0x1dc] sm:$0xf] %vm1390, %v1387
        %1511 = vst.msk [vmem:[%s172 + $0x1e0] sm:$0xf] %vm1390, %v1388
        %1512 = vst.msk [vmem:[%s172 + $0x1e4] sm:$0xf] %vm1390, %v1389
        %s1513 = sand.u32 %s90, 1
        %s1514 = sand.u32 %s90, 1
        %s1515 = smul.addr %s1514, 488
        %s1516 = scalar_lea.vmem [#allocation2], %s1515
        // Predicated region
        $region33: #{encoder_forward.5} parent=31 // pred_check
          %p1517 = pneg %p100
        $region34: #{encoder_forward.5} parent=31 // pred_check_branch
          %1519 = sbr.rel (%p1517) target = $region36
        $region35: #{encoder_forward.5} parent=31 // pred_region
          %s1520 = smul.u32 122, %s14
          %s1521 = ssub.s32 241, %s1520
          %p1522 = scmp.lt.s32.totalorder %s1521, 122
          %s1523 = scalar_select %p1522, %s1521, 122
          %s1524 = smul.u32 4, %s1523
          %p1525 = scmp.ne.s32.totalorder 0, %s1524
          %s1526 = smul.addr %s1520, 4
          %s1527 = scalar_lea.vmem %s3, %s1526
          // Predicated region
          $region37: #{encoder_forward.5} parent=35 // pred_check
            %p1528 = pneg %p1525
          $region38: #{encoder_forward.5} parent=35 // pred_check_branch
            %1530 = sbr.rel (%p1528) target = $region40
          $region39: #{encoder_forward.5} parent=35 // pred_region
            // Predicated region
            $region41: #{encoder_forward.5} parent=39 // pred_check
              _
            $region42: #{encoder_forward.5} parent=39 // pred_check_branch
              %1532 = sbr.rel target = $region44
            $region43: #{encoder_forward.5} parent=39 // pred_region
              // Predicated region
              $region63: #{encoder_forward.5} parent=43 // pred_check
                _
              $region64: #{encoder_forward.5} parent=43 // pred_check_branch
                %1644 = sbr.rel (0) target = $region66
              $region65: #{encoder_forward.5} parent=43 // pred_region
                %s1646 = ssub.s32 16, 1
                %s1647 = sshrl.u32 %s1523, 5
                // While loop
                $region67: #{encoder_forward.5} parent=65 // loop_pre_header
                  _
                $region68: #{encoder_forward.5} parent=65 // loop_header
                  %s1649 = sphi 0, %s1651
                  %p1650 = scmp.ge.s32.totalorder %s1649, %s1647
                  %s1654 = sphi 0, %s1723
                  %s1655 = sphi %s1516, %s1726
                  %s1656 = sphi %s1527, %s1727
                $region69: #{encoder_forward.5} parent=65 // loop_header_branch
                  %1653 = sbr.rel (%p1650) target = $region73
                $region70: #{encoder_forward.5} parent=65 // loop_body
                  %v1657 = vld [vmem:[%s1655] sm:%s1646]
                  %1658 = vst [vmem:[%s1656] sm:%s1646] %v1657
                  %v1659 = vld [vmem:[%s1655 + $0x4] sm:%s1646]
                  %1660 = vst [vmem:[%s1656 + $0x4] sm:%s1646] %v1659
                  %v1661 = vld [vmem:[%s1655 + $0x8] sm:%s1646]
                  %1662 = vst [vmem:[%s1656 + $0x8] sm:%s1646] %v1661
                  %v1663 = vld [vmem:[%s1655 + $0xc] sm:%s1646]
                  %1664 = vst [vmem:[%s1656 + $0xc] sm:%s1646] %v1663
                  %v1665 = vld [vmem:[%s1655 + $0x10] sm:%s1646]
                  %1666 = vst [vmem:[%s1656 + $0x10] sm:%s1646] %v1665
                  %v1667 = vld [vmem:[%s1655 + $0x14] sm:%s1646]
                  %1668 = vst [vmem:[%s1656 + $0x14] sm:%s1646] %v1667
                  %v1669 = vld [vmem:[%s1655 + $0x18] sm:%s1646]
                  %1670 = vst [vmem:[%s1656 + $0x18] sm:%s1646] %v1669
                  %v1671 = vld [vmem:[%s1655 + $0x1c] sm:%s1646]
                  %1672 = vst [vmem:[%s1656 + $0x1c] sm:%s1646] %v1671
                  %v1673 = vld [vmem:[%s1655 + $0x20] sm:%s1646]
                  %1674 = vst [vmem:[%s1656 + $0x20] sm:%s1646] %v1673
                  %v1675 = vld [vmem:[%s1655 + $0x24] sm:%s1646]
                  %1676 = vst [vmem:[%s1656 + $0x24] sm:%s1646] %v1675
                  %v1677 = vld [vmem:[%s1655 + $0x28] sm:%s1646]
                  %1678 = vst [vmem:[%s1656 + $0x28] sm:%s1646] %v1677
                  %v1679 = vld [vmem:[%s1655 + $0x2c] sm:%s1646]
                  %1680 = vst [vmem:[%s1656 + $0x2c] sm:%s1646] %v1679
                  %v1681 = vld [vmem:[%s1655 + $0x30] sm:%s1646]
                  %1682 = vst [vmem:[%s1656 + $0x30] sm:%s1646] %v1681
                  %v1683 = vld [vmem:[%s1655 + $0x34] sm:%s1646]
                  %1684 = vst [vmem:[%s1656 + $0x34] sm:%s1646] %v1683
                  %v1685 = vld [vmem:[%s1655 + $0x38] sm:%s1646]
                  %1686 = vst [vmem:[%s1656 + $0x38] sm:%s1646] %v1685
                  %v1687 = vld [vmem:[%s1655 + $0x3c] sm:%s1646]
                  %1688 = vst [vmem:[%s1656 + $0x3c] sm:%s1646] %v1687
                  %v1689 = vld [vmem:[%s1655 + $0x40] sm:%s1646]
                  %1690 = vst [vmem:[%s1656 + $0x40] sm:%s1646] %v1689
                  %v1691 = vld [vmem:[%s1655 + $0x44] sm:%s1646]
                  %1692 = vst [vmem:[%s1656 + $0x44] sm:%s1646] %v1691
                  %v1693 = vld [vmem:[%s1655 + $0x48] sm:%s1646]
                  %1694 = vst [vmem:[%s1656 + $0x48] sm:%s1646] %v1693
                  %v1695 = vld [vmem:[%s1655 + $0x4c] sm:%s1646]
                  %1696 = vst [vmem:[%s1656 + $0x4c] sm:%s1646] %v1695
                  %v1697 = vld [vmem:[%s1655 + $0x50] sm:%s1646]
                  %1698 = vst [vmem:[%s1656 + $0x50] sm:%s1646] %v1697
                  %v1699 = vld [vmem:[%s1655 + $0x54] sm:%s1646]
                  %1700 = vst [vmem:[%s1656 + $0x54] sm:%s1646] %v1699
                  %v1701 = vld [vmem:[%s1655 + $0x58] sm:%s1646]
                  %1702 = vst [vmem:[%s1656 + $0x58] sm:%s1646] %v1701
                  %v1703 = vld [vmem:[%s1655 + $0x5c] sm:%s1646]
                  %1704 = vst [vmem:[%s1656 + $0x5c] sm:%s1646] %v1703
                  %v1705 = vld [vmem:[%s1655 + $0x60] sm:%s1646]
                  %1706 = vst [vmem:[%s1656 + $0x60] sm:%s1646] %v1705
                  %v1707 = vld [vmem:[%s1655 + $0x64] sm:%s1646]
                  %1708 = vst [vmem:[%s1656 + $0x64] sm:%s1646] %v1707
                  %v1709 = vld [vmem:[%s1655 + $0x68] sm:%s1646]
                  %1710 = vst [vmem:[%s1656 + $0x68] sm:%s1646] %v1709
                  %v1711 = vld [vmem:[%s1655 + $0x6c] sm:%s1646]
                  %1712 = vst [vmem:[%s1656 + $0x6c] sm:%s1646] %v1711
                  %v1713 = vld [vmem:[%s1655 + $0x70] sm:%s1646]
                  %1714 = vst [vmem:[%s1656 + $0x70] sm:%s1646] %v1713
                  %v1715 = vld [vmem:[%s1655 + $0x74] sm:%s1646]
                  %1716 = vst [vmem:[%s1656 + $0x74] sm:%s1646] %v1715
                  %v1717 = vld [vmem:[%s1655 + $0x78] sm:%s1646]
                  %1718 = vst [vmem:[%s1656 + $0x78] sm:%s1646] %v1717
                  %v1719 = vld [vmem:[%s1655 + $0x7c] sm:%s1646]
                  %1720 = vst [vmem:[%s1656 + $0x7c] sm:%s1646] %v1719
                  %s1721 = sadd.s32 1, %s1654
                  %p1722 = scmp.ge.s32.totalorder %s1721, %s1647
                  %s1723 = scalar_select %p1722, 0, %s1721
                  %s1724 = smul.u32 %s1723, 128
                  %s1725 = smul.u32 %s1723, 128
                  %s1726 = scalar_lea.vmem %s1516, %s1724 [#allocation2]
                  %s1727 = scalar_lea.vmem %s1527, %s1725
                $region71: #{encoder_forward.5} parent=65 // loop_footer
                  %s1651 = sadd.s32 %s1649, 1
                $region72: #{encoder_forward.5} parent=65 // loop_footer_branch
                  %1648 = sbr.rel target = $region68
                $region73: #{encoder_forward.5} parent=65 // loop_exit
                  _
                %s1728 = sshrl.u32 %s1523, 5
                %s1729 = sand.u32 %s1523, 31
                %s1730 = smul.u32 %s1728, 32
                %s1731 = smul.u32 4, %s1730
                %s1732 = scalar_lea.vmem %s1516, %s1731 [#allocation2]
                %s1733 = smul.u32 4, %s1730
                %s1734 = scalar_lea.vmem %s1527, %s1733
                // While loop
                $region74: #{encoder_forward.5} parent=65 // loop_pre_header
                  _
                $region75: #{encoder_forward.5} parent=65 // loop_header
                  %s1736 = sphi 0, %s1738
                  %p1737 = scmp.ge.s32.totalorder %s1736, %s1729
                  %s1741 = sphi 0, %s1748
                  %s1742 = sphi %s1732, %s1751
                  %s1743 = sphi %s1734, %s1752
                $region76: #{encoder_forward.5} parent=65 // loop_header_branch
                  %1740 = sbr.rel (%p1737) target = $region80
                $region77: #{encoder_forward.5} parent=65 // loop_body
                  %v1744 = vld [vmem:[%s1742] sm:%s1646]
                  %1745 = vst [vmem:[%s1743] sm:%s1646] %v1744
                  %s1746 = sadd.s32 1, %s1741
                  %p1747 = scmp.ge.s32.totalorder %s1746, %s1729
                  %s1748 = scalar_select %p1747, 0, %s1746
                  %s1749 = smul.u32 %s1748, 4
                  %s1750 = smul.u32 %s1748, 4
                  %s1751 = scalar_lea.vmem %s1732, %s1749 [#allocation2]
                  %s1752 = scalar_lea.vmem %s1734, %s1750
                $region78: #{encoder_forward.5} parent=65 // loop_footer
                  %s1738 = sadd.s32 %s1736, 1
                $region79: #{encoder_forward.5} parent=65 // loop_footer_branch
                  %1735 = sbr.rel target = $region75
                $region80: #{encoder_forward.5} parent=65 // loop_exit
                  _
              $region66: #{encoder_forward.5} parent=43 // pred_fallthru
                _
            $region44: #{encoder_forward.5} parent=39 // pred_fallthru
              _
            // Predicated region
            $region45: #{encoder_forward.5} parent=39 // pred_check
              _
            $region46: #{encoder_forward.5} parent=39 // pred_check_branch
              %1534 = sbr.rel (0) target = $region48
            $region47: #{encoder_forward.5} parent=39 // pred_region
              %s1536 = ssub.s32 16, 1
              %s1537 = sshrl.u32 %s1523, 5
              // While loop
              $region49: #{encoder_forward.5} parent=47 // loop_pre_header
                _
              $region50: #{encoder_forward.5} parent=47 // loop_header
                %s1539 = sphi 0, %s1541
                %p1540 = scmp.ge.s32.totalorder %s1539, %s1537
                %s1544 = sphi 0, %s1613
                %s1545 = sphi %s1516, %s1616
                %s1546 = sphi %s1527, %s1617
              $region51: #{encoder_forward.5} parent=47 // loop_header_branch
                %1543 = sbr.rel (%p1540) target = $region55
              $region52: #{encoder_forward.5} parent=47 // loop_body
                %v1547 = vld [vmem:[%s1545] sm:%s1536]
                %1548 = vst [vmem:[%s1546] sm:%s1536] %v1547
                %v1549 = vld [vmem:[%s1545 + $0x4] sm:%s1536]
                %1550 = vst [vmem:[%s1546 + $0x4] sm:%s1536] %v1549
                %v1551 = vld [vmem:[%s1545 + $0x8] sm:%s1536]
                %1552 = vst [vmem:[%s1546 + $0x8] sm:%s1536] %v1551
                %v1553 = vld [vmem:[%s1545 + $0xc] sm:%s1536]
                %1554 = vst [vmem:[%s1546 + $0xc] sm:%s1536] %v1553
                %v1555 = vld [vmem:[%s1545 + $0x10] sm:%s1536]
                %1556 = vst [vmem:[%s1546 + $0x10] sm:%s1536] %v1555
                %v1557 = vld [vmem:[%s1545 + $0x14] sm:%s1536]
                %1558 = vst [vmem:[%s1546 + $0x14] sm:%s1536] %v1557
                %v1559 = vld [vmem:[%s1545 + $0x18] sm:%s1536]
                %1560 = vst [vmem:[%s1546 + $0x18] sm:%s1536] %v1559
                %v1561 = vld [vmem:[%s1545 + $0x1c] sm:%s1536]
                %1562 = vst [vmem:[%s1546 + $0x1c] sm:%s1536] %v1561
                %v1563 = vld [vmem:[%s1545 + $0x20] sm:%s1536]
                %1564 = vst [vmem:[%s1546 + $0x20] sm:%s1536] %v1563
                %v1565 = vld [vmem:[%s1545 + $0x24] sm:%s1536]
                %1566 = vst [vmem:[%s1546 + $0x24] sm:%s1536] %v1565
                %v1567 = vld [vmem:[%s1545 + $0x28] sm:%s1536]
                %1568 = vst [vmem:[%s1546 + $0x28] sm:%s1536] %v1567
                %v1569 = vld [vmem:[%s1545 + $0x2c] sm:%s1536]
                %1570 = vst [vmem:[%s1546 + $0x2c] sm:%s1536] %v1569
                %v1571 = vld [vmem:[%s1545 + $0x30] sm:%s1536]
                %1572 = vst [vmem:[%s1546 + $0x30] sm:%s1536] %v1571
                %v1573 = vld [vmem:[%s1545 + $0x34] sm:%s1536]
                %1574 = vst [vmem:[%s1546 + $0x34] sm:%s1536] %v1573
                %v1575 = vld [vmem:[%s1545 + $0x38] sm:%s1536]
                %1576 = vst [vmem:[%s1546 + $0x38] sm:%s1536] %v1575
                %v1577 = vld [vmem:[%s1545 + $0x3c] sm:%s1536]
                %1578 = vst [vmem:[%s1546 + $0x3c] sm:%s1536] %v1577
                %v1579 = vld [vmem:[%s1545 + $0x40] sm:%s1536]
                %1580 = vst [vmem:[%s1546 + $0x40] sm:%s1536] %v1579
                %v1581 = vld [vmem:[%s1545 + $0x44] sm:%s1536]
                %1582 = vst [vmem:[%s1546 + $0x44] sm:%s1536] %v1581
                %v1583 = vld [vmem:[%s1545 + $0x48] sm:%s1536]
                %1584 = vst [vmem:[%s1546 + $0x48] sm:%s1536] %v1583
                %v1585 = vld [vmem:[%s1545 + $0x4c] sm:%s1536]
                %1586 = vst [vmem:[%s1546 + $0x4c] sm:%s1536] %v1585
                %v1587 = vld [vmem:[%s1545 + $0x50] sm:%s1536]
                %1588 = vst [vmem:[%s1546 + $0x50] sm:%s1536] %v1587
                %v1589 = vld [vmem:[%s1545 + $0x54] sm:%s1536]
                %1590 = vst [vmem:[%s1546 + $0x54] sm:%s1536] %v1589
                %v1591 = vld [vmem:[%s1545 + $0x58] sm:%s1536]
                %1592 = vst [vmem:[%s1546 + $0x58] sm:%s1536] %v1591
                %v1593 = vld [vmem:[%s1545 + $0x5c] sm:%s1536]
                %1594 = vst [vmem:[%s1546 + $0x5c] sm:%s1536] %v1593
                %v1595 = vld [vmem:[%s1545 + $0x60] sm:%s1536]
                %1596 = vst [vmem:[%s1546 + $0x60] sm:%s1536] %v1595
                %v1597 = vld [vmem:[%s1545 + $0x64] sm:%s1536]
                %1598 = vst [vmem:[%s1546 + $0x64] sm:%s1536] %v1597
                %v1599 = vld [vmem:[%s1545 + $0x68] sm:%s1536]
                %1600 = vst [vmem:[%s1546 + $0x68] sm:%s1536] %v1599
                %v1601 = vld [vmem:[%s1545 + $0x6c] sm:%s1536]
                %1602 = vst [vmem:[%s1546 + $0x6c] sm:%s1536] %v1601
                %v1603 = vld [vmem:[%s1545 + $0x70] sm:%s1536]
                %1604 = vst [vmem:[%s1546 + $0x70] sm:%s1536] %v1603
                %v1605 = vld [vmem:[%s1545 + $0x74] sm:%s1536]
                %1606 = vst [vmem:[%s1546 + $0x74] sm:%s1536] %v1605
                %v1607 = vld [vmem:[%s1545 + $0x78] sm:%s1536]
                %1608 = vst [vmem:[%s1546 + $0x78] sm:%s1536] %v1607
                %v1609 = vld [vmem:[%s1545 + $0x7c] sm:%s1536]
                %1610 = vst [vmem:[%s1546 + $0x7c] sm:%s1536] %v1609
                %s1611 = sadd.s32 1, %s1544
                %p1612 = scmp.ge.s32.totalorder %s1611, %s1537
                %s1613 = scalar_select %p1612, 0, %s1611
                %s1614 = smul.u32 %s1613, 128
                %s1615 = smul.u32 %s1613, 128
                %s1616 = scalar_lea.vmem %s1516, %s1614 [#allocation2]
                %s1617 = scalar_lea.vmem %s1527, %s1615
              $region53: #{encoder_forward.5} parent=47 // loop_footer
                %s1541 = sadd.s32 %s1539, 1
              $region54: #{encoder_forward.5} parent=47 // loop_footer_branch
                %1538 = sbr.rel target = $region50
              $region55: #{encoder_forward.5} parent=47 // loop_exit
                _
              %s1618 = sshrl.u32 %s1523, 5
              %s1619 = sand.u32 %s1523, 31
              %s1620 = smul.u32 %s1618, 32
              %s1621 = smul.u32 4, %s1620
              %s1622 = scalar_lea.vmem %s1516, %s1621 [#allocation2]
              %s1623 = smul.u32 4, %s1620
              %s1624 = scalar_lea.vmem %s1527, %s1623
              // While loop
              $region56: #{encoder_forward.5} parent=47 // loop_pre_header
                _
              $region57: #{encoder_forward.5} parent=47 // loop_header
                %s1626 = sphi 0, %s1628
                %p1627 = scmp.ge.s32.totalorder %s1626, %s1619
                %s1631 = sphi 0, %s1638
                %s1632 = sphi %s1622, %s1641
                %s1633 = sphi %s1624, %s1642
              $region58: #{encoder_forward.5} parent=47 // loop_header_branch
                %1630 = sbr.rel (%p1627) target = $region62
              $region59: #{encoder_forward.5} parent=47 // loop_body
                %v1634 = vld [vmem:[%s1632] sm:%s1536]
                %1635 = vst [vmem:[%s1633] sm:%s1536] %v1634
                %s1636 = sadd.s32 1, %s1631
                %p1637 = scmp.ge.s32.totalorder %s1636, %s1619
                %s1638 = scalar_select %p1637, 0, %s1636
                %s1639 = smul.u32 %s1638, 4
                %s1640 = smul.u32 %s1638, 4
                %s1641 = scalar_lea.vmem %s1622, %s1639 [#allocation2]
                %s1642 = scalar_lea.vmem %s1624, %s1640
              $region60: #{encoder_forward.5} parent=47 // loop_footer
                %s1628 = sadd.s32 %s1626, 1
              $region61: #{encoder_forward.5} parent=47 // loop_footer_branch
                %1625 = sbr.rel target = $region57
              $region62: #{encoder_forward.5} parent=47 // loop_exit
                _
            $region48: #{encoder_forward.5} parent=39 // pred_fallthru
              _
          $region40: #{encoder_forward.5} parent=35 // pred_fallthru
            _
          %1753 = vnop
        $region36: #{encoder_forward.5} parent=31 // pred_fallthru
          _
      $region32: #{encoder_forward.5} parent=5 // pred_fallthru
        _
      %p1754 = scmp.le.s32.totalorder 2, %s9
      // Predicated region
      $region81: #{encoder_forward.5} parent=5 // pred_check
        %p1755 = pneg %p1754
      $region82: #{encoder_forward.5} parent=5 // pred_check_branch
        %1757 = sbr.rel (%p1755) target = $region84
      $region83: #{encoder_forward.5} parent=5 // pred_region
        %s1758 = ssub.s32 %s9, 2
        // Predicated region
        $region85: #{encoder_forward.5} parent=83 // pred_check
          %p1759 = pneg %p106
        $region86: #{encoder_forward.5} parent=83 // pred_check_branch
          %1761 = sbr.rel (%p1759) target = $region88
        $region87: #{encoder_forward.5} parent=83 // pred_region
          %s1762 = sand.u32 %s91, 1
          %s1763 = sand.u32 %s91, 1
          %s1764 = smul.addr %s1763, 488
          %s1765 = scalar_lea.vmem [#allocation2], %s1764
        $region88: #{encoder_forward.5} parent=83 // pred_fallthru
          _
      $region84: #{encoder_forward.5} parent=5 // pred_fallthru
        _
    $region6: #{encoder_forward.5} parent=1 // loop_footer
      %s13 = sadd.s32 1, %s9
    $region7: #{encoder_forward.5} parent=1 // loop_footer_branch
      %8 = sbr.rel target = $region3
    $region8: #{encoder_forward.5} parent=1 // loop_exit
      _

// kernel: encoder_forward.6
$region0: #{encoder_forward.6}
  #allocation0 [shape = 'u32[]', space=smem, size = 0x4, offset = 0x4, fixed_abs, tag = 'smem constant byte address 0x4 - core index']
  #allocation1 [shape = 'u32[72,128]{1,0:T(1,128)}', space=vmem, size = 0x9000, scoped, tag = 'internal scratch']
  %s0 = inlined_call_operand.vmem [shape: bf16[392,512], index: 0, kind: input, shape index: {}]
  %s1 = inlined_call_operand.vmem [shape: bf16[512,32], index: 1, kind: input, shape index: {}]
  %s2 = inlined_call_operand.vmem [shape: f32[1,32], index: 2, kind: input, shape index: {}]
  %s3 = inlined_call_operand.vmem [shape: bf16[392,32], index: 3, kind: output, shape index: {}]
  %s4 = sld [smem:[#allocation0]]
  $region89: #{encoder_forward.6} parent=0
    _
  %s6 = ssub.s32 1, %s4
  %s7 = scalar_select 0, %s6, %s4
  $region1: #{encoder_forward.6} parent=0
    #allocation2 [shape = 'u8[106496]{0}', space=vmem, size = 0x1a000, scoped, tag = 'output window, operand 0']
    loop: start=0, step=1, limit=4
    $region2: #{encoder_forward.6} parent=1 // loop_pre_header
      _
    $region3: #{encoder_forward.6} parent=1 // loop_header
      %s9 = sphi 0, %s13
      %p10 = scmp.ge.s32.totalorder %s9, 4
      %s19 = sphi 0, %s21
      %s22 = sphi 0, %s19
      %s23 = sphi 0, %s22
      %s39 = sphi 0, %s23
      %s43 = sphi 0, %s43
      %s45 = sphi 0, %s43
      %s46 = sphi 0, %s45
      %s60 = sphi 0, %s46
      %s64 = sphi 0, %s64
      %s66 = sphi 0, %s64
      %s67 = sphi 0, %s66
      %s81 = sphi 0, %s67
      %s87 = sphi 0, %s89
      %s90 = sphi 0, %s87
      %s91 = sphi 0, %s90
      %s107 = sphi 0, %s91
    $region4: #{encoder_forward.6} parent=1 // loop_header_branch
      %12 = sbr.rel (%p10) target = $region8
    $region5: #{encoder_forward.6} parent=1 // loop_body
      %s14 = ssub.s32 %s9, 1
      %s15 = ssub.s32 %s9, 2
      %s16 = sadd.s32 %s9, 1
      %s17 = ssub.s32 %s9, %s16
      %p18 = scmp.eq.s32.totalorder %s17, 0
      %s20 = sadd.s32 %s19, 1
      %s21 = scalar_select %p18, %s19, %s20
      %p24 = pneg %p18
      %p25 = scmp.eq.s32.totalorder %s9, 1
      %p26 = por %p24, %p25
      %p27 = scmp.ne.s32.totalorder %s19, %s22
      %p28 = scmp.eq.s32.totalorder %s9, 0
      %p29 = por %p27, %p28
      %p30 = scmp.ne.s32.totalorder %s19, %s22
      %p31 = scmp.eq.s32.totalorder %s14, 1
      %p32 = por %p30, %p31
      %p33 = scmp.ne.s32.totalorder %s22, %s23
      %p34 = scmp.eq.s32.totalorder %s14, 0
      %p35 = por %p33, %p34
      %p36 = scmp.ne.s32.totalorder %s22, %s23
      %p37 = scmp.eq.s32.totalorder %s15, 1
      %p38 = por %p36, %p37
      %p40 = scmp.ne.s32.totalorder %s23, %s39
      %p41 = scmp.eq.s32.totalorder %s15, 0
      %p42 = por %p40, %p41
      %s44 = sadd.s32 %s43, 1
      %p47 = scmp.eq.s32.totalorder %s9, 1
      %p48 = scmp.ne.s32.totalorder %s43, %s45
      %p49 = scmp.eq.s32.totalorder %s9, 0
      %p50 = por %p48, %p49
      %p51 = scmp.ne.s32.totalorder %s43, %s45
      %p52 = scmp.eq.s32.totalorder %s14, 1
      %p53 = por %p51, %p52
      %p54 = scmp.ne.s32.totalorder %s45, %s46
      %p55 = scmp.eq.s32.totalorder %s14, 0
      %p56 = por %p54, %p55
      %p57 = scmp.ne.s32.totalorder %s45, %s46
      %p58 = scmp.eq.s32.totalorder %s15, 1
      %p59 = por %p57, %p58
      %p61 = scmp.ne.s32.totalorder %s46, %s60
      %p62 = scmp.eq.s32.totalorder %s15, 0
      %p63 = por %p61, %p62
      %s65 = sadd.s32 %s64, 1
      %p68 = scmp.eq.s32.totalorder %s9, 1
      %p69 = scmp.ne.s32.totalorder %s64, %s66
      %p70 = scmp.eq.s32.totalorder %s9, 0
      %p71 = por %p69, %p70
      %p72 = scmp.ne.s32.totalorder %s64, %s66
      %p73 = scmp.eq.s32.totalorder %s14, 1
      %p74 = por %p72, %p73
      %p75 = scmp.ne.s32.totalorder %s66, %s67
      %p76 = scmp.eq.s32.totalorder %s14, 0
      %p77 = por %p75, %p76
      %p78 = scmp.ne.s32.totalorder %s66, %s67
      %p79 = scmp.eq.s32.totalorder %s15, 1
      %p80 = por %p78, %p79
      %p82 = scmp.ne.s32.totalorder %s67, %s81
      %p83 = scmp.eq.s32.totalorder %s15, 0
      %p84 = por %p82, %p83
      %s85 = ssub.s32 %s9, %s16
      %p86 = scmp.eq.s32.totalorder %s85, 0
      %s88 = sadd.s32 %s87, 1
      %s89 = scalar_select %p86, %s87, %s88
      %p92 = pneg %p86
      %p93 = scmp.eq.s32.totalorder %s9, 1
      %p94 = por %p92, %p93
      %p95 = scmp.ne.s32.totalorder %s87, %s90
      %p96 = scmp.eq.s32.totalorder %s9, 0
      %p97 = por %p95, %p96
      %p98 = scmp.ne.s32.totalorder %s87, %s90
      %p99 = scmp.eq.s32.totalorder %s14, 1
      %p100 = por %p98, %p99
      %p101 = scmp.ne.s32.totalorder %s90, %s91
      %p102 = scmp.eq.s32.totalorder %s14, 0
      %p103 = por %p101, %p102
      %p104 = scmp.ne.s32.totalorder %s90, %s91
      %p105 = scmp.eq.s32.totalorder %s15, 1
      %p106 = por %p104, %p105
      %p108 = scmp.ne.s32.totalorder %s91, %s107
      %p109 = scmp.eq.s32.totalorder %s15, 0
      %p110 = por %p108, %p109
      %p111 = scmp.le.s32.totalorder 1, %s9
      %p112 = scmp.lt.s32.totalorder %s9, 3
      %p113 = pnand %p111, %p112
      %p114 = pneg %p113
      // Predicated region
      $region9: #{encoder_forward.6} parent=5 // pred_check
        _
      $region10: #{encoder_forward.6} parent=5 // pred_check_branch
        %116 = sbr.rel (%p113) target = $region12
      $region11: #{encoder_forward.6} parent=5 // pred_region
        %s117 = ssub.s32 %s9, 1
        // Predicated region
        $region13: #{encoder_forward.6} parent=11 // pred_check
          %p118 = pneg %p56
        $region14: #{encoder_forward.6} parent=11 // pred_check_branch
          %120 = sbr.rel (%p118) target = $region16
        $region15: #{encoder_forward.6} parent=11 // pred_region
          _
        $region16: #{encoder_forward.6} parent=11 // pred_fallthru
          _
        // Predicated region
        $region17: #{encoder_forward.6} parent=11 // pred_check
          %p121 = pneg %p77
        $region18: #{encoder_forward.6} parent=11 // pred_check_branch
          %123 = sbr.rel (%p121) target = $region20
        $region19: #{encoder_forward.6} parent=11 // pred_region
          _
        $region20: #{encoder_forward.6} parent=11 // pred_fallthru
          _
      $region12: #{encoder_forward.6} parent=5 // pred_fallthru
        _
      %p124 = scmp.lt.s32.totalorder %s9, 2
      // Predicated region
      $region21: #{encoder_forward.6} parent=5 // pred_check
        %p125 = pneg %p124
      $region22: #{encoder_forward.6} parent=5 // pred_check_branch
        %127 = sbr.rel (%p125) target = $region24
      $region23: #{encoder_forward.6} parent=5 // pred_region
        // Predicated region
        $region25: #{encoder_forward.6} parent=23 // pred_check
          %p128 = pneg %p29
        $region26: #{encoder_forward.6} parent=23 // pred_check_branch
          %130 = sbr.rel (%p128) target = $region28
        $region27: #{encoder_forward.6} parent=23 // pred_region
          %s131 = smul.u32 26, %s9
          %s132 = ssub.s32 49, %s131
          %p133 = scmp.lt.s32.totalorder %s132, 26
          %s134 = scalar_select %p133, %s132, 26
          %s135 = smul.u32 4, %s134
          %s136 = smul.u32 %s135, 4
          %p137 = scmp.lt.s32.totalorder %s131, 48
          %s138 = scalar_select %p137, %s131, 48
          %s139 = smul.addr %s138, 4
          %s140 = smul.addr %s139, 4
          %s141 = scalar_lea.vmem %s0, %s140
          %s142 = smul.u32 26, %s9
          %s143 = ssub.s32 49, %s142
          %p144 = scmp.lt.s32.totalorder %s143, 26
          %s145 = scalar_select %p144, %s143, 26
          %s146 = smul.u32 4, %s145
          %s147 = smul.u32 %s146, 4
        $region28: #{encoder_forward.6} parent=23 // pred_fallthru
          _
      $region24: #{encoder_forward.6} parent=5 // pred_fallthru
        _
      %p148 = scmp.le.s32.totalorder 1, %s9
      %p149 = scmp.lt.s32.totalorder %s9, 3
      %p150 = pnand %p148, %p149
      %p151 = pneg %p150
      // Predicated region
      $region29: #{encoder_forward.6} parent=5 // pred_check
        _
      $region30: #{encoder_forward.6} parent=5 // pred_check_branch
        %153 = sbr.rel (%p150) target = $region32
      $region31: #{encoder_forward.6} parent=5 // pred_region
        %s154 = ssub.s32 %s9, 1
        %s155 = smul.u32 26, %s14
        %s156 = ssub.s32 49, %s155
        %p157 = scmp.lt.s32.totalorder %s156, 26
        %s158 = scalar_select %p157, %s156, 26
        %s159 = smul.u32 4, %s158
        %s160 = smul.u32 %s159, 4
        %p161 = scmp.lt.s32.totalorder %s155, 48
        %s162 = scalar_select %p161, %s155, 48
        %s163 = smul.addr %s162, 4
        %s164 = smul.addr %s163, 4
        %s165 = scalar_lea.vmem %s0, %s164
        %p166 = pneg %p35
        %p167 = pneg %p32
        %p168 = pneg %p56
        %p169 = pneg %p53
        %p170 = pneg %p77
        %p171 = pneg %p74
        %p172 = pneg %p103
        %p173 = pneg %p100
        %s174 = sand.u32 %s90, 1
        %s175 = sand.u32 %s90, 1
        %s176 = smul.addr %s175, 104
        %s177 = scalar_lea.vmem [#allocation2], %s176
        %s178 = smul.u32 26, %s14
        %s179 = ssub.s32 49, %s178
        %p180 = scmp.lt.s32.totalorder %s179, 26
        %s181 = scalar_select %p180, %s179, 26
        %s182 = smul.u32 4, %s181
        %s183 = smul.u32 %s182, 4
        %p184 = scmp.lt.s32.totalorder %s178, 48
        %s185 = scalar_select %p184, %s178, 48
        %s186 = smul.addr %s185, 4
        %s187 = smul.addr %s186, 4
        %s188 = scalar_lea.vmem %s0, %s187
        %s189 = smul.u32 26, %s14
        %s190 = ssub.s32 49, %s189
        %p191 = scmp.lt.s32.totalorder %s190, 26
        %s192 = scalar_select %p191, %s190, 26
        %s193 = smul.u32 4, %s192
        %s194 = smul.u32 %s193, 4
        %s195 = smul.u32 26, %s14
        %s196 = ssub.s32 49, %s195
        %p197 = scmp.lt.s32.totalorder %s196, 26
        %s198 = scalar_select %p197, %s196, 26
        %s199 = smul.u32 4, %s198
        %v200 = vld [vmem:[%s188] sm:$0xff]
        %v201 = vld [vmem:[%s188 + $0x8] sm:$0xff]
        %v202 = vld [vmem:[%s188 + $0x10] sm:$0xff]
        %v203 = vld [vmem:[%s188 + $0x18] sm:$0xff]
        %v204 = vld [vmem:[%s188 + $0x20] sm:$0xff]
        %v205 = vld [vmem:[%s188 + $0x28] sm:$0xff]
        %v206 = vld [vmem:[%s188 + $0x30] sm:$0xff]
        %v207 = vld [vmem:[%s188 + $0x38] sm:$0xff]
        %v208 = vld [vmem:[%s188 + $0x40] sm:$0xff]
        %v209 = vld [vmem:[%s188 + $0x48] sm:$0xff]
        %v210 = vld [vmem:[%s188 + $0x50] sm:$0xff]
        %v211 = vld [vmem:[%s188 + $0x58] sm:$0xff]
        %v212 = vld [vmem:[%s188 + $0x60] sm:$0xff]
        %v213 = vld [vmem:[%s188 + $0x68] sm:$0xff]
        %v214 = vld [vmem:[%s188 + $0x70] sm:$0xff]
        %v215 = vld [vmem:[%s188 + $0x78] sm:$0xff]
        %v216 = vld [vmem:[%s188 + $0x80] sm:$0xff]
        %v217 = vld [vmem:[%s188 + $0x88] sm:$0xff]
        %v218 = vld [vmem:[%s188 + $0x90] sm:$0xff]
        %v219 = vld [vmem:[%s188 + $0x98] sm:$0xff]
        %v220 = vld [vmem:[%s188 + $0xa0] sm:$0xff]
        %v221 = vld [vmem:[%s188 + $0xa8] sm:$0xff]
        %v222 = vld [vmem:[%s188 + $0xb0] sm:$0xff]
        %v223 = vld [vmem:[%s188 + $0xb8] sm:$0xff]
        %v224 = vld [vmem:[%s188 + $0xc0] sm:$0xff]
        %v225 = vld [vmem:[%s188 + $0xc8] sm:$0xff]
        %v226 = vld [vmem:[%s188 + $0xd0] sm:$0xff]
        %v227 = vld [vmem:[%s188 + $0xd8] sm:$0xff]
        %v228 = vld [vmem:[%s188 + $0xe0] sm:$0xff]
        %v229 = vld [vmem:[%s188 + $0xe8] sm:$0xff]
        %v230 = vld [vmem:[%s188 + $0xf0] sm:$0xff]
        %v231 = vld [vmem:[%s188 + $0xf8] sm:$0xff]
        %v232 = vld [vmem:[%s188 + $0x100] sm:$0xff]
        %v233 = vld [vmem:[%s188 + $0x108] sm:$0xff]
        %v234 = vld [vmem:[%s188 + $0x110] sm:$0xff]
        %v235 = vld [vmem:[%s188 + $0x118] sm:$0xff]
        %v236 = vld [vmem:[%s188 + $0x120] sm:$0xff]
        %v237 = vld [vmem:[%s188 + $0x128] sm:$0xff]
        %v238 = vld [vmem:[%s188 + $0x130] sm:$0xff]
        %v239 = vld [vmem:[%s188 + $0x138] sm:$0xff]
        %v240 = vld [vmem:[%s188 + $0x140] sm:$0xff]
        %v241 = vld [vmem:[%s188 + $0x148] sm:$0xff]
        %v242 = vld [vmem:[%s188 + $0x150] sm:$0xff]
        %v243 = vld [vmem:[%s188 + $0x158] sm:$0xff]
        %v244 = vld [vmem:[%s188 + $0x160] sm:$0xff]
        %v245 = vld [vmem:[%s188 + $0x168] sm:$0xff]
        %v246 = vld [vmem:[%s188 + $0x170] sm:$0xff]
        %v247 = vld [vmem:[%s188 + $0x178] sm:$0xff]
        %v248 = vld [vmem:[%s188 + $0x180] sm:$0xff]
        %v249 = vld [vmem:[%s188 + $0x188] sm:$0xff]
        %v250 = vld [vmem:[%s188 + $0x190] sm:$0xff]
        %v251 = vld [vmem:[%s188 + $0x198] sm:$0xff]
        %v252 = vld [vmem:[%s1] sm:$0xf]
        %v253 = vld [vmem:[%s1 + $0x4] sm:$0xf]
        %v254 = vld [vmem:[%s1 + $0x8] sm:$0xf]
        %v255 = vld [vmem:[%s1 + $0xc] sm:$0xf]
        %v256 = vld [vmem:[%s1 + $0x10] sm:$0xf]
        %v257 = vld [vmem:[%s1 + $0x14] sm:$0xf]
        %v258 = vld [vmem:[%s1 + $0x18] sm:$0xf]
        %v259 = vld [vmem:[%s1 + $0x1c] sm:$0xf]
        %v260 = vld [vmem:[%s1 + $0x20] sm:$0xf]
        %v261 = vld [vmem:[%s1 + $0x24] sm:$0xf]
        %v262 = vld [vmem:[%s1 + $0x28] sm:$0xf]
        %v263 = vld [vmem:[%s1 + $0x2c] sm:$0xf]
        %v264 = vld [vmem:[%s1 + $0x30] sm:$0xf]
        %v265 = vld [vmem:[%s1 + $0x34] sm:$0xf]
        %v266 = vld [vmem:[%s1 + $0x38] sm:$0xf]
        %v267 = vld [vmem:[%s1 + $0x3c] sm:$0xf]
        %v268 = vld [vmem:[%s1 + $0x40] sm:$0xf]
        %v269 = vld [vmem:[%s1 + $0x44] sm:$0xf]
        %v270 = vld [vmem:[%s1 + $0x48] sm:$0xf]
        %v271 = vld [vmem:[%s1 + $0x4c] sm:$0xf]
        %v272 = vld [vmem:[%s1 + $0x50] sm:$0xf]
        %v273 = vld [vmem:[%s1 + $0x54] sm:$0xf]
        %v274 = vld [vmem:[%s1 + $0x58] sm:$0xf]
        %v275 = vld [vmem:[%s1 + $0x5c] sm:$0xf]
        %v276 = vld [vmem:[%s1 + $0x60] sm:$0xf]
        %v277 = vld [vmem:[%s1 + $0x64] sm:$0xf]
        %v278 = vld [vmem:[%s1 + $0x68] sm:$0xf]
        %v279 = vld [vmem:[%s1 + $0x6c] sm:$0xf]
        %v280 = vld [vmem:[%s1 + $0x70] sm:$0xf]
        %v281 = vld [vmem:[%s1 + $0x74] sm:$0xf]
        %v282 = vld [vmem:[%s1 + $0x78] sm:$0xf]
        %v283 = vld [vmem:[%s1 + $0x7c] sm:$0xf]
        %v284 = vld [vmem:[%s1 + $0x80] sm:$0xf]
        %v285 = vld [vmem:[%s1 + $0x84] sm:$0xf]
        %v286 = vld [vmem:[%s1 + $0x88] sm:$0xf]
        %v287 = vld [vmem:[%s1 + $0x8c] sm:$0xf]
        %v288 = vld [vmem:[%s1 + $0x90] sm:$0xf]
        %v289 = vld [vmem:[%s1 + $0x94] sm:$0xf]
        %v290 = vld [vmem:[%s1 + $0x98] sm:$0xf]
        %v291 = vld [vmem:[%s1 + $0x9c] sm:$0xf]
        %v292 = vld [vmem:[%s1 + $0xa0] sm:$0xf]
        %v293 = vld [vmem:[%s1 + $0xa4] sm:$0xf]
        %v294 = vld [vmem:[%s1 + $0xa8] sm:$0xf]
        %v295 = vld [vmem:[%s1 + $0xac] sm:$0xf]
        %v296 = vld [vmem:[%s1 + $0xb0] sm:$0xf]
        %v297 = vld [vmem:[%s1 + $0xb4] sm:$0xf]
        %v298 = vld [vmem:[%s1 + $0xb8] sm:$0xf]
        %v299 = vld [vmem:[%s1 + $0xbc] sm:$0xf]
        %v300 = vld [vmem:[%s1 + $0xc0] sm:$0xf]
        %v301 = vld [vmem:[%s1 + $0xc4] sm:$0xf]
        %v302 = vld [vmem:[%s1 + $0xc8] sm:$0xf]
        %v303 = vld [vmem:[%s1 + $0xcc] sm:$0xf]
        %v304 = vld [vmem:[%s1 + $0xd0] sm:$0xf]
        %v305 = vld [vmem:[%s1 + $0xd4] sm:$0xf]
        %v306 = vld [vmem:[%s1 + $0xd8] sm:$0xf]
        %v307 = vld [vmem:[%s1 + $0xdc] sm:$0xf]
        %v308 = vld [vmem:[%s1 + $0xe0] sm:$0xf]
        %v309 = vld [vmem:[%s1 + $0xe4] sm:$0xf]
        %v310 = vld [vmem:[%s1 + $0xe8] sm:$0xf]
        %v311 = vld [vmem:[%s1 + $0xec] sm:$0xf]
        %v312 = vld [vmem:[%s1 + $0xf0] sm:$0xf]
        %v313 = vld [vmem:[%s1 + $0xf4] sm:$0xf]
        %v314 = vld [vmem:[%s1 + $0xf8] sm:$0xf]
        %v315 = vld [vmem:[%s1 + $0xfc] sm:$0xf]
        %v316 = vld [vmem:[%s2] sm:$0x1]
        %v318 = vperm.slane %v316, 0
        %v372 = vunpack.c.l.b16 %v200
        %v373 = vunpack.c.h.b16 %v200
        %v374 = vunpack.c.l.b16 %v201
        %v375 = vunpack.c.h.b16 %v201
        %v376 = vunpack.c.l.b16 %v202
        %v377 = vunpack.c.h.b16 %v202
        %v378 = vunpack.c.l.b16 %v203
        %v379 = vunpack.c.h.b16 %v203
        %v380 = vunpack.c.l.b16 %v204
        %v381 = vunpack.c.h.b16 %v204
        %v382 = vunpack.c.l.b16 %v205
        %v383 = vunpack.c.h.b16 %v205
        %v384 = vunpack.c.l.b16 %v206
        %v385 = vunpack.c.h.b16 %v206
        %v386 = vunpack.c.l.b16 %v207
        %v387 = vunpack.c.h.b16 %v207
        %v388 = vunpack.c.l.b16 %v208
        %v389 = vunpack.c.h.b16 %v208
        %v390 = vunpack.c.l.b16 %v209
        %v391 = vunpack.c.h.b16 %v209
        %v392 = vunpack.c.l.b16 %v210
        %v393 = vunpack.c.h.b16 %v210
        %v394 = vunpack.c.l.b16 %v211
        %v395 = vunpack.c.h.b16 %v211
        %v396 = vunpack.c.l.b16 %v212
        %v397 = vunpack.c.h.b16 %v212
        %v398 = vunpack.c.l.b16 %v213
        %v399 = vunpack.c.h.b16 %v213
        %v400 = vunpack.c.l.b16 %v214
        %v401 = vunpack.c.h.b16 %v214
        %v402 = vunpack.c.l.b16 %v215
        %v403 = vunpack.c.h.b16 %v215
        %v404 = vunpack.c.l.b16 %v216
        %v405 = vunpack.c.h.b16 %v216
        %v406 = vunpack.c.l.b16 %v217
        %v407 = vunpack.c.h.b16 %v217
        %v408 = vunpack.c.l.b16 %v218
        %v409 = vunpack.c.h.b16 %v218
        %v410 = vunpack.c.l.b16 %v219
        %v411 = vunpack.c.h.b16 %v219
        %v412 = vunpack.c.l.b16 %v220
        %v413 = vunpack.c.h.b16 %v220
        %v414 = vunpack.c.l.b16 %v221
        %v415 = vunpack.c.h.b16 %v221
        %v416 = vunpack.c.l.b16 %v222
        %v417 = vunpack.c.h.b16 %v222
        %v418 = vunpack.c.l.b16 %v223
        %v419 = vunpack.c.h.b16 %v223
        %v420 = vunpack.c.l.b16 %v224
        %v421 = vunpack.c.h.b16 %v224
        %v422 = vunpack.c.l.b16 %v225
        %v423 = vunpack.c.h.b16 %v225
        %v424 = vunpack.c.l.b16 %v226
        %v425 = vunpack.c.h.b16 %v226
        %v426 = vunpack.c.l.b16 %v227
        %v427 = vunpack.c.h.b16 %v227
        %v428 = vunpack.c.l.b16 %v228
        %v429 = vunpack.c.h.b16 %v228
        %v430 = vunpack.c.l.b16 %v229
        %v431 = vunpack.c.h.b16 %v229
        %v432 = vunpack.c.l.b16 %v230
        %v433 = vunpack.c.h.b16 %v230
        %v434 = vunpack.c.l.b16 %v231
        %v435 = vunpack.c.h.b16 %v231
        %v436 = vunpack.c.l.b16 %v232
        %v437 = vunpack.c.h.b16 %v232
        %v438 = vunpack.c.l.b16 %v233
        %v439 = vunpack.c.h.b16 %v233
        %v440 = vunpack.c.l.b16 %v234
        %v441 = vunpack.c.h.b16 %v234
        %v442 = vunpack.c.l.b16 %v235
        %v443 = vunpack.c.h.b16 %v235
        %v444 = vunpack.c.l.b16 %v236
        %v445 = vunpack.c.h.b16 %v236
        %v446 = vunpack.c.l.b16 %v237
        %v447 = vunpack.c.h.b16 %v237
        %v448 = vunpack.c.l.b16 %v238
        %v449 = vunpack.c.h.b16 %v238
        %v450 = vunpack.c.l.b16 %v239
        %v451 = vunpack.c.h.b16 %v239
        %v452 = vunpack.c.l.b16 %v240
        %v453 = vunpack.c.h.b16 %v240
        %v454 = vunpack.c.l.b16 %v241
        %v455 = vunpack.c.h.b16 %v241
        %v456 = vunpack.c.l.b16 %v242
        %v457 = vunpack.c.h.b16 %v242
        %v458 = vunpack.c.l.b16 %v243
        %v459 = vunpack.c.h.b16 %v243
        %v460 = vunpack.c.l.b16 %v244
        %v461 = vunpack.c.h.b16 %v244
        %v462 = vunpack.c.l.b16 %v245
        %v463 = vunpack.c.h.b16 %v245
        %v464 = vunpack.c.l.b16 %v246
        %v465 = vunpack.c.h.b16 %v246
        %v466 = vunpack.c.l.b16 %v247
        %v467 = vunpack.c.h.b16 %v247
        %v468 = vunpack.c.l.b16 %v248
        %v469 = vunpack.c.h.b16 %v248
        %v470 = vunpack.c.l.b16 %v249
        %v471 = vunpack.c.h.b16 %v249
        %v472 = vunpack.c.l.b16 %v250
        %v473 = vunpack.c.h.b16 %v250
        %v474 = vunpack.c.l.b16 %v251
        %v475 = vunpack.c.h.b16 %v251
        %v476 = vpack.c.b16 %v376, %v372
        %v477 = vpack.c.b16 %v377, %v373
        %v478 = vpack.c.b16 %v378, %v374
        %v479 = vpack.c.b16 %v379, %v375
        %v480 = vpack.c.b16 %v384, %v380
        %v481 = vpack.c.b16 %v385, %v381
        %v482 = vpack.c.b16 %v386, %v382
        %v483 = vpack.c.b16 %v387, %v383
        %v484 = vpack.c.b16 %v392, %v388
        %v485 = vpack.c.b16 %v393, %v389
        %v486 = vpack.c.b16 %v394, %v390
        %v487 = vpack.c.b16 %v395, %v391
        %v488 = vpack.c.b16 %v400, %v396
        %v489 = vpack.c.b16 %v401, %v397
        %v490 = vpack.c.b16 %v402, %v398
        %v491 = vpack.c.b16 %v403, %v399
        %v492 = vpack.c.b16 %v408, %v404
        %v493 = vpack.c.b16 %v409, %v405
        %v494 = vpack.c.b16 %v410, %v406
        %v495 = vpack.c.b16 %v411, %v407
        %v496 = vpack.c.b16 %v416, %v412
        %v497 = vpack.c.b16 %v417, %v413
        %v498 = vpack.c.b16 %v418, %v414
        %v499 = vpack.c.b16 %v419, %v415
        %v500 = vpack.c.b16 %v424, %v420
        %v501 = vpack.c.b16 %v425, %v421
        %v502 = vpack.c.b16 %v426, %v422
        %v503 = vpack.c.b16 %v427, %v423
        %v504 = vpack.c.b16 %v432, %v428
        %v505 = vpack.c.b16 %v433, %v429
        %v506 = vpack.c.b16 %v434, %v430
        %v507 = vpack.c.b16 %v435, %v431
        %v508 = vpack.c.b16 %v440, %v436
        %v509 = vpack.c.b16 %v441, %v437
        %v510 = vpack.c.b16 %v442, %v438
        %v511 = vpack.c.b16 %v443, %v439
        %v512 = vpack.c.b16 %v448, %v444
        %v513 = vpack.c.b16 %v449, %v445
        %v514 = vpack.c.b16 %v450, %v446
        %v515 = vpack.c.b16 %v451, %v447
        %v516 = vpack.c.b16 %v456, %v452
        %v517 = vpack.c.b16 %v457, %v453
        %v518 = vpack.c.b16 %v458, %v454
        %v519 = vpack.c.b16 %v459, %v455
        %v520 = vpack.c.b16 %v464, %v460
        %v521 = vpack.c.b16 %v465, %v461
        %v522 = vpack.c.b16 %v466, %v462
        %v523 = vpack.c.b16 %v467, %v463
        %v524 = vpack.c.b16 %v472, %v468
        %v525 = vpack.c.b16 %v473, %v469
        %v526 = vpack.c.b16 %v474, %v470
        %v527 = vpack.c.b16 %v475, %v471
        %v644 = vunpack.c.l.b16 %v252
        %v645 = vunpack.c.l.b16 %v253
        %v646 = vunpack.c.l.b16 %v254
        %v647 = vunpack.c.l.b16 %v255
        %v648 = vunpack.c.l.b16 %v256
        %v649 = vunpack.c.l.b16 %v257
        %v650 = vunpack.c.l.b16 %v258
        %v651 = vunpack.c.l.b16 %v259
        %v652 = vunpack.c.l.b16 %v260
        %v653 = vunpack.c.l.b16 %v261
        %v654 = vunpack.c.l.b16 %v262
        %v655 = vunpack.c.l.b16 %v263
        %v656 = vunpack.c.l.b16 %v264
        %v657 = vunpack.c.l.b16 %v265
        %v658 = vunpack.c.l.b16 %v266
        %v659 = vunpack.c.l.b16 %v267
        %v660 = vunpack.c.l.b16 %v268
        %v661 = vunpack.c.l.b16 %v269
        %v662 = vunpack.c.l.b16 %v270
        %v663 = vunpack.c.l.b16 %v271
        %v664 = vunpack.c.l.b16 %v272
        %v665 = vunpack.c.l.b16 %v273
        %v666 = vunpack.c.l.b16 %v274
        %v667 = vunpack.c.l.b16 %v275
        %v668 = vunpack.c.l.b16 %v276
        %v669 = vunpack.c.l.b16 %v277
        %v670 = vunpack.c.l.b16 %v278
        %v671 = vunpack.c.l.b16 %v279
        %v672 = vunpack.c.l.b16 %v280
        %v673 = vunpack.c.l.b16 %v281
        %v674 = vunpack.c.l.b16 %v282
        %v675 = vunpack.c.l.b16 %v283
        %v676 = vunpack.c.l.b16 %v284
        %v677 = vunpack.c.l.b16 %v285
        %v678 = vunpack.c.l.b16 %v286
        %v679 = vunpack.c.l.b16 %v287
        %v680 = vunpack.c.l.b16 %v288
        %v681 = vunpack.c.l.b16 %v289
        %v682 = vunpack.c.l.b16 %v290
        %v683 = vunpack.c.l.b16 %v291
        %v684 = vunpack.c.l.b16 %v292
        %v685 = vunpack.c.l.b16 %v293
        %v686 = vunpack.c.l.b16 %v294
        %v687 = vunpack.c.l.b16 %v295
        %v688 = vunpack.c.l.b16 %v296
        %v689 = vunpack.c.l.b16 %v297
        %v690 = vunpack.c.l.b16 %v298
        %v691 = vunpack.c.l.b16 %v299
        %v692 = vunpack.c.l.b16 %v300
        %v693 = vunpack.c.l.b16 %v301
        %v694 = vunpack.c.l.b16 %v302
        %v695 = vunpack.c.l.b16 %v303
        %v696 = vunpack.c.l.b16 %v304
        %v697 = vunpack.c.l.b16 %v305
        %v698 = vunpack.c.l.b16 %v306
        %v699 = vunpack.c.l.b16 %v307
        %v700 = vunpack.c.l.b16 %v308
        %v701 = vunpack.c.l.b16 %v309
        %v702 = vunpack.c.l.b16 %v310
        %v703 = vunpack.c.l.b16 %v311
        %v704 = vunpack.c.l.b16 %v312
        %v705 = vunpack.c.l.b16 %v313
        %v706 = vunpack.c.l.b16 %v314
        %v707 = vunpack.c.l.b16 %v315
        %v708 = vpack.c.b16 %v645, %v644
        %v709 = vpack.c.b16 %v647, %v646
        %v710 = vpack.c.b16 %v649, %v648
        %v711 = vpack.c.b16 %v651, %v650
        %v712 = vpack.c.b16 %v653, %v652
        %v713 = vpack.c.b16 %v655, %v654
        %v714 = vpack.c.b16 %v657, %v656
        %v715 = vpack.c.b16 %v659, %v658
        %v716 = vpack.c.b16 %v661, %v660
        %v717 = vpack.c.b16 %v663, %v662
        %v718 = vpack.c.b16 %v665, %v664
        %v719 = vpack.c.b16 %v667, %v666
        %v720 = vpack.c.b16 %v669, %v668
        %v721 = vpack.c.b16 %v671, %v670
        %v722 = vpack.c.b16 %v673, %v672
        %v723 = vpack.c.b16 %v675, %v674
        %v724 = vpack.c.b16 %v677, %v676
        %v725 = vpack.c.b16 %v679, %v678
        %v726 = vpack.c.b16 %v681, %v680
        %v727 = vpack.c.b16 %v683, %v682
        %v728 = vpack.c.b16 %v685, %v684
        %v729 = vpack.c.b16 %v687, %v686
        %v730 = vpack.c.b16 %v689, %v688
        %v731 = vpack.c.b16 %v691, %v690
        %v732 = vpack.c.b16 %v693, %v692
        %v733 = vpack.c.b16 %v695, %v694
        %v734 = vpack.c.b16 %v697, %v696
        %v735 = vpack.c.b16 %v699, %v698
        %v736 = vpack.c.b16 %v701, %v700
        %v737 = vpack.c.b16 %v703, %v702
        %v738 = vpack.c.b16 %v705, %v704
        %v739 = vpack.c.b16 %v707, %v706
        %772 = vmatpush.bf16.msra.mxu0 %v715
        %773 = vmatpush.bf16.msra.mxu0 %v714
        %774 = vmatpush.bf16.msra.mxu0 %v713
        %775 = vmatpush.bf16.msra.mxu0 %v712
        %776 = vmatpush.bf16.msra.mxu0 %v711
        %777 = vmatpush.bf16.msra.mxu0 %v710
        %778 = vmatpush.bf16.msra.mxu0 %v709
        %779 = vmatpush.bf16.msra.mxu0 %v708
        %780 = vmatmul.bf16.gmra.mxu0 %v476
        %v781 = vpop.f32.mrf.mxu0
        %v782 = vadd.f32 %v318, %v781
        %v783 = vpop.f32.mrf.mxu0
        %v784 = vadd.f32 %v318, %v783
        %785 = vmatmul.bf16.gmra.mxu0 %v480
        %v786 = vpop.f32.mrf.mxu0
        %v787 = vadd.f32 %v318, %v786
        %v788 = vpop.f32.mrf.mxu0
        %v789 = vadd.f32 %v318, %v788
        %790 = vmatmul.bf16.gmra.mxu0 %v484
        %v791 = vpop.f32.mrf.mxu0
        %v792 = vadd.f32 %v318, %v791
        %v793 = vpop.f32.mrf.mxu0
        %v794 = vadd.f32 %v318, %v793
        %795 = vmatmul.bf16.gmra.mxu0 %v488
        %v796 = vpop.f32.mrf.mxu0
        %v797 = vadd.f32 %v318, %v796
        %v798 = vpop.f32.mrf.mxu0
        %v799 = vadd.f32 %v318, %v798
        %800 = vmatmul.bf16.gmra.mxu0 %v492
        %v801 = vpop.f32.mrf.mxu0
        %v802 = vadd.f32 %v318, %v801
        %v803 = vpop.f32.mrf.mxu0
        %v804 = vadd.f32 %v318, %v803
        %805 = vmatmul.bf16.gmra.mxu0 %v496
        %v806 = vpop.f32.mrf.mxu0
        %v807 = vadd.f32 %v318, %v806
        %v808 = vpop.f32.mrf.mxu0
        %v809 = vadd.f32 %v318, %v808
        %810 = vmatmul.bf16.gmra.mxu0 %v500
        %v811 = vpop.f32.mrf.mxu0
        %v812 = vadd.f32 %v318, %v811
        %v813 = vpop.f32.mrf.mxu0
        %v814 = vadd.f32 %v318, %v813
        %815 = vmatmul.bf16.gmra.mxu0 %v504
        %v816 = vpop.f32.mrf.mxu0
        %v817 = vadd.f32 %v318, %v816
        %v818 = vpop.f32.mrf.mxu0
        %v819 = vadd.f32 %v318, %v818
        %820 = vmatmul.bf16.gmra.mxu0 %v508
        %v821 = vpop.f32.mrf.mxu0
        %v822 = vadd.f32 %v318, %v821
        %v823 = vpop.f32.mrf.mxu0
        %v824 = vadd.f32 %v318, %v823
        %825 = vmatmul.bf16.gmra.mxu0 %v512
        %v826 = vpop.f32.mrf.mxu0
        %v827 = vadd.f32 %v318, %v826
        %v828 = vpop.f32.mrf.mxu0
        %v829 = vadd.f32 %v318, %v828
        %830 = vmatmul.bf16.gmra.mxu0 %v516
        %v831 = vpop.f32.mrf.mxu0
        %v832 = vadd.f32 %v318, %v831
        %v833 = vpop.f32.mrf.mxu0
        %v834 = vadd.f32 %v318, %v833
        %835 = vmatmul.bf16.gmra.mxu0 %v520
        %v836 = vpop.f32.mrf.mxu0
        %v837 = vadd.f32 %v318, %v836
        %v838 = vpop.f32.mrf.mxu0
        %v839 = vadd.f32 %v318, %v838
        %840 = vmatmul.bf16.gmra.mxu0 %v524
        %v841 = vpop.f32.mrf.mxu0
        %v842 = vadd.f32 %v318, %v841
        %v843 = vpop.f32.mrf.mxu0
        %v844 = vadd.f32 %v318, %v843
        %845 = vdwg.mxu0
        %846 = vmatpush.bf16.msra.mxu0 %v723
        %847 = vmatpush.bf16.msra.mxu0 %v722
        %848 = vmatpush.bf16.msra.mxu0 %v721
        %849 = vmatpush.bf16.msra.mxu0 %v720
        %850 = vmatpush.bf16.msra.mxu0 %v719
        %851 = vmatpush.bf16.msra.mxu0 %v718
        %852 = vmatpush.bf16.msra.mxu0 %v717
        %853 = vmatpush.bf16.msra.mxu0 %v716
        %854 = vmatmul.bf16.gmra.mxu0 %v477
        %v855 = vpop.f32.mrf.mxu0
        %v856 = vadd.f32 %v782, %v855
        %v857 = vpop.f32.mrf.mxu0
        %v858 = vadd.f32 %v784, %v857
        %859 = vmatmul.bf16.gmra.mxu0 %v481
        %v860 = vpop.f32.mrf.mxu0
        %v861 = vadd.f32 %v787, %v860
        %v862 = vpop.f32.mrf.mxu0
        %v863 = vadd.f32 %v789, %v862
        %864 = vmatmul.bf16.gmra.mxu0 %v485
        %v865 = vpop.f32.mrf.mxu0
        %v866 = vadd.f32 %v792, %v865
        %v867 = vpop.f32.mrf.mxu0
        %v868 = vadd.f32 %v794, %v867
        %869 = vmatmul.bf16.gmra.mxu0 %v489
        %v870 = vpop.f32.mrf.mxu0
        %v871 = vadd.f32 %v797, %v870
        %v872 = vpop.f32.mrf.mxu0
        %v873 = vadd.f32 %v799, %v872
        %874 = vmatmul.bf16.gmra.mxu0 %v493
        %v875 = vpop.f32.mrf.mxu0
        %v876 = vadd.f32 %v802, %v875
        %v877 = vpop.f32.mrf.mxu0
        %v878 = vadd.f32 %v804, %v877
        %879 = vmatmul.bf16.gmra.mxu0 %v497
        %v880 = vpop.f32.mrf.mxu0
        %v881 = vadd.f32 %v807, %v880
        %v882 = vpop.f32.mrf.mxu0
        %v883 = vadd.f32 %v809, %v882
        %884 = vmatmul.bf16.gmra.mxu0 %v501
        %v885 = vpop.f32.mrf.mxu0
        %v886 = vadd.f32 %v812, %v885
        %v887 = vpop.f32.mrf.mxu0
        %v888 = vadd.f32 %v814, %v887
        %889 = vmatmul.bf16.gmra.mxu0 %v505
        %v890 = vpop.f32.mrf.mxu0
        %v891 = vadd.f32 %v817, %v890
        %v892 = vpop.f32.mrf.mxu0
        %v893 = vadd.f32 %v819, %v892
        %894 = vmatmul.bf16.gmra.mxu0 %v509
        %v895 = vpop.f32.mrf.mxu0
        %v896 = vadd.f32 %v822, %v895
        %v897 = vpop.f32.mrf.mxu0
        %v898 = vadd.f32 %v824, %v897
        %899 = vmatmul.bf16.gmra.mxu0 %v513
        %v900 = vpop.f32.mrf.mxu0
        %v901 = vadd.f32 %v827, %v900
        %v902 = vpop.f32.mrf.mxu0
        %v903 = vadd.f32 %v829, %v902
        %904 = vmatmul.bf16.gmra.mxu0 %v517
        %v905 = vpop.f32.mrf.mxu0
        %v906 = vadd.f32 %v832, %v905
        %v907 = vpop.f32.mrf.mxu0
        %v908 = vadd.f32 %v834, %v907
        %909 = vmatmul.bf16.gmra.mxu0 %v521
        %v910 = vpop.f32.mrf.mxu0
        %v911 = vadd.f32 %v837, %v910
        %v912 = vpop.f32.mrf.mxu0
        %v913 = vadd.f32 %v839, %v912
        %914 = vmatmul.bf16.gmra.mxu0 %v525
        %v915 = vpop.f32.mrf.mxu0
        %v916 = vadd.f32 %v842, %v915
        %v917 = vpop.f32.mrf.mxu0
        %v918 = vadd.f32 %v844, %v917
        %919 = vdwg.mxu0
        %920 = vmatpush.bf16.msra.mxu0 %v731
        %921 = vmatpush.bf16.msra.mxu0 %v730
        %922 = vmatpush.bf16.msra.mxu0 %v729
        %923 = vmatpush.bf16.msra.mxu0 %v728
        %924 = vmatpush.bf16.msra.mxu0 %v727
        %925 = vmatpush.bf16.msra.mxu0 %v726
        %926 = vmatpush.bf16.msra.mxu0 %v725
        %927 = vmatpush.bf16.msra.mxu0 %v724
        %928 = vmatmul.bf16.gmra.mxu0 %v478
        %v929 = vpop.f32.mrf.mxu0
        %v930 = vadd.f32 %v856, %v929
        %v931 = vpop.f32.mrf.mxu0
        %v932 = vadd.f32 %v858, %v931
        %933 = vmatmul.bf16.gmra.mxu0 %v482
        %v934 = vpop.f32.mrf.mxu0
        %v935 = vadd.f32 %v861, %v934
        %v936 = vpop.f32.mrf.mxu0
        %v937 = vadd.f32 %v863, %v936
        %938 = vmatmul.bf16.gmra.mxu0 %v486
        %v939 = vpop.f32.mrf.mxu0
        %v940 = vadd.f32 %v866, %v939
        %v941 = vpop.f32.mrf.mxu0
        %v942 = vadd.f32 %v868, %v941
        %943 = vmatmul.bf16.gmra.mxu0 %v490
        %v944 = vpop.f32.mrf.mxu0
        %v945 = vadd.f32 %v871, %v944
        %v946 = vpop.f32.mrf.mxu0
        %v947 = vadd.f32 %v873, %v946
        %948 = vmatmul.bf16.gmra.mxu0 %v494
        %v949 = vpop.f32.mrf.mxu0
        %v950 = vadd.f32 %v876, %v949
        %v951 = vpop.f32.mrf.mxu0
        %v952 = vadd.f32 %v878, %v951
        %953 = vmatmul.bf16.gmra.mxu0 %v498
        %v954 = vpop.f32.mrf.mxu0
        %v955 = vadd.f32 %v881, %v954
        %v956 = vpop.f32.mrf.mxu0
        %v957 = vadd.f32 %v883, %v956
        %958 = vmatmul.bf16.gmra.mxu0 %v502
        %v959 = vpop.f32.mrf.mxu0
        %v960 = vadd.f32 %v886, %v959
        %v961 = vpop.f32.mrf.mxu0
        %v962 = vadd.f32 %v888, %v961
        %963 = vmatmul.bf16.gmra.mxu0 %v506
        %v964 = vpop.f32.mrf.mxu0
        %v965 = vadd.f32 %v891, %v964
        %v966 = vpop.f32.mrf.mxu0
        %v967 = vadd.f32 %v893, %v966
        %968 = vmatmul.bf16.gmra.mxu0 %v510
        %v969 = vpop.f32.mrf.mxu0
        %v970 = vadd.f32 %v896, %v969
        %v971 = vpop.f32.mrf.mxu0
        %v972 = vadd.f32 %v898, %v971
        %973 = vmatmul.bf16.gmra.mxu0 %v514
        %v974 = vpop.f32.mrf.mxu0
        %v975 = vadd.f32 %v901, %v974
        %v976 = vpop.f32.mrf.mxu0
        %v977 = vadd.f32 %v903, %v976
        %978 = vmatmul.bf16.gmra.mxu0 %v518
        %v979 = vpop.f32.mrf.mxu0
        %v980 = vadd.f32 %v906, %v979
        %v981 = vpop.f32.mrf.mxu0
        %v982 = vadd.f32 %v908, %v981
        %983 = vmatmul.bf16.gmra.mxu0 %v522
        %v984 = vpop.f32.mrf.mxu0
        %v985 = vadd.f32 %v911, %v984
        %v986 = vpop.f32.mrf.mxu0
        %v987 = vadd.f32 %v913, %v986
        %988 = vmatmul.bf16.gmra.mxu0 %v526
        %v989 = vpop.f32.mrf.mxu0
        %v990 = vadd.f32 %v916, %v989
        %v991 = vpop.f32.mrf.mxu0
        %v992 = vadd.f32 %v918, %v991
        %993 = vdwg.mxu0
        %994 = vmatpush.bf16.msra.mxu0 %v739
        %995 = vmatpush.bf16.msra.mxu0 %v738
        %996 = vmatpush.bf16.msra.mxu0 %v737
        %997 = vmatpush.bf16.msra.mxu0 %v736
        %998 = vmatpush.bf16.msra.mxu0 %v735
        %999 = vmatpush.bf16.msra.mxu0 %v734
        %1000 = vmatpush.bf16.msra.mxu0 %v733
        %1001 = vmatpush.bf16.msra.mxu0 %v732
        %1002 = vmatmul.bf16.gmra.mxu0 %v479
        %v1003 = vpop.f32.mrf.mxu0
        %v1004 = vadd.f32 %v930, %v1003
        %v1005 = vpop.f32.mrf.mxu0
        %v1006 = vadd.f32 %v932, %v1005
        %1007 = vmatmul.bf16.gmra.mxu0 %v483
        %v1008 = vpop.f32.mrf.mxu0
        %v1009 = vadd.f32 %v935, %v1008
        %v1010 = vpop.f32.mrf.mxu0
        %v1011 = vadd.f32 %v937, %v1010
        %1012 = vmatmul.bf16.gmra.mxu0 %v487
        %v1013 = vpop.f32.mrf.mxu0
        %v1014 = vadd.f32 %v940, %v1013
        %v1015 = vpop.f32.mrf.mxu0
        %v1016 = vadd.f32 %v942, %v1015
        %1017 = vmatmul.bf16.gmra.mxu0 %v491
        %v1018 = vpop.f32.mrf.mxu0
        %v1019 = vadd.f32 %v945, %v1018
        %v1020 = vpop.f32.mrf.mxu0
        %v1021 = vadd.f32 %v947, %v1020
        %1022 = vmatmul.bf16.gmra.mxu0 %v495
        %v1023 = vpop.f32.mrf.mxu0
        %v1024 = vadd.f32 %v950, %v1023
        %v1025 = vpop.f32.mrf.mxu0
        %v1026 = vadd.f32 %v952, %v1025
        %1027 = vmatmul.bf16.gmra.mxu0 %v499
        %v1028 = vpop.f32.mrf.mxu0
        %v1029 = vadd.f32 %v955, %v1028
        %v1030 = vpop.f32.mrf.mxu0
        %v1031 = vadd.f32 %v957, %v1030
        %1032 = vmatmul.bf16.gmra.mxu0 %v503
        %v1033 = vpop.f32.mrf.mxu0
        %v1034 = vadd.f32 %v960, %v1033
        %v1035 = vpop.f32.mrf.mxu0
        %v1036 = vadd.f32 %v962, %v1035
        %1037 = vmatmul.bf16.gmra.mxu0 %v507
        %v1038 = vpop.f32.mrf.mxu0
        %v1039 = vadd.f32 %v965, %v1038
        %v1040 = vpop.f32.mrf.mxu0
        %v1041 = vadd.f32 %v967, %v1040
        %1042 = vmatmul.bf16.gmra.mxu0 %v511
        %v1043 = vpop.f32.mrf.mxu0
        %v1044 = vadd.f32 %v970, %v1043
        %v1045 = vpop.f32.mrf.mxu0
        %v1046 = vadd.f32 %v972, %v1045
        %1047 = vmatmul.bf16.gmra.mxu0 %v515
        %v1048 = vpop.f32.mrf.mxu0
        %v1049 = vadd.f32 %v975, %v1048
        %v1050 = vpop.f32.mrf.mxu0
        %v1051 = vadd.f32 %v977, %v1050
        %1052 = vmatmul.bf16.gmra.mxu0 %v519
        %v1053 = vpop.f32.mrf.mxu0
        %v1054 = vadd.f32 %v980, %v1053
        %v1055 = vpop.f32.mrf.mxu0
        %v1056 = vadd.f32 %v982, %v1055
        %1057 = vmatmul.bf16.gmra.mxu0 %v523
        %v1058 = vpop.f32.mrf.mxu0
        %v1059 = vadd.f32 %v985, %v1058
        %v1060 = vpop.f32.mrf.mxu0
        %v1061 = vadd.f32 %v987, %v1060
        %1062 = vmatmul.bf16.gmra.mxu0 %v527
        %v1063 = vpop.f32.mrf.mxu0
        %v1064 = vadd.f32 %v990, %v1063
        %v1065 = vpop.f32.mrf.mxu0
        %v1066 = vadd.f32 %v992, %v1065
        %1067 = vdwg.mxu0
        %v1068 = vmax.f32 %v1004, 0.0
        %v1069 = vmax.f32 %v1006, 0.0
        %v1070 = vmax.f32 %v1009, 0.0
        %v1071 = vmax.f32 %v1011, 0.0
        %v1072 = vmax.f32 %v1014, 0.0
        %v1073 = vmax.f32 %v1016, 0.0
        %v1074 = vmax.f32 %v1019, 0.0
        %v1075 = vmax.f32 %v1021, 0.0
        %v1076 = vmax.f32 %v1024, 0.0
        %v1077 = vmax.f32 %v1026, 0.0
        %v1078 = vmax.f32 %v1029, 0.0
        %v1079 = vmax.f32 %v1031, 0.0
        %v1080 = vmax.f32 %v1034, 0.0
        %v1081 = vmax.f32 %v1036, 0.0
        %v1082 = vmax.f32 %v1039, 0.0
        %v1083 = vmax.f32 %v1041, 0.0
        %v1084 = vmax.f32 %v1044, 0.0
        %v1085 = vmax.f32 %v1046, 0.0
        %v1086 = vmax.f32 %v1049, 0.0
        %v1087 = vmax.f32 %v1051, 0.0
        %v1088 = vmax.f32 %v1054, 0.0
        %v1089 = vmax.f32 %v1056, 0.0
        %v1090 = vmax.f32 %v1059, 0.0
        %v1091 = vmax.f32 %v1061, 0.0
        %v1092 = vmax.f32 %v1064, 0.0
        %v1093 = vmax.f32 %v1066, 0.0
        %v1094 = vpack.c.bf16 %v1068, %v1068
        %v1095 = vpack.c.bf16 %v1069, %v1069
        %v1096 = vpack.c.bf16 %v1070, %v1070
        %v1097 = vpack.c.bf16 %v1071, %v1071
        %v1098 = vpack.c.bf16 %v1072, %v1072
        %v1099 = vpack.c.bf16 %v1073, %v1073
        %v1100 = vpack.c.bf16 %v1074, %v1074
        %v1101 = vpack.c.bf16 %v1075, %v1075
        %v1102 = vpack.c.bf16 %v1076, %v1076
        %v1103 = vpack.c.bf16 %v1077, %v1077
        %v1104 = vpack.c.bf16 %v1078, %v1078
        %v1105 = vpack.c.bf16 %v1079, %v1079
        %v1106 = vpack.c.bf16 %v1080, %v1080
        %v1107 = vpack.c.bf16 %v1081, %v1081
        %v1108 = vpack.c.bf16 %v1082, %v1082
        %v1109 = vpack.c.bf16 %v1083, %v1083
        %v1110 = vpack.c.bf16 %v1084, %v1084
        %v1111 = vpack.c.bf16 %v1085, %v1085
        %v1112 = vpack.c.bf16 %v1086, %v1086
        %v1113 = vpack.c.bf16 %v1087, %v1087
        %v1114 = vpack.c.bf16 %v1088, %v1088
        %v1115 = vpack.c.bf16 %v1089, %v1089
        %v1116 = vpack.c.bf16 %v1090, %v1090
        %v1117 = vpack.c.bf16 %v1091, %v1091
        %v1118 = vpack.c.bf16 %v1092, %v1092
        %v1119 = vpack.c.bf16 %v1093, %v1093
        %vm1120 = vcmask 257024
        %1121 = vst.msk [vmem:[%s177] sm:$0xf] %vm1120, %v1094
        %1122 = vst.msk [vmem:[%s177 + $0x4] sm:$0xf] %vm1120, %v1095
        %1123 = vst.msk [vmem:[%s177 + $0x8] sm:$0xf] %vm1120, %v1096
        %1124 = vst.msk [vmem:[%s177 + $0xc] sm:$0xf] %vm1120, %v1097
        %1125 = vst.msk [vmem:[%s177 + $0x10] sm:$0xf] %vm1120, %v1098
        %1126 = vst.msk [vmem:[%s177 + $0x14] sm:$0xf] %vm1120, %v1099
        %1127 = vst.msk [vmem:[%s177 + $0x18] sm:$0xf] %vm1120, %v1100
        %1128 = vst.msk [vmem:[%s177 + $0x1c] sm:$0xf] %vm1120, %v1101
        %1129 = vst.msk [vmem:[%s177 + $0x20] sm:$0xf] %vm1120, %v1102
        %1130 = vst.msk [vmem:[%s177 + $0x24] sm:$0xf] %vm1120, %v1103
        %1131 = vst.msk [vmem:[%s177 + $0x28] sm:$0xf] %vm1120, %v1104
        %1132 = vst.msk [vmem:[%s177 + $0x2c] sm:$0xf] %vm1120, %v1105
        %1133 = vst.msk [vmem:[%s177 + $0x30] sm:$0xf] %vm1120, %v1106
        %1134 = vst.msk [vmem:[%s177 + $0x34] sm:$0xf] %vm1120, %v1107
        %1135 = vst.msk [vmem:[%s177 + $0x38] sm:$0xf] %vm1120, %v1108
        %1136 = vst.msk [vmem:[%s177 + $0x3c] sm:$0xf] %vm1120, %v1109
        %1137 = vst.msk [vmem:[%s177 + $0x40] sm:$0xf] %vm1120, %v1110
        %1138 = vst.msk [vmem:[%s177 + $0x44] sm:$0xf] %vm1120, %v1111
        %1139 = vst.msk [vmem:[%s177 + $0x48] sm:$0xf] %vm1120, %v1112
        %1140 = vst.msk [vmem:[%s177 + $0x4c] sm:$0xf] %vm1120, %v1113
        %1141 = vst.msk [vmem:[%s177 + $0x50] sm:$0xf] %vm1120, %v1114
        %1142 = vst.msk [vmem:[%s177 + $0x54] sm:$0xf] %vm1120, %v1115
        %1143 = vst.msk [vmem:[%s177 + $0x58] sm:$0xf] %vm1120, %v1116
        %1144 = vst.msk [vmem:[%s177 + $0x5c] sm:$0xf] %vm1120, %v1117
        %1145 = vst.msk [vmem:[%s177 + $0x60] sm:$0xf] %vm1120, %v1118
        %1146 = vst.msk [vmem:[%s177 + $0x64] sm:$0xf] %vm1120, %v1119
        %s1147 = sand.u32 %s90, 1
        %s1148 = sand.u32 %s90, 1
        %s1149 = smul.addr %s1148, 104
        %s1150 = scalar_lea.vmem [#allocation2], %s1149
        // Predicated region
        $region33: #{encoder_forward.6} parent=31 // pred_check
          %p1151 = pneg %p100
        $region34: #{encoder_forward.6} parent=31 // pred_check_branch
          %1153 = sbr.rel (%p1151) target = $region36
        $region35: #{encoder_forward.6} parent=31 // pred_region
          %s1154 = smul.u32 26, %s14
          %s1155 = ssub.s32 49, %s1154
          %p1156 = scmp.lt.s32.totalorder %s1155, 26
          %s1157 = scalar_select %p1156, %s1155, 26
          %s1158 = smul.u32 4, %s1157
          %p1159 = scmp.ne.s32.totalorder 0, %s1158
          %s1160 = smul.addr %s1154, 4
          %s1161 = scalar_lea.vmem %s3, %s1160
          // Predicated region
          $region37: #{encoder_forward.6} parent=35 // pred_check
            %p1162 = pneg %p1159
          $region38: #{encoder_forward.6} parent=35 // pred_check_branch
            %1164 = sbr.rel (%p1162) target = $region40
          $region39: #{encoder_forward.6} parent=35 // pred_region
            // Predicated region
            $region41: #{encoder_forward.6} parent=39 // pred_check
              _
            $region42: #{encoder_forward.6} parent=39 // pred_check_branch
              %1166 = sbr.rel target = $region44
            $region43: #{encoder_forward.6} parent=39 // pred_region
              // Predicated region
              $region63: #{encoder_forward.6} parent=43 // pred_check
                _
              $region64: #{encoder_forward.6} parent=43 // pred_check_branch
                %1267 = sbr.rel (0) target = $region66
              $region65: #{encoder_forward.6} parent=43 // pred_region
                %s1269 = ssub.s32 16, 1
                %s1270 = sdiv.u32.pop %s1157, 26
                %s1271 = srem.u32.pop %s1157, 26
                // While loop
                $region67: #{encoder_forward.6} parent=65 // loop_pre_header
                  _
                $region68: #{encoder_forward.6} parent=65 // loop_header
                  %s1273 = sphi 0, %s1275
                  %p1274 = scmp.ge.s32.totalorder %s1273, %s1270
                  %s1278 = sphi 0, %s1335
                  %s1279 = sphi %s1150, %s1338
                  %s1280 = sphi %s1161, %s1339
                $region69: #{encoder_forward.6} parent=65 // loop_header_branch
                  %1277 = sbr.rel (%p1274) target = $region73
                $region70: #{encoder_forward.6} parent=65 // loop_body
                  %v1281 = vld [vmem:[%s1279] sm:%s1269]
                  %1282 = vst [vmem:[%s1280] sm:%s1269] %v1281
                  %v1283 = vld [vmem:[%s1279 + $0x4] sm:%s1269]
                  %1284 = vst [vmem:[%s1280 + $0x4] sm:%s1269] %v1283
                  %v1285 = vld [vmem:[%s1279 + $0x8] sm:%s1269]
                  %1286 = vst [vmem:[%s1280 + $0x8] sm:%s1269] %v1285
                  %v1287 = vld [vmem:[%s1279 + $0xc] sm:%s1269]
                  %1288 = vst [vmem:[%s1280 + $0xc] sm:%s1269] %v1287
                  %v1289 = vld [vmem:[%s1279 + $0x10] sm:%s1269]
                  %1290 = vst [vmem:[%s1280 + $0x10] sm:%s1269] %v1289
                  %v1291 = vld [vmem:[%s1279 + $0x14] sm:%s1269]
                  %1292 = vst [vmem:[%s1280 + $0x14] sm:%s1269] %v1291
                  %v1293 = vld [vmem:[%s1279 + $0x18] sm:%s1269]
                  %1294 = vst [vmem:[%s1280 + $0x18] sm:%s1269] %v1293
                  %v1295 = vld [vmem:[%s1279 + $0x1c] sm:%s1269]
                  %1296 = vst [vmem:[%s1280 + $0x1c] sm:%s1269] %v1295
                  %v1297 = vld [vmem:[%s1279 + $0x20] sm:%s1269]
                  %1298 = vst [vmem:[%s1280 + $0x20] sm:%s1269] %v1297
                  %v1299 = vld [vmem:[%s1279 + $0x24] sm:%s1269]
                  %1300 = vst [vmem:[%s1280 + $0x24] sm:%s1269] %v1299
                  %v1301 = vld [vmem:[%s1279 + $0x28] sm:%s1269]
                  %1302 = vst [vmem:[%s1280 + $0x28] sm:%s1269] %v1301
                  %v1303 = vld [vmem:[%s1279 + $0x2c] sm:%s1269]
                  %1304 = vst [vmem:[%s1280 + $0x2c] sm:%s1269] %v1303
                  %v1305 = vld [vmem:[%s1279 + $0x30] sm:%s1269]
                  %1306 = vst [vmem:[%s1280 + $0x30] sm:%s1269] %v1305
                  %v1307 = vld [vmem:[%s1279 + $0x34] sm:%s1269]
                  %1308 = vst [vmem:[%s1280 + $0x34] sm:%s1269] %v1307
                  %v1309 = vld [vmem:[%s1279 + $0x38] sm:%s1269]
                  %1310 = vst [vmem:[%s1280 + $0x38] sm:%s1269] %v1309
                  %v1311 = vld [vmem:[%s1279 + $0x3c] sm:%s1269]
                  %1312 = vst [vmem:[%s1280 + $0x3c] sm:%s1269] %v1311
                  %v1313 = vld [vmem:[%s1279 + $0x40] sm:%s1269]
                  %1314 = vst [vmem:[%s1280 + $0x40] sm:%s1269] %v1313
                  %v1315 = vld [vmem:[%s1279 + $0x44] sm:%s1269]
                  %1316 = vst [vmem:[%s1280 + $0x44] sm:%s1269] %v1315
                  %v1317 = vld [vmem:[%s1279 + $0x48] sm:%s1269]
                  %1318 = vst [vmem:[%s1280 + $0x48] sm:%s1269] %v1317
                  %v1319 = vld [vmem:[%s1279 + $0x4c] sm:%s1269]
                  %1320 = vst [vmem:[%s1280 + $0x4c] sm:%s1269] %v1319
                  %v1321 = vld [vmem:[%s1279 + $0x50] sm:%s1269]
                  %1322 = vst [vmem:[%s1280 + $0x50] sm:%s1269] %v1321
                  %v1323 = vld [vmem:[%s1279 + $0x54] sm:%s1269]
                  %1324 = vst [vmem:[%s1280 + $0x54] sm:%s1269] %v1323
                  %v1325 = vld [vmem:[%s1279 + $0x58] sm:%s1269]
                  %1326 = vst [vmem:[%s1280 + $0x58] sm:%s1269] %v1325
                  %v1327 = vld [vmem:[%s1279 + $0x5c] sm:%s1269]
                  %1328 = vst [vmem:[%s1280 + $0x5c] sm:%s1269] %v1327
                  %v1329 = vld [vmem:[%s1279 + $0x60] sm:%s1269]
                  %1330 = vst [vmem:[%s1280 + $0x60] sm:%s1269] %v1329
                  %v1331 = vld [vmem:[%s1279 + $0x64] sm:%s1269]
                  %1332 = vst [vmem:[%s1280 + $0x64] sm:%s1269] %v1331
                  %s1333 = sadd.s32 1, %s1278
                  %p1334 = scmp.ge.s32.totalorder %s1333, %s1270
                  %s1335 = scalar_select %p1334, 0, %s1333
                  %s1336 = smul.u32 %s1335, 104
                  %s1337 = smul.u32 %s1335, 104
                  %s1338 = scalar_lea.vmem %s1150, %s1336 [#allocation2]
                  %s1339 = scalar_lea.vmem %s1161, %s1337
                $region71: #{encoder_forward.6} parent=65 // loop_footer
                  %s1275 = sadd.s32 %s1273, 1
                $region72: #{encoder_forward.6} parent=65 // loop_footer_branch
                  %1272 = sbr.rel target = $region68
                $region73: #{encoder_forward.6} parent=65 // loop_exit
                  _
                %s1340 = sdiv.u32.pop %s1157, 26
                %s1341 = srem.u32.pop %s1157, 26
                %s1342 = smul.u32 %s1340, 26
                %s1343 = smul.u32 4, %s1342
                %s1344 = scalar_lea.vmem %s1150, %s1343 [#allocation2]
                %s1345 = smul.u32 4, %s1342
                %s1346 = scalar_lea.vmem %s1161, %s1345
                // While loop
                $region74: #{encoder_forward.6} parent=65 // loop_pre_header
                  _
                $region75: #{encoder_forward.6} parent=65 // loop_header
                  %s1348 = sphi 0, %s1350
                  %p1349 = scmp.ge.s32.totalorder %s1348, %s1341
                  %s1353 = sphi 0, %s1360
                  %s1354 = sphi %s1344, %s1363
                  %s1355 = sphi %s1346, %s1364
                $region76: #{encoder_forward.6} parent=65 // loop_header_branch
                  %1352 = sbr.rel (%p1349) target = $region80
                $region77: #{encoder_forward.6} parent=65 // loop_body
                  %v1356 = vld [vmem:[%s1354] sm:%s1269]
                  %1357 = vst [vmem:[%s1355] sm:%s1269] %v1356
                  %s1358 = sadd.s32 1, %s1353
                  %p1359 = scmp.ge.s32.totalorder %s1358, %s1341
                  %s1360 = scalar_select %p1359, 0, %s1358
                  %s1361 = smul.u32 %s1360, 4
                  %s1362 = smul.u32 %s1360, 4
                  %s1363 = scalar_lea.vmem %s1344, %s1361 [#allocation2]
                  %s1364 = scalar_lea.vmem %s1346, %s1362
                $region78: #{encoder_forward.6} parent=65 // loop_footer
                  %s1350 = sadd.s32 %s1348, 1
                $region79: #{encoder_forward.6} parent=65 // loop_footer_branch
                  %1347 = sbr.rel target = $region75
                $region80: #{encoder_forward.6} parent=65 // loop_exit
                  _
              $region66: #{encoder_forward.6} parent=43 // pred_fallthru
                _
            $region44: #{encoder_forward.6} parent=39 // pred_fallthru
              _
            // Predicated region
            $region45: #{encoder_forward.6} parent=39 // pred_check
              _
            $region46: #{encoder_forward.6} parent=39 // pred_check_branch
              %1168 = sbr.rel (0) target = $region48
            $region47: #{encoder_forward.6} parent=39 // pred_region
              %s1170 = ssub.s32 16, 1
              %s1171 = sdiv.u32.pop %s1157, 26
              %s1172 = srem.u32.pop %s1157, 26
              // While loop
              $region49: #{encoder_forward.6} parent=47 // loop_pre_header
                _
              $region50: #{encoder_forward.6} parent=47 // loop_header
                %s1174 = sphi 0, %s1176
                %p1175 = scmp.ge.s32.totalorder %s1174, %s1171
                %s1179 = sphi 0, %s1236
                %s1180 = sphi %s1150, %s1239
                %s1181 = sphi %s1161, %s1240
              $region51: #{encoder_forward.6} parent=47 // loop_header_branch
                %1178 = sbr.rel (%p1175) target = $region55
              $region52: #{encoder_forward.6} parent=47 // loop_body
                %v1182 = vld [vmem:[%s1180] sm:%s1170]
                %1183 = vst [vmem:[%s1181] sm:%s1170] %v1182
                %v1184 = vld [vmem:[%s1180 + $0x4] sm:%s1170]
                %1185 = vst [vmem:[%s1181 + $0x4] sm:%s1170] %v1184
                %v1186 = vld [vmem:[%s1180 + $0x8] sm:%s1170]
                %1187 = vst [vmem:[%s1181 + $0x8] sm:%s1170] %v1186
                %v1188 = vld [vmem:[%s1180 + $0xc] sm:%s1170]
                %1189 = vst [vmem:[%s1181 + $0xc] sm:%s1170] %v1188
                %v1190 = vld [vmem:[%s1180 + $0x10] sm:%s1170]
                %1191 = vst [vmem:[%s1181 + $0x10] sm:%s1170] %v1190
                %v1192 = vld [vmem:[%s1180 + $0x14] sm:%s1170]
                %1193 = vst [vmem:[%s1181 + $0x14] sm:%s1170] %v1192
                %v1194 = vld [vmem:[%s1180 + $0x18] sm:%s1170]
                %1195 = vst [vmem:[%s1181 + $0x18] sm:%s1170] %v1194
                %v1196 = vld [vmem:[%s1180 + $0x1c] sm:%s1170]
                %1197 = vst [vmem:[%s1181 + $0x1c] sm:%s1170] %v1196
                %v1198 = vld [vmem:[%s1180 + $0x20] sm:%s1170]
                %1199 = vst [vmem:[%s1181 + $0x20] sm:%s1170] %v1198
                %v1200 = vld [vmem:[%s1180 + $0x24] sm:%s1170]
                %1201 = vst [vmem:[%s1181 + $0x24] sm:%s1170] %v1200
                %v1202 = vld [vmem:[%s1180 + $0x28] sm:%s1170]
                %1203 = vst [vmem:[%s1181 + $0x28] sm:%s1170] %v1202
                %v1204 = vld [vmem:[%s1180 + $0x2c] sm:%s1170]
                %1205 = vst [vmem:[%s1181 + $0x2c] sm:%s1170] %v1204
                %v1206 = vld [vmem:[%s1180 + $0x30] sm:%s1170]
                %1207 = vst [vmem:[%s1181 + $0x30] sm:%s1170] %v1206
                %v1208 = vld [vmem:[%s1180 + $0x34] sm:%s1170]
                %1209 = vst [vmem:[%s1181 + $0x34] sm:%s1170] %v1208
                %v1210 = vld [vmem:[%s1180 + $0x38] sm:%s1170]
                %1211 = vst [vmem:[%s1181 + $0x38] sm:%s1170] %v1210
                %v1212 = vld [vmem:[%s1180 + $0x3c] sm:%s1170]
                %1213 = vst [vmem:[%s1181 + $0x3c] sm:%s1170] %v1212
                %v1214 = vld [vmem:[%s1180 + $0x40] sm:%s1170]
                %1215 = vst [vmem:[%s1181 + $0x40] sm:%s1170] %v1214
                %v1216 = vld [vmem:[%s1180 + $0x44] sm:%s1170]
                %1217 = vst [vmem:[%s1181 + $0x44] sm:%s1170] %v1216
                %v1218 = vld [vmem:[%s1180 + $0x48] sm:%s1170]
                %1219 = vst [vmem:[%s1181 + $0x48] sm:%s1170] %v1218
                %v1220 = vld [vmem:[%s1180 + $0x4c] sm:%s1170]
                %1221 = vst [vmem:[%s1181 + $0x4c] sm:%s1170] %v1220
                %v1222 = vld [vmem:[%s1180 + $0x50] sm:%s1170]
                %1223 = vst [vmem:[%s1181 + $0x50] sm:%s1170] %v1222
                %v1224 = vld [vmem:[%s1180 + $0x54] sm:%s1170]
                %1225 = vst [vmem:[%s1181 + $0x54] sm:%s1170] %v1224
                %v1226 = vld [vmem:[%s1180 + $0x58] sm:%s1170]
                %1227 = vst [vmem:[%s1181 + $0x58] sm:%s1170] %v1226
                %v1228 = vld [vmem:[%s1180 + $0x5c] sm:%s1170]
                %1229 = vst [vmem:[%s1181 + $0x5c] sm:%s1170] %v1228
                %v1230 = vld [vmem:[%s1180 + $0x60] sm:%s1170]
                %1231 = vst [vmem:[%s1181 + $0x60] sm:%s1170] %v1230
                %v1232 = vld [vmem:[%s1180 + $0x64] sm:%s1170]
                %1233 = vst [vmem:[%s1181 + $0x64] sm:%s1170] %v1232
                %s1234 = sadd.s32 1, %s1179
                %p1235 = scmp.ge.s32.totalorder %s1234, %s1171
                %s1236 = scalar_select %p1235, 0, %s1234
                %s1237 = smul.u32 %s1236, 104
                %s1238 = smul.u32 %s1236, 104
                %s1239 = scalar_lea.vmem %s1150, %s1237 [#allocation2]
                %s1240 = scalar_lea.vmem %s1161, %s1238
              $region53: #{encoder_forward.6} parent=47 // loop_footer
                %s1176 = sadd.s32 %s1174, 1
              $region54: #{encoder_forward.6} parent=47 // loop_footer_branch
                %1173 = sbr.rel target = $region50
              $region55: #{encoder_forward.6} parent=47 // loop_exit
                _
              %s1241 = sdiv.u32.pop %s1157, 26
              %s1242 = srem.u32.pop %s1157, 26
              %s1243 = smul.u32 %s1241, 26
              %s1244 = smul.u32 4, %s1243
              %s1245 = scalar_lea.vmem %s1150, %s1244 [#allocation2]
              %s1246 = smul.u32 4, %s1243
              %s1247 = scalar_lea.vmem %s1161, %s1246
              // While loop
              $region56: #{encoder_forward.6} parent=47 // loop_pre_header
                _
              $region57: #{encoder_forward.6} parent=47 // loop_header
                %s1249 = sphi 0, %s1251
                %p1250 = scmp.ge.s32.totalorder %s1249, %s1242
                %s1254 = sphi 0, %s1261
                %s1255 = sphi %s1245, %s1264
                %s1256 = sphi %s1247, %s1265
              $region58: #{encoder_forward.6} parent=47 // loop_header_branch
                %1253 = sbr.rel (%p1250) target = $region62
              $region59: #{encoder_forward.6} parent=47 // loop_body
                %v1257 = vld [vmem:[%s1255] sm:%s1170]
                %1258 = vst [vmem:[%s1256] sm:%s1170] %v1257
                %s1259 = sadd.s32 1, %s1254
                %p1260 = scmp.ge.s32.totalorder %s1259, %s1242
                %s1261 = scalar_select %p1260, 0, %s1259
                %s1262 = smul.u32 %s1261, 4
                %s1263 = smul.u32 %s1261, 4
                %s1264 = scalar_lea.vmem %s1245, %s1262 [#allocation2]
                %s1265 = scalar_lea.vmem %s1247, %s1263
              $region60: #{encoder_forward.6} parent=47 // loop_footer
                %s1251 = sadd.s32 %s1249, 1
              $region61: #{encoder_forward.6} parent=47 // loop_footer_branch
                %1248 = sbr.rel target = $region57
              $region62: #{encoder_forward.6} parent=47 // loop_exit
                _
            $region48: #{encoder_forward.6} parent=39 // pred_fallthru
              _
          $region40: #{encoder_forward.6} parent=35 // pred_fallthru
            _
          %1365 = vnop
        $region36: #{encoder_forward.6} parent=31 // pred_fallthru
          _
      $region32: #{encoder_forward.6} parent=5 // pred_fallthru
        _
      %p1366 = scmp.le.s32.totalorder 2, %s9
      // Predicated region
      $region81: #{encoder_forward.6} parent=5 // pred_check
        %p1367 = pneg %p1366
      $region82: #{encoder_forward.6} parent=5 // pred_check_branch
        %1369 = sbr.rel (%p1367) target = $region84
      $region83: #{encoder_forward.6} parent=5 // pred_region
        %s1370 = ssub.s32 %s9, 2
        // Predicated region
        $region85: #{encoder_forward.6} parent=83 // pred_check
          %p1371 = pneg %p106
        $region86: #{encoder_forward.6} parent=83 // pred_check_branch
          %1373 = sbr.rel (%p1371) target = $region88
        $region87: #{encoder_forward.6} parent=83 // pred_region
          %s1374 = sand.u32 %s91, 1
          %s1375 = sand.u32 %s91, 1
          %s1376 = smul.addr %s1375, 104
          %s1377 = scalar_lea.vmem [#allocation2], %s1376
        $region88: #{encoder_forward.6} parent=83 // pred_fallthru
          _
      $region84: #{encoder_forward.6} parent=5 // pred_fallthru
        _
    $region6: #{encoder_forward.6} parent=1 // loop_footer
      %s13 = sadd.s32 1, %s9
    $region7: #{encoder_forward.6} parent=1 // loop_footer_branch
      %8 = sbr.rel target = $region3
    $region8: #{encoder_forward.6} parent=1 // loop_exit
      _

// kernel: encoder_forward.7
$region0: #{encoder_forward.7}
  #allocation0 [shape = 'u32[]', space=smem, size = 0x4, offset = 0x4, fixed_abs, tag = 'smem constant byte address 0x4 - core index']
  #allocation1 [shape = 'u32[72,128]{1,0:T(1,128)}', space=vmem, size = 0x9000, scoped, tag = 'internal scratch']
  %s0 = inlined_call_operand.vmem [shape: bf16[98,128], index: 0, kind: input, shape index: {}]
  %s1 = inlined_call_operand.vmem [shape: bf16[128,64], index: 1, kind: input, shape index: {}]
  %s2 = inlined_call_operand.vmem [shape: f32[1,64], index: 2, kind: input, shape index: {}]
  %s3 = inlined_call_operand.vmem [shape: bf16[98,64], index: 3, kind: output, shape index: {}]
  %s4 = sld [smem:[#allocation0]]
  $region22: #{encoder_forward.7} parent=0
    _
  %s6 = ssub.s32 1, %s4
  %s7 = scalar_select 0, %s6, %s4
  // Predicated region
  $region2: #{encoder_forward.7} parent=0 // pred_check
    _
  $region3: #{encoder_forward.7} parent=0 // pred_check_branch
    %9 = sbr.rel (0) target = $region5
  $region4: #{encoder_forward.7} parent=0 // pred_region
    _
  $region5: #{encoder_forward.7} parent=0 // pred_fallthru
    _
  // Predicated region
  $region6: #{encoder_forward.7} parent=0 // pred_check
    _
  $region7: #{encoder_forward.7} parent=0 // pred_check_branch
    %11 = sbr.rel (0) target = $region9
  $region8: #{encoder_forward.7} parent=0 // pred_region
    _
  $region9: #{encoder_forward.7} parent=0 // pred_fallthru
    _
  // Predicated region
  $region10: #{encoder_forward.7} parent=0 // pred_check
    _
  $region11: #{encoder_forward.7} parent=0 // pred_check_branch
    %13 = sbr.rel (0) target = $region13
  $region12: #{encoder_forward.7} parent=0 // pred_region
    _
  $region13: #{encoder_forward.7} parent=0 // pred_fallthru
    _
  %v14 = vld [vmem:[%s0] sm:$0xf]
  %v15 = vld [vmem:[%s0 + $0x4] sm:$0xf]
  %v16 = vld [vmem:[%s0 + $0x8] sm:$0xf]
  %v17 = vld [vmem:[%s0 + $0xc] sm:$0xf]
  %v18 = vld [vmem:[%s0 + $0x10] sm:$0xf]
  %v19 = vld [vmem:[%s0 + $0x14] sm:$0xf]
  %v20 = vld [vmem:[%s0 + $0x18] sm:$0xf]
  %v21 = vld [vmem:[%s0 + $0x1c] sm:$0xf]
  %v22 = vld [vmem:[%s0 + $0x20] sm:$0xf]
  %v23 = vld [vmem:[%s0 + $0x24] sm:$0xf]
  %v24 = vld [vmem:[%s0 + $0x28] sm:$0xf]
  %v25 = vld [vmem:[%s0 + $0x2c] sm:$0xf]
  %v26 = vld [vmem:[%s0 + $0x30] sm:$0x1]
  %v27 = vld [vmem:[%s1] sm:$0xf]
  %v28 = vld [vmem:[%s1 + $0x4] sm:$0xf]
  %v29 = vld [vmem:[%s1 + $0x8] sm:$0xf]
  %v30 = vld [vmem:[%s1 + $0xc] sm:$0xf]
  %v31 = vld [vmem:[%s1 + $0x10] sm:$0xf]
  %v32 = vld [vmem:[%s1 + $0x14] sm:$0xf]
  %v33 = vld [vmem:[%s1 + $0x18] sm:$0xf]
  %v34 = vld [vmem:[%s1 + $0x1c] sm:$0xf]
  %v35 = vld [vmem:[%s1 + $0x20] sm:$0xf]
  %v36 = vld [vmem:[%s1 + $0x24] sm:$0xf]
  %v37 = vld [vmem:[%s1 + $0x28] sm:$0xf]
  %v38 = vld [vmem:[%s1 + $0x2c] sm:$0xf]
  %v39 = vld [vmem:[%s1 + $0x30] sm:$0xf]
  %v40 = vld [vmem:[%s1 + $0x34] sm:$0xf]
  %v41 = vld [vmem:[%s1 + $0x38] sm:$0xf]
  %v42 = vld [vmem:[%s1 + $0x3c] sm:$0xf]
  %v43 = vld [vmem:[%s2] sm:$0x1]
  %v45 = vperm.slane %v43, 0
  %v60 = vunpack.c.l.b16 %v14
  %v61 = vunpack.c.l.b16 %v15
  %v62 = vunpack.c.l.b16 %v16
  %v63 = vunpack.c.l.b16 %v17
  %v64 = vunpack.c.l.b16 %v18
  %v65 = vunpack.c.l.b16 %v19
  %v66 = vunpack.c.l.b16 %v20
  %v67 = vunpack.c.l.b16 %v21
  %v68 = vunpack.c.l.b16 %v22
  %v69 = vunpack.c.l.b16 %v23
  %v70 = vunpack.c.l.b16 %v24
  %v71 = vunpack.c.l.b16 %v25
  %v72 = vunpack.c.l.b16 %v26
  %v73 = vpack.c.b16 %v61, %v60
  %v74 = vpack.c.b16 %v63, %v62
  %v75 = vpack.c.b16 %v65, %v64
  %v76 = vpack.c.b16 %v67, %v66
  %v77 = vpack.c.b16 %v69, %v68
  %v78 = vpack.c.b16 %v71, %v70
  %v79 = vpack.c.b16 %v72, %v72
  %v103 = vunpack.c.l.b16 %v27
  %v104 = vunpack.c.l.b16 %v28
  %v105 = vunpack.c.l.b16 %v29
  %v106 = vunpack.c.l.b16 %v30
  %v107 = vunpack.c.l.b16 %v31
  %v108 = vunpack.c.l.b16 %v32
  %v109 = vunpack.c.l.b16 %v33
  %v110 = vunpack.c.l.b16 %v34
  %v111 = vunpack.c.l.b16 %v35
  %v112 = vunpack.c.l.b16 %v36
  %v113 = vunpack.c.l.b16 %v37
  %v114 = vunpack.c.l.b16 %v38
  %v115 = vunpack.c.l.b16 %v39
  %v116 = vunpack.c.l.b16 %v40
  %v117 = vunpack.c.l.b16 %v41
  %v118 = vunpack.c.l.b16 %v42
  %v119 = vpack.c.b16 %v104, %v103
  %v120 = vpack.c.b16 %v106, %v105
  %v121 = vpack.c.b16 %v108, %v107
  %v122 = vpack.c.b16 %v110, %v109
  %v123 = vpack.c.b16 %v112, %v111
  %v124 = vpack.c.b16 %v114, %v113
  %v125 = vpack.c.b16 %v116, %v115
  %v126 = vpack.c.b16 %v118, %v117
  %135 = vmatpush.bf16.msra.mxu0 %v126
  %136 = vmatpush.bf16.msra.mxu0 %v125
  %137 = vmatpush.bf16.msra.mxu0 %v124
  %138 = vmatpush.bf16.msra.mxu0 %v123
  %139 = vmatpush.bf16.msra.mxu0 %v122
  %140 = vmatpush.bf16.msra.mxu0 %v121
  %141 = vmatpush.bf16.msra.mxu0 %v120
  %142 = vmatpush.bf16.msra.mxu0 %v119
  %143 = vmatmul.bf16.gmra.mxu0 %v73
  %v144 = vpop.f32.mrf.mxu0
  %v145 = vadd.f32 %v45, %v144
  %v146 = vpop.f32.mrf.mxu0
  %v147 = vadd.f32 %v45, %v146
  %148 = vmatmul.bf16.gmra.mxu0 %v74
  %v149 = vpop.f32.mrf.mxu0
  %v150 = vadd.f32 %v45, %v149
  %v151 = vpop.f32.mrf.mxu0
  %v152 = vadd.f32 %v45, %v151
  %153 = vmatmul.bf16.gmra.mxu0 %v75
  %v154 = vpop.f32.mrf.mxu0
  %v155 = vadd.f32 %v45, %v154
  %v156 = vpop.f32.mrf.mxu0
  %v157 = vadd.f32 %v45, %v156
  %158 = vmatmul.bf16.gmra.mxu0 %v76
  %v159 = vpop.f32.mrf.mxu0
  %v160 = vadd.f32 %v45, %v159
  %v161 = vpop.f32.mrf.mxu0
  %v162 = vadd.f32 %v45, %v161
  %163 = vmatmul.bf16.gmra.mxu0 %v77
  %v164 = vpop.f32.mrf.mxu0
  %v165 = vadd.f32 %v45, %v164
  %v166 = vpop.f32.mrf.mxu0
  %v167 = vadd.f32 %v45, %v166
  %168 = vmatmul.bf16.gmra.mxu0 %v78
  %v169 = vpop.f32.mrf.mxu0
  %v170 = vadd.f32 %v45, %v169
  %v171 = vpop.f32.mrf.mxu0
  %v172 = vadd.f32 %v45, %v171
  %173 = vmatmul.bf16.gmra.mxu0 %v79
  %v174 = vpop.f32.mrf.mxu0
  %v175 = vadd.f32 %v45, %v174
  %v176 = vpop.f32.mrf.mxu0
  %177 = vdwg.mxu0
  %v178 = vmax.f32 %v145, 0.0
  %v179 = vmax.f32 %v147, 0.0
  %v180 = vmax.f32 %v150, 0.0
  %v181 = vmax.f32 %v152, 0.0
  %v182 = vmax.f32 %v155, 0.0
  %v183 = vmax.f32 %v157, 0.0
  %v184 = vmax.f32 %v160, 0.0
  %v185 = vmax.f32 %v162, 0.0
  %v186 = vmax.f32 %v165, 0.0
  %v187 = vmax.f32 %v167, 0.0
  %v188 = vmax.f32 %v170, 0.0
  %v189 = vmax.f32 %v172, 0.0
  %v190 = vmax.f32 %v175, 0.0
  %v191 = vpack.c.bf16 %v178, %v178
  %v192 = vpack.c.bf16 %v179, %v179
  %v193 = vpack.c.bf16 %v180, %v180
  %v194 = vpack.c.bf16 %v181, %v181
  %v195 = vpack.c.bf16 %v182, %v182
  %v196 = vpack.c.bf16 %v183, %v183
  %v197 = vpack.c.bf16 %v184, %v184
  %v198 = vpack.c.bf16 %v185, %v185
  %v199 = vpack.c.bf16 %v186, %v186
  %v200 = vpack.c.bf16 %v187, %v187
  %v201 = vpack.c.bf16 %v188, %v188
  %v202 = vpack.c.bf16 %v189, %v189
  %v203 = vpack.c.bf16 %v190, %v190
  %vm204 = vcmask 519168
  %205 = vst.msk [vmem:[%s3] sm:$0xf] %vm204, %v191
  %206 = vst.msk [vmem:[%s3 + $0x4] sm:$0xf] %vm204, %v192
  %207 = vst.msk [vmem:[%s3 + $0x8] sm:$0xf] %vm204, %v193
  %208 = vst.msk [vmem:[%s3 + $0xc] sm:$0xf] %vm204, %v194
  %209 = vst.msk [vmem:[%s3 + $0x10] sm:$0xf] %vm204, %v195
  %210 = vst.msk [vmem:[%s3 + $0x14] sm:$0xf] %vm204, %v196
  %211 = vst.msk [vmem:[%s3 + $0x18] sm:$0xf] %vm204, %v197
  %212 = vst.msk [vmem:[%s3 + $0x1c] sm:$0xf] %vm204, %v198
  %213 = vst.msk [vmem:[%s3 + $0x20] sm:$0xf] %vm204, %v199
  %214 = vst.msk [vmem:[%s3 + $0x24] sm:$0xf] %vm204, %v200
  %215 = vst.msk [vmem:[%s3 + $0x28] sm:$0xf] %vm204, %v201
  %216 = vst.msk [vmem:[%s3 + $0x2c] sm:$0xf] %vm204, %v202
  %vm217 = vcmask 516096
  %218 = vst.msk [vmem:[%s3 + $0x30] sm:$0x1] %vm217, %v203
  // Predicated region
  $region14: #{encoder_forward.7} parent=0 // pred_check
    _
  $region15: #{encoder_forward.7} parent=0 // pred_check_branch
    %220 = sbr.rel (0) target = $region17
  $region16: #{encoder_forward.7} parent=0 // pred_region
    _
  $region17: #{encoder_forward.7} parent=0 // pred_fallthru
    _
  // Predicated region
  $region18: #{encoder_forward.7} parent=0 // pred_check
    _
  $region19: #{encoder_forward.7} parent=0 // pred_check_branch
    %222 = sbr.rel (0) target = $region21
  $region20: #{encoder_forward.7} parent=0 // pred_region
    _
  $region21: #{encoder_forward.7} parent=0 // pred_fallthru
    _

// kernel: encoder_forward.8
$region0: #{encoder_forward.8}
  #allocation0 [shape = 'u32[]', space=smem, size = 0x4, offset = 0x4, fixed_abs, tag = 'smem constant byte address 0x4 - core index']
  #allocation1 [shape = 'u32[72,128]{1,0:T(1,128)}', space=vmem, size = 0x9000, scoped, tag = 'internal scratch']
  %s0 = inlined_call_operand.vmem [shape: bf16[18,256], index: 0, kind: input, shape index: {}]
  %s1 = inlined_call_operand.vmem [shape: bf16[256,64], index: 1, kind: input, shape index: {}]
  %s2 = inlined_call_operand.vmem [shape: f32[1,64], index: 2, kind: input, shape index: {}]
  %s3 = inlined_call_operand.vmem [shape: bf16[18,64], index: 3, kind: output, shape index: {}]
  %s4 = sld [smem:[#allocation0]]
  $region22: #{encoder_forward.8} parent=0
    _
  %s6 = ssub.s32 1, %s4
  %s7 = scalar_select 0, %s6, %s4
  // Predicated region
  $region2: #{encoder_forward.8} parent=0 // pred_check
    _
  $region3: #{encoder_forward.8} parent=0 // pred_check_branch
    %9 = sbr.rel (0) target = $region5
  $region4: #{encoder_forward.8} parent=0 // pred_region
    _
  $region5: #{encoder_forward.8} parent=0 // pred_fallthru
    _
  // Predicated region
  $region6: #{encoder_forward.8} parent=0 // pred_check
    _
  $region7: #{encoder_forward.8} parent=0 // pred_check_branch
    %11 = sbr.rel (0) target = $region9
  $region8: #{encoder_forward.8} parent=0 // pred_region
    _
  $region9: #{encoder_forward.8} parent=0 // pred_fallthru
    _
  // Predicated region
  $region10: #{encoder_forward.8} parent=0 // pred_check
    _
  $region11: #{encoder_forward.8} parent=0 // pred_check_branch
    %13 = sbr.rel (0) target = $region13
  $region12: #{encoder_forward.8} parent=0 // pred_region
    _
  $region13: #{encoder_forward.8} parent=0 // pred_fallthru
    _
  %v14 = vld [vmem:[%s0] sm:$0xff]
  %v15 = vld [vmem:[%s0 + $0x8] sm:$0xff]
  %v16 = vld [vmem:[%s0 + $0x10] sm:$0x11]
  %v17 = vld [vmem:[%s1] sm:$0xf]
  %v18 = vld [vmem:[%s1 + $0x4] sm:$0xf]
  %v19 = vld [vmem:[%s1 + $0x8] sm:$0xf]
  %v20 = vld [vmem:[%s1 + $0xc] sm:$0xf]
  %v21 = vld [vmem:[%s1 + $0x10] sm:$0xf]
  %v22 = vld [vmem:[%s1 + $0x14] sm:$0xf]
  %v23 = vld [vmem:[%s1 + $0x18] sm:$0xf]
  %v24 = vld [vmem:[%s1 + $0x1c] sm:$0xf]
  %v25 = vld [vmem:[%s1 + $0x20] sm:$0xf]
  %v26 = vld [vmem:[%s1 + $0x24] sm:$0xf]
  %v27 = vld [vmem:[%s1 + $0x28] sm:$0xf]
  %v28 = vld [vmem:[%s1 + $0x2c] sm:$0xf]
  %v29 = vld [vmem:[%s1 + $0x30] sm:$0xf]
  %v30 = vld [vmem:[%s1 + $0x34] sm:$0xf]
  %v31 = vld [vmem:[%s1 + $0x38] sm:$0xf]
  %v32 = vld [vmem:[%s1 + $0x3c] sm:$0xf]
  %v33 = vld [vmem:[%s1 + $0x40] sm:$0xf]
  %v34 = vld [vmem:[%s1 + $0x44] sm:$0xf]
  %v35 = vld [vmem:[%s1 + $0x48] sm:$0xf]
  %v36 = vld [vmem:[%s1 + $0x4c] sm:$0xf]
  %v37 = vld [vmem:[%s1 + $0x50] sm:$0xf]
  %v38 = vld [vmem:[%s1 + $0x54] sm:$0xf]
  %v39 = vld [vmem:[%s1 + $0x58] sm:$0xf]
  %v40 = vld [vmem:[%s1 + $0x5c] sm:$0xf]
  %v41 = vld [vmem:[%s1 + $0x60] sm:$0xf]
  %v42 = vld [vmem:[%s1 + $0x64] sm:$0xf]
  %v43 = vld [vmem:[%s1 + $0x68] sm:$0xf]
  %v44 = vld [vmem:[%s1 + $0x6c] sm:$0xf]
  %v45 = vld [vmem:[%s1 + $0x70] sm:$0xf]
  %v46 = vld [vmem:[%s1 + $0x74] sm:$0xf]
  %v47 = vld [vmem:[%s1 + $0x78] sm:$0xf]
  %v48 = vld [vmem:[%s1 + $0x7c] sm:$0xf]
  %v49 = vld [vmem:[%s2] sm:$0x1]
  %v51 = vperm.slane %v49, 0
  %v56 = vunpack.c.l.b16 %v14
  %v57 = vunpack.c.h.b16 %v14
  %v58 = vunpack.c.l.b16 %v15
  %v59 = vunpack.c.h.b16 %v15
  %v60 = vunpack.c.l.b16 %v16
  %v61 = vunpack.c.h.b16 %v16
  %v62 = vpack.c.b16 %v58, %v56
  %v63 = vpack.c.b16 %v59, %v57
  %v64 = vpack.c.b16 %v60, %v60
  %v65 = vpack.c.b16 %v61, %v61
  %v102 = vunpack.c.l.b16 %v17
  %v103 = vunpack.c.l.b16 %v18
  %v104 = vunpack.c.l.b16 %v19
  %v105 = vunpack.c.l.b16 %v20
  %v106 = vunpack.c.l.b16 %v21
  %v107 = vunpack.c.l.b16 %v22
  %v108 = vunpack.c.l.b16 %v23
  %v109 = vunpack.c.l.b16 %v24
  %v110 = vunpack.c.l.b16 %v25
  %v111 = vunpack.c.l.b16 %v26
  %v112 = vunpack.c.l.b16 %v27
  %v113 = vunpack.c.l.b16 %v28
  %v114 = vunpack.c.l.b16 %v29
  %v115 = vunpack.c.l.b16 %v30
  %v116 = vunpack.c.l.b16 %v31
  %v117 = vunpack.c.l.b16 %v32
  %v118 = vunpack.c.l.b16 %v33
  %v119 = vunpack.c.l.b16 %v34
  %v120 = vunpack.c.l.b16 %v35
  %v121 = vunpack.c.l.b16 %v36
  %v122 = vunpack.c.l.b16 %v37
  %v123 = vunpack.c.l.b16 %v38
  %v124 = vunpack.c.l.b16 %v39
  %v125 = vunpack.c.l.b16 %v40
  %v126 = vunpack.c.l.b16 %v41
  %v127 = vunpack.c.l.b16 %v42
  %v128 = vunpack.c.l.b16 %v43
  %v129 = vunpack.c.l.b16 %v44
  %v130 = vunpack.c.l.b16 %v45
  %v131 = vunpack.c.l.b16 %v46
  %v132 = vunpack.c.l.b16 %v47
  %v133 = vunpack.c.l.b16 %v48
  %v134 = vpack.c.b16 %v103, %v102
  %v135 = vpack.c.b16 %v105, %v104
  %v136 = vpack.c.b16 %v107, %v106
  %v137 = vpack.c.b16 %v109, %v108
  %v138 = vpack.c.b16 %v111, %v110
  %v139 = vpack.c.b16 %v113, %v112
  %v140 = vpack.c.b16 %v115, %v114
  %v141 = vpack.c.b16 %v117, %v116
  %v142 = vpack.c.b16 %v119, %v118
  %v143 = vpack.c.b16 %v121, %v120
  %v144 = vpack.c.b16 %v123, %v122
  %v145 = vpack.c.b16 %v125, %v124
  %v146 = vpack.c.b16 %v127, %v126
  %v147 = vpack.c.b16 %v129, %v128
  %v148 = vpack.c.b16 %v131, %v130
  %v149 = vpack.c.b16 %v133, %v132
  %166 = vmatpush.bf16.msra.mxu0 %v141
  %167 = vmatpush.bf16.msra.mxu0 %v140
  %168 = vmatpush.bf16.msra.mxu0 %v139
  %169 = vmatpush.bf16.msra.mxu0 %v138
  %170 = vmatpush.bf16.msra.mxu0 %v137
  %171 = vmatpush.bf16.msra.mxu0 %v136
  %172 = vmatpush.bf16.msra.mxu0 %v135
  %173 = vmatpush.bf16.msra.mxu0 %v134
  %174 = vmatmul.bf16.gmra.mxu0 %v62
  %v175 = vpop.f32.mrf.mxu0
  %v176 = vadd.f32 %v51, %v175
  %v177 = vpop.f32.mrf.mxu0
  %v178 = vadd.f32 %v51, %v177
  %179 = vmatmul.bf16.gmra.mxu0 %v64
  %v180 = vpop.f32.mrf.mxu0
  %v181 = vadd.f32 %v51, %v180
  %v182 = vpop.f32.mrf.mxu0
  %183 = vdwg.mxu0
  %184 = vmatpush.bf16.msra.mxu0 %v149
  %185 = vmatpush.bf16.msra.mxu0 %v148
  %186 = vmatpush.bf16.msra.mxu0 %v147
  %187 = vmatpush.bf16.msra.mxu0 %v146
  %188 = vmatpush.bf16.msra.mxu0 %v145
  %189 = vmatpush.bf16.msra.mxu0 %v144
  %190 = vmatpush.bf16.msra.mxu0 %v143
  %191 = vmatpush.bf16.msra.mxu0 %v142
  %192 = vmatmul.bf16.gmra.mxu0 %v63
  %v193 = vpop.f32.mrf.mxu0
  %v194 = vadd.f32 %v176, %v193
  %v195 = vpop.f32.mrf.mxu0
  %v196 = vadd.f32 %v178, %v195
  %197 = vmatmul.bf16.gmra.mxu0 %v65
  %v198 = vpop.f32.mrf.mxu0
  %v199 = vadd.f32 %v181, %v198
  %v200 = vpop.f32.mrf.mxu0
  %201 = vdwg.mxu0
  %v202 = vmax.f32 %v194, 0.0
  %v203 = vmax.f32 %v196, 0.0
  %v204 = vmax.f32 %v199, 0.0
  %v205 = vpack.c.bf16 %v202, %v202
  %v206 = vpack.c.bf16 %v203, %v203
  %v207 = vpack.c.bf16 %v204, %v204
  %vm208 = vcmask 519168
  %209 = vst.msk [vmem:[%s3] sm:$0xf] %vm208, %v205
  %210 = vst.msk [vmem:[%s3 + $0x4] sm:$0xf] %vm208, %v206
  %vm211 = vcmask 516096
  %212 = vst.msk [vmem:[%s3 + $0x8] sm:$0x1] %vm211, %v207
  // Predicated region
  $region14: #{encoder_forward.8} parent=0 // pred_check
    _
  $region15: #{encoder_forward.8} parent=0 // pred_check_branch
    %214 = sbr.rel (0) target = $region17
  $region16: #{encoder_forward.8} parent=0 // pred_region
    _
  $region17: #{encoder_forward.8} parent=0 // pred_fallthru
    _
  // Predicated region
  $region18: #{encoder_forward.8} parent=0 // pred_check
    _
  $region19: #{encoder_forward.8} parent=0 // pred_check_branch
    %216 = sbr.rel (0) target = $region21
  $region20: #{encoder_forward.8} parent=0 // pred_region
    _
  $region21: #{encoder_forward.8} parent=0 // pred_fallthru
    _

// kernel: encoder_forward.9
$region0: #{encoder_forward.9}
  #allocation0 [shape = 'u32[]', space=smem, size = 0x4, offset = 0x4, fixed_abs, tag = 'smem constant byte address 0x4 - core index']
  #allocation1 [shape = 'u32[72,128]{1,0:T(1,128)}', space=vmem, size = 0x9000, scoped, tag = 'internal scratch']
  %s0 = inlined_call_operand.vmem [shape: bf16[2,576], index: 0, kind: input, shape index: {}]
  %s1 = inlined_call_operand.vmem [shape: bf16[576,256], index: 1, kind: input, shape index: {}]
  %s2 = inlined_call_operand.vmem [shape: f32[1,256], index: 2, kind: input, shape index: {}]
  %s3 = inlined_call_operand.vmem [shape: bf16[256,64], index: 3, kind: input, shape index: {}]
  %s4 = inlined_call_operand.vmem [shape: f32[1,64], index: 4, kind: input, shape index: {}]
  %s5 = inlined_call_operand.vmem [shape: f32[2,64], index: 5, kind: output, shape index: {}]
  %s6 = sld [smem:[#allocation0]]
  $region30: #{encoder_forward.9} parent=0
    _
  %s8 = ssub.s32 1, %s6
  %s9 = scalar_select 0, %s8, %s6
  // Predicated region
  $region2: #{encoder_forward.9} parent=0 // pred_check
    _
  $region3: #{encoder_forward.9} parent=0 // pred_check_branch
    %11 = sbr.rel (0) target = $region5
  $region4: #{encoder_forward.9} parent=0 // pred_region
    _
  $region5: #{encoder_forward.9} parent=0 // pred_fallthru
    _
  // Predicated region
  $region6: #{encoder_forward.9} parent=0 // pred_check
    _
  $region7: #{encoder_forward.9} parent=0 // pred_check_branch
    %13 = sbr.rel (0) target = $region9
  $region8: #{encoder_forward.9} parent=0 // pred_region
    _
  $region9: #{encoder_forward.9} parent=0 // pred_fallthru
    _
  // Predicated region
  $region10: #{encoder_forward.9} parent=0 // pred_check
    _
  $region11: #{encoder_forward.9} parent=0 // pred_check_branch
    %15 = sbr.rel (0) target = $region13
  $region12: #{encoder_forward.9} parent=0 // pred_region
    _
  $region13: #{encoder_forward.9} parent=0 // pred_fallthru
    _
  // Predicated region
  $region14: #{encoder_forward.9} parent=0 // pred_check
    _
  $region15: #{encoder_forward.9} parent=0 // pred_check_branch
    %17 = sbr.rel (0) target = $region17
  $region16: #{encoder_forward.9} parent=0 // pred_region
    _
  $region17: #{encoder_forward.9} parent=0 // pred_fallthru
    _
  // Predicated region
  $region18: #{encoder_forward.9} parent=0 // pred_check
    _
  $region19: #{encoder_forward.9} parent=0 // pred_check_branch
    %19 = sbr.rel (0) target = $region21
  $region20: #{encoder_forward.9} parent=0 // pred_region
    _
  $region21: #{encoder_forward.9} parent=0 // pred_fallthru
    _
  %v21 = vld [vmem:[%s0] sm:$0x1f]
  %v22 = vld [vmem:[%s1] sm:$0xff]
  %v23 = vld [vmem:[%s1 + $0x8] sm:$0xff]
  %v24 = vld [vmem:[%s1 + $0x10] sm:$0xff]
  %v25 = vld [vmem:[%s1 + $0x18] sm:$0xff]
  %v26 = vld [vmem:[%s1 + $0x20] sm:$0xff]
  %v27 = vld [vmem:[%s1 + $0x28] sm:$0xff]
  %v28 = vld [vmem:[%s1 + $0x30] sm:$0xff]
  %v29 = vld [vmem:[%s1 + $0x38] sm:$0xff]
  %v30 = vld [vmem:[%s1 + $0x40] sm:$0xff]
  %v31 = vld [vmem:[%s1 + $0x48] sm:$0xff]
  %v32 = vld [vmem:[%s1 + $0x50] sm:$0xff]
  %v33 = vld [vmem:[%s1 + $0x58] sm:$0xff]
  %v34 = vld [vmem:[%s1 + $0x60] sm:$0xff]
  %v35 = vld [vmem:[%s1 + $0x68] sm:$0xff]
  %v36 = vld [vmem:[%s1 + $0x70] sm:$0xff]
  %v37 = vld [vmem:[%s1 + $0x78] sm:$0xff]
  %v38 = vld [vmem:[%s1 + $0x80] sm:$0xff]
  %v39 = vld [vmem:[%s1 + $0x88] sm:$0xff]
  %v40 = vld [vmem:[%s1 + $0x90] sm:$0xff]
  %v41 = vld [vmem:[%s1 + $0x98] sm:$0xff]
  %v42 = vld [vmem:[%s1 + $0xa0] sm:$0xff]
  %v43 = vld [vmem:[%s1 + $0xa8] sm:$0xff]
  %v44 = vld [vmem:[%s1 + $0xb0] sm:$0xff]
  %v45 = vld [vmem:[%s1 + $0xb8] sm:$0xff]
  %v46 = vld [vmem:[%s1 + $0xc0] sm:$0xff]
  %v47 = vld [vmem:[%s1 + $0xc8] sm:$0xff]
  %v48 = vld [vmem:[%s1 + $0xd0] sm:$0xff]
  %v49 = vld [vmem:[%s1 + $0xd8] sm:$0xff]
  %v50 = vld [vmem:[%s1 + $0xe0] sm:$0xff]
  %v51 = vld [vmem:[%s1 + $0xe8] sm:$0xff]
  %v52 = vld [vmem:[%s1 + $0xf0] sm:$0xff]
  %v53 = vld [vmem:[%s1 + $0xf8] sm:$0xff]
  %v54 = vld [vmem:[%s1 + $0x100] sm:$0xff]
  %v55 = vld [vmem:[%s1 + $0x108] sm:$0xff]
  %v56 = vld [vmem:[%s1 + $0x110] sm:$0xff]
  %v57 = vld [vmem:[%s1 + $0x118] sm:$0xff]
  %v58 = vld [vmem:[%s1 + $0x120] sm:$0xff]
  %v59 = vld [vmem:[%s1 + $0x128] sm:$0xff]
  %v60 = vld [vmem:[%s1 + $0x130] sm:$0xff]
  %v61 = vld [vmem:[%s1 + $0x138] sm:$0xff]
  %v62 = vld [vmem:[%s1 + $0x140] sm:$0xff]
  %v63 = vld [vmem:[%s1 + $0x148] sm:$0xff]
  %v64 = vld [vmem:[%s1 + $0x150] sm:$0xff]
  %v65 = vld [vmem:[%s1 + $0x158] sm:$0xff]
  %v66 = vld [vmem:[%s1 + $0x160] sm:$0xff]
  %v67 = vld [vmem:[%s1 + $0x168] sm:$0xff]
  %v68 = vld [vmem:[%s1 + $0x170] sm:$0xff]
  %v69 = vld [vmem:[%s1 + $0x178] sm:$0xff]
  %v70 = vld [vmem:[%s1 + $0x180] sm:$0xff]
  %v71 = vld [vmem:[%s1 + $0x188] sm:$0xff]
  %v72 = vld [vmem:[%s1 + $0x190] sm:$0xff]
  %v73 = vld [vmem:[%s1 + $0x198] sm:$0xff]
  %v74 = vld [vmem:[%s1 + $0x1a0] sm:$0xff]
  %v75 = vld [vmem:[%s1 + $0x1a8] sm:$0xff]
  %v76 = vld [vmem:[%s1 + $0x1b0] sm:$0xff]
  %v77 = vld [vmem:[%s1 + $0x1b8] sm:$0xff]
  %v78 = vld [vmem:[%s1 + $0x1c0] sm:$0xff]
  %v79 = vld [vmem:[%s1 + $0x1c8] sm:$0xff]
  %v80 = vld [vmem:[%s1 + $0x1d0] sm:$0xff]
  %v81 = vld [vmem:[%s1 + $0x1d8] sm:$0xff]
  %v82 = vld [vmem:[%s1 + $0x1e0] sm:$0xff]
  %v83 = vld [vmem:[%s1 + $0x1e8] sm:$0xff]
  %v84 = vld [vmem:[%s1 + $0x1f0] sm:$0xff]
  %v85 = vld [vmem:[%s1 + $0x1f8] sm:$0xff]
  %v86 = vld [vmem:[%s1 + $0x200] sm:$0xff]
  %v87 = vld [vmem:[%s1 + $0x208] sm:$0xff]
  %v88 = vld [vmem:[%s1 + $0x210] sm:$0xff]
  %v89 = vld [vmem:[%s1 + $0x218] sm:$0xff]
  %v90 = vld [vmem:[%s1 + $0x220] sm:$0xff]
  %v91 = vld [vmem:[%s1 + $0x228] sm:$0xff]
  %v92 = vld [vmem:[%s1 + $0x230] sm:$0xff]
  %v93 = vld [vmem:[%s1 + $0x238] sm:$0xff]
  %v94 = vld [vmem:[%s2] sm:$0x3]
  %v96 = vperm.slane %v94, 0
  %v97 = vperm.slane %v94, 1
  %101 = vst [vmem:[#allocation1] ss:$9 sm:$0xff] %v21
  %v102 = vld [vmem:[#allocation1] sm:$0xff]
  %v103 = vld [vmem:[#allocation1 + $0x9] sm:$0xff]
  %v104 = vld [vmem:[#allocation1 + $0x12] sm:$0xff]
  %v105 = vld [vmem:[#allocation1 + $0x1b] sm:$0xff]
  %v106 = vld [vmem:[#allocation1 + $0x24] sm:$0xff]
  %v183 = vunpack.c.l.b16 %v22
  %v184 = vunpack.c.h.b16 %v22
  %v185 = vunpack.c.l.b16 %v23
  %v186 = vunpack.c.h.b16 %v23
  %v187 = vunpack.c.l.b16 %v24
  %v188 = vunpack.c.h.b16 %v24
  %v189 = vunpack.c.l.b16 %v25
  %v190 = vunpack.c.h.b16 %v25
  %v191 = vunpack.c.l.b16 %v26
  %v192 = vunpack.c.h.b16 %v26
  %v193 = vunpack.c.l.b16 %v27
  %v194 = vunpack.c.h.b16 %v27
  %v195 = vunpack.c.l.b16 %v28
  %v196 = vunpack.c.h.b16 %v28
  %v197 = vunpack.c.l.b16 %v29
  %v198 = vunpack.c.h.b16 %v29
  %v199 = vunpack.c.l.b16 %v30
  %v200 = vunpack.c.h.b16 %v30
  %v201 = vunpack.c.l.b16 %v31
  %v202 = vunpack.c.h.b16 %v31
  %v203 = vunpack.c.l.b16 %v32
  %v204 = vunpack.c.h.b16 %v32
  %v205 = vunpack.c.l.b16 %v33
  %v206 = vunpack.c.h.b16 %v33
  %v207 = vunpack.c.l.b16 %v34
  %v208 = vunpack.c.h.b16 %v34
  %v209 = vunpack.c.l.b16 %v35
  %v210 = vunpack.c.h.b16 %v35
  %v211 = vunpack.c.l.b16 %v36
  %v212 = vunpack.c.h.b16 %v36
  %v213 = vunpack.c.l.b16 %v37
  %v214 = vunpack.c.h.b16 %v37
  %v215 = vunpack.c.l.b16 %v38
  %v216 = vunpack.c.h.b16 %v38
  %v217 = vunpack.c.l.b16 %v39
  %v218 = vunpack.c.h.b16 %v39
  %v219 = vunpack.c.l.b16 %v40
  %v220 = vunpack.c.h.b16 %v40
  %v221 = vunpack.c.l.b16 %v41
  %v222 = vunpack.c.h.b16 %v41
  %v223 = vunpack.c.l.b16 %v42
  %v224 = vunpack.c.h.b16 %v42
  %v225 = vunpack.c.l.b16 %v43
  %v226 = vunpack.c.h.b16 %v43
  %v227 = vunpack.c.l.b16 %v44
  %v228 = vunpack.c.h.b16 %v44
  %v229 = vunpack.c.l.b16 %v45
  %v230 = vunpack.c.h.b16 %v45
  %v231 = vunpack.c.l.b16 %v46
  %v232 = vunpack.c.h.b16 %v46
  %v233 = vunpack.c.l.b16 %v47
  %v234 = vunpack.c.h.b16 %v47
  %v235 = vunpack.c.l.b16 %v48
  %v236 = vunpack.c.h.b16 %v48
  %v237 = vunpack.c.l.b16 %v49
  %v238 = vunpack.c.h.b16 %v49
  %v239 = vunpack.c.l.b16 %v50
  %v240 = vunpack.c.h.b16 %v50
  %v241 = vunpack.c.l.b16 %v51
  %v242 = vunpack.c.h.b16 %v51
  %v243 = vunpack.c.l.b16 %v52
  %v244 = vunpack.c.h.b16 %v52
  %v245 = vunpack.c.l.b16 %v53
  %v246 = vunpack.c.h.b16 %v53
  %v247 = vunpack.c.l.b16 %v54
  %v248 = vunpack.c.h.b16 %v54
  %v249 = vunpack.c.l.b16 %v55
  %v250 = vunpack.c.h.b16 %v55
  %v251 = vunpack.c.l.b16 %v56
  %v252 = vunpack.c.h.b16 %v56
  %v253 = vunpack.c.l.b16 %v57
  %v254 = vunpack.c.h.b16 %v57
  %v255 = vunpack.c.l.b16 %v58
  %v256 = vunpack.c.h.b16 %v58
  %v257 = vunpack.c.l.b16 %v59
  %v258 = vunpack.c.h.b16 %v59
  %v259 = vunpack.c.l.b16 %v60
  %v260 = vunpack.c.h.b16 %v60
  %v261 = vunpack.c.l.b16 %v61
  %v262 = vunpack.c.h.b16 %v61
  %v263 = vunpack.c.l.b16 %v62
  %v264 = vunpack.c.h.b16 %v62
  %v265 = vunpack.c.l.b16 %v63
  %v266 = vunpack.c.h.b16 %v63
  %v267 = vunpack.c.l.b16 %v64
  %v268 = vunpack.c.h.b16 %v64
  %v269 = vunpack.c.l.b16 %v65
  %v270 = vunpack.c.h.b16 %v65
  %v271 = vunpack.c.l.b16 %v66
  %v272 = vunpack.c.h.b16 %v66
  %v273 = vunpack.c.l.b16 %v67
  %v274 = vunpack.c.h.b16 %v67
  %v275 = vunpack.c.l.b16 %v68
  %v276 = vunpack.c.h.b16 %v68
  %v277 = vunpack.c.l.b16 %v69
  %v278 = vunpack.c.h.b16 %v69
  %v279 = vunpack.c.l.b16 %v70
  %v280 = vunpack.c.h.b16 %v70
  %v281 = vunpack.c.l.b16 %v71
  %v282 = vunpack.c.h.b16 %v71
  %v283 = vunpack.c.l.b16 %v72
  %v284 = vunpack.c.h.b16 %v72
  %v285 = vunpack.c.l.b16 %v73
  %v286 = vunpack.c.h.b16 %v73
  %v287 = vunpack.c.l.b16 %v74
  %v288 = vunpack.c.h.b16 %v74
  %v289 = vunpack.c.l.b16 %v75
  %v290 = vunpack.c.h.b16 %v75
  %v291 = vunpack.c.l.b16 %v76
  %v292 = vunpack.c.h.b16 %v76
  %v293 = vunpack.c.l.b16 %v77
  %v294 = vunpack.c.h.b16 %v77
  %v295 = vunpack.c.l.b16 %v78
  %v296 = vunpack.c.h.b16 %v78
  %v297 = vunpack.c.l.b16 %v79
  %v298 = vunpack.c.h.b16 %v79
  %v299 = vunpack.c.l.b16 %v80
  %v300 = vunpack.c.h.b16 %v80
  %v301 = vunpack.c.l.b16 %v81
  %v302 = vunpack.c.h.b16 %v81
  %v303 = vunpack.c.l.b16 %v82
  %v304 = vunpack.c.h.b16 %v82
  %v305 = vunpack.c.l.b16 %v83
  %v306 = vunpack.c.h.b16 %v83
  %v307 = vunpack.c.l.b16 %v84
  %v308 = vunpack.c.h.b16 %v84
  %v309 = vunpack.c.l.b16 %v85
  %v310 = vunpack.c.h.b16 %v85
  %v311 = vunpack.c.l.b16 %v86
  %v312 = vunpack.c.h.b16 %v86
  %v313 = vunpack.c.l.b16 %v87
  %v314 = vunpack.c.h.b16 %v87
  %v315 = vunpack.c.l.b16 %v88
  %v316 = vunpack.c.h.b16 %v88
  %v317 = vunpack.c.l.b16 %v89
  %v318 = vunpack.c.h.b16 %v89
  %v319 = vunpack.c.l.b16 %v90
  %v320 = vunpack.c.h.b16 %v90
  %v321 = vunpack.c.l.b16 %v91
  %v322 = vunpack.c.h.b16 %v91
  %v323 = vunpack.c.l.b16 %v92
  %v324 = vunpack.c.h.b16 %v92
  %v325 = vunpack.c.l.b16 %v93
  %v326 = vunpack.c.h.b16 %v93
  %v327 = vpack.c.b16 %v185, %v183
  %v328 = vpack.c.b16 %v186, %v184
  %v329 = vpack.c.b16 %v189, %v187
  %v330 = vpack.c.b16 %v190, %v188
  %v331 = vpack.c.b16 %v193, %v191
  %v332 = vpack.c.b16 %v194, %v192
  %v333 = vpack.c.b16 %v197, %v195
  %v334 = vpack.c.b16 %v198, %v196
  %v335 = vpack.c.b16 %v201, %v199
  %v336 = vpack.c.b16 %v202, %v200
  %v337 = vpack.c.b16 %v205, %v203
  %v338 = vpack.c.b16 %v206, %v204
  %v339 = vpack.c.b16 %v209, %v207
  %v340 = vpack.c.b16 %v210, %v208
  %v341 = vpack.c.b16 %v213, %v211
  %v342 = vpack.c.b16 %v214, %v212
  %v343 = vpack.c.b16 %v217, %v215
  %v344 = vpack.c.b16 %v218, %v216
  %v345 = vpack.c.b16 %v221, %v219
  %v346 = vpack.c.b16 %v222, %v220
  %v347 = vpack.c.b16 %v225, %v223
  %v348 = vpack.c.b16 %v226, %v224
  %v349 = vpack.c.b16 %v229, %v227
  %v350 = vpack.c.b16 %v230, %v228
  %v351 = vpack.c.b16 %v233, %v231
  %v352 = vpack.c.b16 %v234, %v232
  %v353 = vpack.c.b16 %v237, %v235
  %v354 = vpack.c.b16 %v238, %v236
  %v355 = vpack.c.b16 %v241, %v239
  %v356 = vpack.c.b16 %v242, %v240
  %v357 = vpack.c.b16 %v245, %v243
  %v358 = vpack.c.b16 %v246, %v244
  %v359 = vpack.c.b16 %v249, %v247
  %v360 = vpack.c.b16 %v250, %v248
  %v361 = vpack.c.b16 %v253, %v251
  %v362 = vpack.c.b16 %v254, %v252
  %v363 = vpack.c.b16 %v257, %v255
  %v364 = vpack.c.b16 %v258, %v256
  %v365 = vpack.c.b16 %v261, %v259
  %v366 = vpack.c.b16 %v262, %v260
  %v367 = vpack.c.b16 %v265, %v263
  %v368 = vpack.c.b16 %v266, %v264
  %v369 = vpack.c.b16 %v269, %v267
  %v370 = vpack.c.b16 %v270, %v268
  %v371 = vpack.c.b16 %v273, %v271
  %v372 = vpack.c.b16 %v274, %v272
  %v373 = vpack.c.b16 %v277, %v275
  %v374 = vpack.c.b16 %v278, %v276
  %v375 = vpack.c.b16 %v281, %v279
  %v376 = vpack.c.b16 %v282, %v280
  %v377 = vpack.c.b16 %v285, %v283
  %v378 = vpack.c.b16 %v286, %v284
  %v379 = vpack.c.b16 %v289, %v287
  %v380 = vpack.c.b16 %v290, %v288
  %v381 = vpack.c.b16 %v293, %v291
  %v382 = vpack.c.b16 %v294, %v292
  %v383 = vpack.c.b16 %v297, %v295
  %v384 = vpack.c.b16 %v298, %v296
  %v385 = vpack.c.b16 %v301, %v299
  %v386 = vpack.c.b16 %v302, %v300
  %v387 = vpack.c.b16 %v305, %v303
  %v388 = vpack.c.b16 %v306, %v304
  %v389 = vpack.c.b16 %v309, %v307
  %v390 = vpack.c.b16 %v310, %v308
  %v391 = vpack.c.b16 %v313, %v311
  %v392 = vpack.c.b16 %v314, %v312
  %v393 = vpack.c.b16 %v317, %v315
  %v394 = vpack.c.b16 %v318, %v316
  %v395 = vpack.c.b16 %v321, %v319
  %v396 = vpack.c.b16 %v322, %v320
  %v397 = vpack.c.b16 %v325, %v323
  %v398 = vpack.c.b16 %v326, %v324
  %vm471 = vcmask 523264
  %v472 = vsel %vm471, %v106, 0
  %474 = vmatpush.bf16.msra.mxu0 %v341
  %475 = vmatpush.bf16.msra.mxu0 %v339
  %476 = vmatpush.bf16.msra.mxu0 %v337
  %477 = vmatpush.bf16.msra.mxu0 %v335
  %478 = vmatpush.bf16.msra.mxu0 %v333
  %479 = vmatpush.bf16.msra.mxu0 %v331
  %480 = vmatpush.bf16.msra.mxu0 %v329
  %481 = vmatpush.bf16.msra.mxu0 %v327
  %482 = vmatmul.bf16.gmra.mxu0 %v102
  %v483 = vpop.f32.mrf.mxu0
  %v484 = vadd.f32 %v96, %v483
  %v485 = vpop.f32.mrf.mxu0
  %486 = vdwg.mxu0
  %487 = vmatpush.bf16.msra.mxu0 %v357
  %488 = vmatpush.bf16.msra.mxu0 %v355
  %489 = vmatpush.bf16.msra.mxu0 %v353
  %490 = vmatpush.bf16.msra.mxu0 %v351
  %491 = vmatpush.bf16.msra.mxu0 %v349
  %492 = vmatpush.bf16.msra.mxu0 %v347
  %493 = vmatpush.bf16.msra.mxu0 %v345
  %494 = vmatpush.bf16.msra.mxu0 %v343
  %495 = vmatmul.bf16.gmra.mxu0 %v103
  %v496 = vpop.f32.mrf.mxu0
  %v497 = vadd.f32 %v484, %v496
  %v498 = vpop.f32.mrf.mxu0
  %499 = vdwg.mxu0
  %500 = vmatpush.bf16.msra.mxu0 %v373
  %501 = vmatpush.bf16.msra.mxu0 %v371
  %502 = vmatpush.bf16.msra.mxu0 %v369
  %503 = vmatpush.bf16.msra.mxu0 %v367
  %504 = vmatpush.bf16.msra.mxu0 %v365
  %505 = vmatpush.bf16.msra.mxu0 %v363
  %506 = vmatpush.bf16.msra.mxu0 %v361
  %507 = vmatpush.bf16.msra.mxu0 %v359
  %508 = vmatmul.bf16.gmra.mxu0 %v104
  %v509 = vpop.f32.mrf.mxu0
  %v510 = vadd.f32 %v497, %v509
  %v511 = vpop.f32.mrf.mxu0
  %512 = vdwg.mxu0
  %513 = vmatpush.bf16.msra.mxu0 %v389
  %514 = vmatpush.bf16.msra.mxu0 %v387
  %515 = vmatpush.bf16.msra.mxu0 %v385
  %516 = vmatpush.bf16.msra.mxu0 %v383
  %517 = vmatpush.bf16.msra.mxu0 %v381
  %518 = vmatpush.bf16.msra.mxu0 %v379
  %519 = vmatpush.bf16.msra.mxu0 %v377
  %520 = vmatpush.bf16.msra.mxu0 %v375
  %521 = vmatmul.bf16.gmra.mxu0 %v105
  %v522 = vpop.f32.mrf.mxu0
  %v523 = vadd.f32 %v510, %v522
  %v524 = vpop.f32.mrf.mxu0
  %525 = vdwg.mxu0
  %526 = vmatpush.bf16.msra.mxu0 0
  %527 = vmatpush.bf16.msra.mxu0 0
  %528 = vmatpush.bf16.msra.mxu0 0
  %529 = vmatpush.bf16.msra.mxu0 0
  %530 = vmatpush.bf16.msra.mxu0 %v397
  %531 = vmatpush.bf16.msra.mxu0 %v395
  %532 = vmatpush.bf16.msra.mxu0 %v393
  %533 = vmatpush.bf16.msra.mxu0 %v391
  %534 = vmatmul.bf16.gmra.mxu0 %v472
  %v535 = vpop.f32.mrf.mxu0
  %v536 = vadd.f32 %v523, %v535
  %v537 = vpop.f32.mrf.mxu0
  %538 = vdwg.mxu0
  %539 = vmatpush.bf16.msra.mxu0 %v342
  %540 = vmatpush.bf16.msra.mxu0 %v340
  %541 = vmatpush.bf16.msra.mxu0 %v338
  %542 = vmatpush.bf16.msra.mxu0 %v336
  %543 = vmatpush.bf16.msra.mxu0 %v334
  %544 = vmatpush.bf16.msra.mxu0 %v332
  %545 = vmatpush.bf16.msra.mxu0 %v330
  %546 = vmatpush.bf16.msra.mxu0 %v328
  %547 = vmatmul.bf16.gmra.mxu0 %v102
  %v548 = vpop.f32.mrf.mxu0
  %v549 = vadd.f32 %v97, %v548
  %v550 = vpop.f32.mrf.mxu0
  %551 = vdwg.mxu0
  %552 = vmatpush.bf16.msra.mxu0 %v358
  %553 = vmatpush.bf16.msra.mxu0 %v356
  %554 = vmatpush.bf16.msra.mxu0 %v354
  %555 = vmatpush.bf16.msra.mxu0 %v352
  %556 = vmatpush.bf16.msra.mxu0 %v350
  %557 = vmatpush.bf16.msra.mxu0 %v348
  %558 = vmatpush.bf16.msra.mxu0 %v346
  %559 = vmatpush.bf16.msra.mxu0 %v344
  %560 = vmatmul.bf16.gmra.mxu0 %v103
  %v561 = vpop.f32.mrf.mxu0
  %v562 = vadd.f32 %v549, %v561
  %v563 = vpop.f32.mrf.mxu0
  %564 = vdwg.mxu0
  %565 = vmatpush.bf16.msra.mxu0 %v374
  %566 = vmatpush.bf16.msra.mxu0 %v372
  %567 = vmatpush.bf16.msra.mxu0 %v370
  %568 = vmatpush.bf16.msra.mxu0 %v368
  %569 = vmatpush.bf16.msra.mxu0 %v366
  %570 = vmatpush.bf16.msra.mxu0 %v364
  %571 = vmatpush.bf16.msra.mxu0 %v362
  %572 = vmatpush.bf16.msra.mxu0 %v360
  %573 = vmatmul.bf16.gmra.mxu0 %v104
  %v574 = vpop.f32.mrf.mxu0
  %v575 = vadd.f32 %v562, %v574
  %v576 = vpop.f32.mrf.mxu0
  %577 = vdwg.mxu0
  %578 = vmatpush.bf16.msra.mxu0 %v390
  %579 = vmatpush.bf16.msra.mxu0 %v388
  %580 = vmatpush.bf16.msra.mxu0 %v386
  %581 = vmatpush.bf16.msra.mxu0 %v384
  %582 = vmatpush.bf16.msra.mxu0 %v382
  %583 = vmatpush.bf16.msra.mxu0 %v380
  %584 = vmatpush.bf16.msra.mxu0 %v378
  %585 = vmatpush.bf16.msra.mxu0 %v376
  %586 = vmatmul.bf16.gmra.mxu0 %v105
  %v587 = vpop.f32.mrf.mxu0
  %v588 = vadd.f32 %v575, %v587
  %v589 = vpop.f32.mrf.mxu0
  %590 = vdwg.mxu0
  %591 = vmatpush.bf16.msra.mxu0 0
  %592 = vmatpush.bf16.msra.mxu0 0
  %593 = vmatpush.bf16.msra.mxu0 0
  %594 = vmatpush.bf16.msra.mxu0 0
  %595 = vmatpush.bf16.msra.mxu0 %v398
  %596 = vmatpush.bf16.msra.mxu0 %v396
  %597 = vmatpush.bf16.msra.mxu0 %v394
  %598 = vmatpush.bf16.msra.mxu0 %v392
  %599 = vmatmul.bf16.gmra.mxu0 %v472
  %v600 = vpop.f32.mrf.mxu0
  %v601 = vadd.f32 %v588, %v600
  %v602 = vpop.f32.mrf.mxu0
  %603 = vdwg.mxu0
  %v604 = vpack.c.bf16 %v536, %v536
  %v605 = vpack.c.bf16 %v601, %v601
  %v606 = vld [vmem:[%s3] sm:$0xf]
  %v607 = vld [vmem:[%s3 + $0x4] sm:$0xf]
  %v608 = vld [vmem:[%s3 + $0x8] sm:$0xf]
  %v609 = vld [vmem:[%s3 + $0xc] sm:$0xf]
  %v610 = vld [vmem:[%s3 + $0x10] sm:$0xf]
  %v611 = vld [vmem:[%s3 + $0x14] sm:$0xf]
  %v612 = vld [vmem:[%s3 + $0x18] sm:$0xf]
  %v613 = vld [vmem:[%s3 + $0x1c] sm:$0xf]
  %v614 = vld [vmem:[%s3 + $0x20] sm:$0xf]
  %v615 = vld [vmem:[%s3 + $0x24] sm:$0xf]
  %v616 = vld [vmem:[%s3 + $0x28] sm:$0xf]
  %v617 = vld [vmem:[%s3 + $0x2c] sm:$0xf]
  %v618 = vld [vmem:[%s3 + $0x30] sm:$0xf]
  %v619 = vld [vmem:[%s3 + $0x34] sm:$0xf]
  %v620 = vld [vmem:[%s3 + $0x38] sm:$0xf]
  %v621 = vld [vmem:[%s3 + $0x3c] sm:$0xf]
  %v622 = vld [vmem:[%s3 + $0x40] sm:$0xf]
  %v623 = vld [vmem:[%s3 + $0x44] sm:$0xf]
  %v624 = vld [vmem:[%s3 + $0x48] sm:$0xf]
  %v625 = vld [vmem:[%s3 + $0x4c] sm:$0xf]
  %v626 = vld [vmem:[%s3 + $0x50] sm:$0xf]
  %v627 = vld [vmem:[%s3 + $0x54] sm:$0xf]
  %v628 = vld [vmem:[%s3 + $0x58] sm:$0xf]
  %v629 = vld [vmem:[%s3 + $0x5c] sm:$0xf]
  %v630 = vld [vmem:[%s3 + $0x60] sm:$0xf]
  %v631 = vld [vmem:[%s3 + $0x64] sm:$0xf]
  %v632 = vld [vmem:[%s3 + $0x68] sm:$0xf]
  %v633 = vld [vmem:[%s3 + $0x6c] sm:$0xf]
  %v634 = vld [vmem:[%s3 + $0x70] sm:$0xf]
  %v635 = vld [vmem:[%s3 + $0x74] sm:$0xf]
  %v636 = vld [vmem:[%s3 + $0x78] sm:$0xf]
  %v637 = vld [vmem:[%s3 + $0x7c] sm:$0xf]
  %v638 = vld [vmem:[%s4] sm:$0x1]
  %v640 = vperm.slane %v638, 0
  %v674 = vunpack.c.l.b16 %v606
  %v675 = vunpack.c.l.b16 %v607
  %v676 = vunpack.c.l.b16 %v608
  %v677 = vunpack.c.l.b16 %v609
  %v678 = vunpack.c.l.b16 %v610
  %v679 = vunpack.c.l.b16 %v611
  %v680 = vunpack.c.l.b16 %v612
  %v681 = vunpack.c.l.b16 %v613
  %v682 = vunpack.c.l.b16 %v614
  %v683 = vunpack.c.l.b16 %v615
  %v684 = vunpack.c.l.b16 %v616
  %v685 = vunpack.c.l.b16 %v617
  %v686 = vunpack.c.l.b16 %v618
  %v687 = vunpack.c.l.b16 %v619
  %v688 = vunpack.c.l.b16 %v620
  %v689 = vunpack.c.l.b16 %v621
  %v690 = vunpack.c.l.b16 %v622
  %v691 = vunpack.c.l.b16 %v623
  %v692 = vunpack.c.l.b16 %v624
  %v693 = vunpack.c.l.b16 %v625
  %v694 = vunpack.c.l.b16 %v626
  %v695 = vunpack.c.l.b16 %v627
  %v696 = vunpack.c.l.b16 %v628
  %v697 = vunpack.c.l.b16 %v629
  %v698 = vunpack.c.l.b16 %v630
  %v699 = vunpack.c.l.b16 %v631
  %v700 = vunpack.c.l.b16 %v632
  %v701 = vunpack.c.l.b16 %v633
  %v702 = vunpack.c.l.b16 %v634
  %v703 = vunpack.c.l.b16 %v635
  %v704 = vunpack.c.l.b16 %v636
  %v705 = vunpack.c.l.b16 %v637
  %v706 = vpack.c.b16 %v675, %v674
  %v707 = vpack.c.b16 %v677, %v676
  %v708 = vpack.c.b16 %v679, %v678
  %v709 = vpack.c.b16 %v681, %v680
  %v710 = vpack.c.b16 %v683, %v682
  %v711 = vpack.c.b16 %v685, %v684
  %v712 = vpack.c.b16 %v687, %v686
  %v713 = vpack.c.b16 %v689, %v688
  %v714 = vpack.c.b16 %v691, %v690
  %v715 = vpack.c.b16 %v693, %v692
  %v716 = vpack.c.b16 %v695, %v694
  %v717 = vpack.c.b16 %v697, %v696
  %v718 = vpack.c.b16 %v699, %v698
  %v719 = vpack.c.b16 %v701, %v700
  %v720 = vpack.c.b16 %v703, %v702
  %v721 = vpack.c.b16 %v705, %v704
  %738 = vmatpush.bf16.msra.mxu0 %v713
  %739 = vmatpush.bf16.msra.mxu0 %v712
  %740 = vmatpush.bf16.msra.mxu0 %v711
  %741 = vmatpush.bf16.msra.mxu0 %v710
  %742 = vmatpush.bf16.msra.mxu0 %v709
  %743 = vmatpush.bf16.msra.mxu0 %v708
  %744 = vmatpush.bf16.msra.mxu0 %v707
  %745 = vmatpush.bf16.msra.mxu0 %v706
  %746 = vmatmul.bf16.gmra.mxu0 %v604
  %v747 = vpop.f32.mrf.mxu0
  %v748 = vadd.f32 %v640, %v747
  %v749 = vpop.f32.mrf.mxu0
  %750 = vdwg.mxu0
  %751 = vmatpush.bf16.msra.mxu0 %v721
  %752 = vmatpush.bf16.msra.mxu0 %v720
  %753 = vmatpush.bf16.msra.mxu0 %v719
  %754 = vmatpush.bf16.msra.mxu0 %v718
  %755 = vmatpush.bf16.msra.mxu0 %v717
  %756 = vmatpush.bf16.msra.mxu0 %v716
  %757 = vmatpush.bf16.msra.mxu0 %v715
  %758 = vmatpush.bf16.msra.mxu0 %v714
  %759 = vmatmul.bf16.gmra.mxu0 %v605
  %v760 = vpop.f32.mrf.mxu0
  %v761 = vadd.f32 %v748, %v760
  %v762 = vpop.f32.mrf.mxu0
  %763 = vdwg.mxu0
  %vm764 = vcmask 517120
  %765 = vst.msk [vmem:[%s5] sm:$0x3] %vm764, %v761
  // Predicated region
  $region22: #{encoder_forward.9} parent=0 // pred_check
    _
  $region23: #{encoder_forward.9} parent=0 // pred_check_branch
    %767 = sbr.rel (0) target = $region25
  $region24: #{encoder_forward.9} parent=0 // pred_region
    _
  $region25: #{encoder_forward.9} parent=0 // pred_fallthru
    _
  // Predicated region
  $region26: #{encoder_forward.9} parent=0 // pred_check
    _
  $region27: #{encoder_forward.9} parent=0 // pred_check_branch
    %769 = sbr.rel (0) target = $region29
  $region28: #{encoder_forward.9} parent=0 // pred_region
    _
  $region29: #{encoder_forward.9} parent=0 // pred_fallthru
    _

</llo_original>
